<compile_context>
chip_gen: v7x
topology: tpu7x:2x2x1
jax: 0.10.0
libtpu: 0.0.40
codegen_flags: <defaults>
</compile_context>

<pallas_src>
import functools
import math

import jax
import jax.numpy as jnp
from jax.experimental import pallas as pl
from jax.experimental.pallas import tpu as pltpu

_NEG = -1e9
_VMEM_LIMIT = 48 * 1024 * 1024   # > v5e 16 MiB scoped default, < v7x 64 MiB physical


def _layernorm(z, g, b):
    mu = jnp.mean(z, axis=-1, keepdims=True)
    var = jnp.mean(jnp.square(z - mu), axis=-1, keepdims=True)
    return (z - mu) * jax.lax.rsqrt(var + 1e-5) * g + b


def _weight_spec(shape):
    # Constant index_map -> stays resident in VMEM across grid steps; single-buffered.
    return pl.BlockSpec(shape, lambda b, t: (0, 0), pipeline_mode=pl.Buffered(1))


# --------------------------------------------------------------------------
# Fused multi-head attention block:
#   Q = x_tile @ Wq (+bq)          (1/sqrt(d_k) pre-folded into Wq / bq)
#   [K|V] = kv @ Wkv (+bkv)        (one fused matmul, full key length)
#   per head: softmax(Q K^T + bias) V  -> concat -> ONE matmul with Wo
#   out = mask_pad * LayerNorm(x_tile + attn @ Wo + bo)
# Self-attention path: a single full-sequence input supplies both Q (tile slice)
# and K/V; the causal+pad bias is generated in-kernel.
# --------------------------------------------------------------------------

def _mha_kernel(*refs, h, d_k, d_v, t_tile, is_self):
    if is_self:
        (x_ref, keep_ref, wq_ref, bq_ref, wkv_ref, bkv_ref,
         wo_ref, bo_ref, g_ref, be_ref, pad_ref, o_ref) = refs
        kv_b = x_ref[0]                                          # (S=T, D) bf16
        q0 = pl.multiple_of(pl.program_id(1) * t_tile, t_tile)
        x_tile = x_ref[0, pl.ds(q0, t_tile), :]                  # (tT, D) bf16
    else:
        (x_ref, kv_ref, wq_ref, bq_ref, wkv_ref, bkv_ref,
         wo_ref, bo_ref, g_ref, be_ref, pad_ref, o_ref) = refs
        kv_b = kv_ref[0]                                         # (S, D) bf16
        x_tile = x_ref[0]                                        # (tT, D) bf16

    S = kv_b.shape[0]

    # fused projections (bf16 operands, f32 accumulation)
    q = jnp.dot(x_tile, wq_ref[...], preferred_element_type=jnp.float32) + bq_ref[...]
    kvp = jnp.dot(kv_b, wkv_ref[...], preferred_element_type=jnp.float32) + bkv_ref[...]

    if is_self:
        # causal + key-pad additive bias, generated in-kernel (no (T,S) DMA).
        rows = q0 + jax.lax.broadcasted_iota(jnp.int32, (t_tile, S), 0)
        cols = jax.lax.broadcasted_iota(jnp.int32, (t_tile, S), 1)
        bias = (jnp.where(cols > rows, _NEG, 0.0)
                + jnp.where(keep_ref[0] > 0.5, 0.0, _NEG))       # (tT,S)+(1,S)
    else:
        bias = None   # reference calls enc_att with mask_encoder=None

    # TODO(synk): convert to lax.fori_loop(unroll=True) with pl.ds head slicing at
    # realistic h/T to bound live ranges; static loop is fine at these sizes.
    avs = []
    for i in range(h):
        qi = q[:, i * d_k:(i + 1) * d_k].astype(jnp.bfloat16)                # (tT,d_k)
        ki = kvp[:, i * d_k:(i + 1) * d_k].astype(jnp.bfloat16)              # (S, d_k)
        vi = kvp[:, h * d_k + i * d_v: h * d_k + (i + 1) * d_v].astype(jnp.bfloat16)
        s = jnp.einsum('qd,kd->qk', qi, ki, preferred_element_type=jnp.float32)
        if bias is not None:
            s = s + bias
        s = s - jnp.max(s, axis=-1, keepdims=True)
        p = jnp.exp(s)
        p = p * pl.reciprocal(jnp.sum(p, axis=-1, keepdims=True), approx=True)
        av = jnp.dot(p.astype(jnp.bfloat16), vi, preferred_element_type=jnp.float32)
        avs.append(av.astype(jnp.bfloat16))

    cat = jnp.concatenate(avs, axis=-1)                          # (tT, h*d_v) bf16
    attn = jnp.dot(cat, wo_ref[...], preferred_element_type=jnp.float32)     # (tT, D)

    z = x_tile.astype(jnp.float32) + attn + bo_ref[...]          # residual in f32
    y = _layernorm(z, g_ref[...], be_ref[...])
    o_ref[0] = (y * pad_ref[0]).astype(o_ref.dtype)              # fold mask_pad multiply


def fused_mha(q_in, kv_in, keep_row, mask_pad, p, *, d_k, d_v, h, t_tile, is_self):
    """Fused MHA block. q_in:(B,T,D) bf16. kv_in:(B,S,D) bf16 (enc path only)."""
    B, T, D = q_in.shape
    nq = h * d_k
    nv = h * d_v
    nkv = nq + nv
    n_t = T // t_tile

    if is_self:
        in_specs = [pl.BlockSpec((1, T, D), lambda b, t: (b, 0, 0)),   # full seq (Q+KV)
                    pl.BlockSpec((1, 1, T), lambda b, t: (b, 0, 0))]   # key keep mask
        args = [q_in, keep_row]
    else:
        S = kv_in.shape[1]
        in_specs = [pl.BlockSpec((1, t_tile, D), lambda b, t: (b, t, 0)),  # Q tile
                    pl.BlockSpec((1, S, D), lambda b, t: (b, 0, 0))]       # full memory
        args = [q_in, kv_in]

    in_specs += [_weight_spec((D, nq)), _weight_spec((1, nq)),
                 _weight_spec((D, nkv)), _weight_spec((1, nkv)),
                 _weight_spec((nv, D)), _weight_spec((1, D)),
                 _weight_spec((1, D)), _weight_spec((1, D)),
                 pl.BlockSpec((1, t_tile, 1), lambda b, t: (b, t, 0))]
    args += [p['wq'], p['bq'].reshape(1, nq),
             p['wkv'], p['bkv'].reshape(1, nkv),
             p['wo'], p['bo'].reshape(1, D),
             p['ln_g'].reshape(1, D), p['ln_b'].reshape(1, D),
             mask_pad]

    kern = functools.partial(_mha_kernel, h=h, d_k=d_k, d_v=d_v,
                             t_tile=t_tile, is_self=is_self)
    return pl.pallas_call(
        kern,
        out_shape=jax.ShapeDtypeStruct((B, T, D), jnp.bfloat16),
        grid=(B, n_t),
        in_specs=in_specs,
        out_specs=pl.BlockSpec((1, t_tile, D), lambda b, t: (b, t, 0)),
        compiler_params=pltpu.CompilerParams(
            dimension_semantics=("parallel", "parallel"),
            vmem_limit_bytes=_VMEM_LIMIT),
    )(*args)


# --------------------------------------------------------------------------
# Fused position-wise FFN:  out = mask_pad * LayerNorm(x + fc2(relu(fc1(x))))
# --------------------------------------------------------------------------

def _ffn_kernel(x_ref, w1_ref, b1_ref, w2_ref, b2_ref, g_ref, be_ref, pad_ref, o_ref):
    x = x_ref[0]                                                 # (tT, D) bf16
    h1 = jnp.dot(x, w1_ref[...], preferred_element_type=jnp.float32) + b1_ref[...]
    h1 = jnp.maximum(h1, 0.0)
    y = jnp.dot(h1.astype(jnp.bfloat16), w2_ref[...],
                preferred_element_type=jnp.float32) + b2_ref[...]
    z = x.astype(jnp.float32) + y
    out = _layernorm(z, g_ref[...], be_ref[...])
    o_ref[0] = (out * pad_ref[0]).astype(o_ref.dtype)


def fused_ffn(x, mask_pad, p, *, t_tile):
    B, T, D = x.shape
    Fd = p['w1'].shape[1]
    n_t = T // t_tile
    return pl.pallas_call(
        _ffn_kernel,
        out_shape=jax.ShapeDtypeStruct((B, T, D), jnp.bfloat16),
        grid=(B, n_t),
        in_specs=[pl.BlockSpec((1, t_tile, D), lambda b, t: (b, t, 0)),
                  _weight_spec((D, Fd)), _weight_spec((1, Fd)),
                  _weight_spec((Fd, D)), _weight_spec((1, D)),
                  _weight_spec((1, D)), _weight_spec((1, D)),
                  pl.BlockSpec((1, t_tile, 1), lambda b, t: (b, t, 0))],
        out_specs=pl.BlockSpec((1, t_tile, D), lambda b, t: (b, t, 0)),
        compiler_params=pltpu.CompilerParams(
            dimension_semantics=("parallel", "parallel"),
            vmem_limit_bytes=_VMEM_LIMIT),
    )(x, p['w1'], p['b1'].reshape(1, Fd), p['w2'], p['b2'].reshape(1, D),
      p['ln_g'].reshape(1, D), p['ln_b'].reshape(1, D), mask_pad)


# --------------------------------------------------------------------------
# Fused final projection (no bias) + log_softmax, tiled over (batch, seq-tile)
# --------------------------------------------------------------------------

def _fc_logsoftmax_kernel(x_ref, w_ref, o_ref):
    logits = jnp.dot(x_ref[0], w_ref[...], preferred_element_type=jnp.float32)  # (tT,V)
    m = jnp.max(logits, axis=-1, keepdims=True)
    s = logits - m
    o_ref[0] = (s - jnp.log(jnp.sum(jnp.exp(s), axis=-1, keepdims=True))
                ).astype(o_ref.dtype)


def fused_fc_log_softmax(x, w, *, t_tile):
    B, T, D = x.shape
    V = w.shape[1]
    n_t = T // t_tile
    # TODO(synk): for vocab >> few K (v7x 64 MiB VMEM), tile the V axis with an online
    # logsumexp (streamed weight tiles, resident output block) instead of keeping the
    # full (D, V) weight resident; single-buffering fc_w already halves its residency.
    return pl.pallas_call(
        _fc_logsoftmax_kernel,
        out_shape=jax.ShapeDtypeStruct((B, T, V), jnp.float32),
        grid=(B, n_t),
        in_specs=[pl.BlockSpec((1, t_tile, D), lambda b, t: (b, t, 0)),
                  _weight_spec((D, V))],
        out_specs=pl.BlockSpec((1, t_tile, V), lambda b, t: (b, t, 0)),
        compiler_params=pltpu.CompilerParams(
            dimension_semantics=("parallel", "parallel"),
            vmem_limit_bytes=_VMEM_LIMIT),
    )(x, w)


# --------------------------------------------------------------------------
# Model glue (plain JAX: embedding gathers, pad masks)
# --------------------------------------------------------------------------

def meshed_decoder_layer(x, enc_out, keep_row, mask_pad, p, *, d_k, d_v, h, t_tile):
    sa = fused_mha(x, None, keep_row, mask_pad, p['self_att'],
                   d_k=d_k, d_v=d_v, h=h, t_tile=t_tile, is_self=True)
    ea = fused_mha(sa, enc_out, None, mask_pad, p['enc_att'],
                   d_k=d_k, d_v=d_v, h=h, t_tile=t_tile, is_self=False)
    return fused_ffn(ea, mask_pad, p['pwff'], t_tile=t_tile)
    # TODO(synk): multi_level=True (3-way meshed gating) and aux_loss branches not implemented.


def transformer_decoder(tokens, enc_out, params, *, padding_idx, d_k, d_v, h, t_tile=None):
    B, T = tokens.shape
    if t_tile is None:
        t_tile = min(T, 128)
    assert T % t_tile == 0 and t_tile % 16 == 0

    pad = tokens == padding_idx
    keep = (~pad).astype(jnp.float32)
    keep_row = keep.reshape(B, 1, T)     # key-axis keep mask (self-attn bias, in-kernel)
    mask_pad = keep.reshape(B, T, 1)     # query-row keep mask (output multiply)

    seq = jnp.broadcast_to(jnp.arange(1, T + 1, dtype=jnp.int32)[None, :], (B, T))
    seq = jnp.where(pad, 0, seq)
    out = params['word_emb'][tokens] + params['pos_emb'][seq]    # XLA gathers (f32)
    out = out.astype(jnp.bfloat16)                               # bf16 activations in HBM
    enc_b = enc_out.astype(jnp.bfloat16)
    # TODO(synk): mask_encoder (padded encoder memory) not supported; reference default None.

    for lp in params['layers']:
        out = meshed_decoder_layer(out, enc_b, keep_row, mask_pad, lp,
                                   d_k=d_k, d_v=d_v, h=h, t_tile=t_tile)
    return fused_fc_log_softmax(out, params['fc_w'], t_tile=t_tile)


def sinusoid_encoding_table(n_pos, d_model, padding_idx=None):
    pos = jnp.arange(n_pos, dtype=jnp.float32)[:, None]
    dim = jnp.arange(d_model // 2, dtype=jnp.float32)[None, :]
    angle = pos / jnp.power(10000.0, 2.0 * dim / d_model)
    tab = jnp.zeros((n_pos, d_model), jnp.float32)
    tab = tab.at[:, 0::2].set(jnp.sin(angle))
    tab = tab.at[:, 1::2].set(jnp.cos(angle))
    if padding_idx is not None:
        tab = tab.at[padding_idx].set(0.0)
    return tab


# --------------------------------------------------------------------------
# Deterministic parameter initialization (matmul weights stored in bf16)
# --------------------------------------------------------------------------

def _normal(key, shape, scale=0.02):
    return scale * jax.random.normal(key, shape, jnp.float32)


def _init_mha(key, d_model, d_k, d_v, h):
    ks = jax.random.split(key, 4)
    scale = 1.0 / math.sqrt(d_k)
    wq = _normal(ks[0], (d_model, h * d_k)) * scale          # 1/sqrt(d_k) folded into Wq
    bq = jnp.zeros((h * d_k,), jnp.float32) * scale          # (bias scaled identically)
    wk = _normal(ks[1], (d_model, h * d_k))
    wv = _normal(ks[2], (d_model, h * d_v))
    wkv = jnp.concatenate([wk, wv], axis=1)                  # fused K|V projection
    bkv = jnp.zeros((h * d_k + h * d_v,), jnp.float32)
    wo = _normal(ks[3], (h * d_v, d_model))
    bo = jnp.zeros((d_model,), jnp.float32)
    return dict(wq=wq.astype(jnp.bfloat16), bq=bq,
                wkv=wkv.astype(jnp.bfloat16), bkv=bkv,
                wo=wo.astype(jnp.bfloat16), bo=bo,
                ln_g=jnp.ones((d_model,), jnp.float32),
                ln_b=jnp.zeros((d_model,), jnp.float32))


def init_params(key, *, vocab_size, max_len, n_dec, padding_idx,
                d_model, d_k, d_v, h, d_ff):
    keys = jax.random.split(key, 2 + 3 * n_dec)
    word_emb = _normal(keys[0], (vocab_size, d_model))
    word_emb = word_emb.at[padding_idx].set(0.0)
    pos_emb = sinusoid_encoding_table(max_len + 1, d_model, padding_idx=0)
    layers = []
    for i in range(n_dec):
        k_self, k_enc, k_ff = keys[2 + 3 * i: 5 + 3 * i]
        k1, k2 = jax.random.split(k_ff)
        layers.append(dict(
            self_att=_init_mha(k_self, d_model, d_k, d_v, h),
            enc_att=_init_mha(k_enc, d_model, d_k, d_v, h),
            pwff=dict(w1=_normal(k1, (d_model, d_ff)).astype(jnp.bfloat16),
                      b1=jnp.zeros((d_ff,), jnp.float32),
                      w2=_normal(k2, (d_ff, d_model)).astype(jnp.bfloat16),
                      b2=jnp.zeros((d_model,), jnp.float32),
                      ln_g=jnp.ones((d_model,), jnp.float32),
                      ln_b=jnp.zeros((d_model,), jnp.float32))))
    fc_w = _normal(keys[1], (d_model, vocab_size)).astype(jnp.bfloat16)  # fc: no bias
    return dict(word_emb=word_emb, pos_emb=pos_emb, layers=layers, fc_w=fc_w)


# --------------------------------------------------------------------------
# Main
# --------------------------------------------------------------------------

if __name__ == "__main__":
    # scaled-down config consistent with the module (d_model=512, h=8, d_ff=2048);
    # dims lane-dense (mult of 128), seq tiles bf16-friendly (mult of 16).
    VOCAB, MAX_LEN, N_DEC, PAD = 512, 64, 2, 0
    D_MODEL, D_K, D_V, H, D_FF = 128, 32, 32, 4, 256
    B, T, M_ENC = 2, 32, 16
    T_TILE = 16                                   # grid = (B, T//T_TILE) = (2, 2)

    key = jax.random.PRNGKey(0)
    k_par, k_tok, k_enc = jax.random.split(key, 3)

    params = init_params(k_par, vocab_size=VOCAB, max_len=MAX_LEN, n_dec=N_DEC,
                         padding_idx=PAD, d_model=D_MODEL, d_k=D_K, d_v=D_V,
                         h=H, d_ff=D_FF)

    tokens = jax.random.randint(k_tok, (B, T), 1, VOCAB, dtype=jnp.int32)
    tokens = tokens.at[1, -4:].set(PAD)           # padded tail in second sequence
    enc_out = jax.random.normal(k_enc, (B, M_ENC, D_MODEL), jnp.float32)

    decoder = jax.jit(functools.partial(transformer_decoder, padding_idx=PAD,
                                        d_k=D_K, d_v=D_V, h=H, t_tile=T_TILE))
    out = decoder(tokens, enc_out, params)
    out = jax.block_until_ready(out)
    assert out.shape == (B, T, VOCAB)
    assert bool(jnp.all(jnp.isfinite(out)))
    print("KERNEL_OK")
</pallas_src>

<mosaic_0001>
module attributes {stable_mosaic.version = 11 : i64} {
  func.func @_mha_kernel(%arg0: i32, %arg1: i32, %arg2: memref<1x16x128xbf16, #tpu.memory_space<vmem>>, %arg3: memref<1x16x128xbf16, #tpu.memory_space<vmem>>, %arg4: memref<128x128xbf16, #tpu.memory_space<vmem>>, %arg5: memref<1x128xf32, #tpu.memory_space<vmem>>, %arg6: memref<128x256xbf16, #tpu.memory_space<vmem>>, %arg7: memref<1x256xf32, #tpu.memory_space<vmem>>, %arg8: memref<128x128xbf16, #tpu.memory_space<vmem>>, %arg9: memref<1x128xf32, #tpu.memory_space<vmem>>, %arg10: memref<1x128xf32, #tpu.memory_space<vmem>>, %arg11: memref<1x128xf32, #tpu.memory_space<vmem>>, %arg12: memref<1x16x1xf32, #tpu.memory_space<vmem>>, %arg13: memref<1x16x128xbf16, #tpu.memory_space<vmem>>) attributes {dimension_semantics = [#tpu.dimension_semantics<parallel>, #tpu.dimension_semantics<parallel>], iteration_bounds = array<i64: 2, 2>, scalar_prefetch = 0 : i64, scratch_operands = 0 : i64, tpu.core_type = #tpu.core_type<tc>, window_params = [{transform_indices = @transform_0, window_bounds = array<i64: 1, 16, 128>}, {transform_indices = @transform_1, window_bounds = array<i64: 1, 16, 128>}, {pipeline_mode = #tpu.pipeline_mode<synchronous>, transform_indices = @transform_2, window_bounds = array<i64: 128, 128>}, {pipeline_mode = #tpu.pipeline_mode<synchronous>, transform_indices = @transform_3, window_bounds = array<i64: 1, 128>}, {pipeline_mode = #tpu.pipeline_mode<synchronous>, transform_indices = @transform_4, window_bounds = array<i64: 128, 256>}, {pipeline_mode = #tpu.pipeline_mode<synchronous>, transform_indices = @transform_5, window_bounds = array<i64: 1, 256>}, {pipeline_mode = #tpu.pipeline_mode<synchronous>, transform_indices = @transform_6, window_bounds = array<i64: 128, 128>}, {pipeline_mode = #tpu.pipeline_mode<synchronous>, transform_indices = @transform_7, window_bounds = array<i64: 1, 128>}, {pipeline_mode = #tpu.pipeline_mode<synchronous>, transform_indices = @transform_8, window_bounds = array<i64: 1, 128>}, {pipeline_mode = #tpu.pipeline_mode<synchronous>, transform_indices = @transform_9, window_bounds = array<i64: 1, 128>}, {transform_indices = @transform_10, window_bounds = array<i64: 1, 16, 1>}, {transform_indices = @transform_11, window_bounds = array<i64: 1, 16, 128>}]} {
    %c0 = arith.constant 0 : index
    %c0_0 = arith.constant 0 : index
    %c0_1 = arith.constant 0 : index
    %0 = vector.load %arg3[%c0, %c0_0, %c0_1] : memref<1x16x128xbf16, #tpu.memory_space<vmem>>, vector<1x16x128xbf16>
    %1 = vector.shape_cast %0 : vector<1x16x128xbf16> to vector<16x128xbf16>
    %c0_2 = arith.constant 0 : index
    %c0_3 = arith.constant 0 : index
    %c0_4 = arith.constant 0 : index
    %2 = vector.load %arg2[%c0_2, %c0_3, %c0_4] : memref<1x16x128xbf16, #tpu.memory_space<vmem>>, vector<1x16x128xbf16>
    %3 = vector.shape_cast %2 : vector<1x16x128xbf16> to vector<16x128xbf16>
    %c0_5 = arith.constant 0 : index
    %c0_6 = arith.constant 0 : index
    %4 = vector.load %arg4[%c0_5, %c0_6] : memref<128x128xbf16, #tpu.memory_space<vmem>>, vector<128x128xbf16>
    %cst = arith.constant dense<0.000000e+00> : vector<16x128xf32>
    %5 = tpu.matmul %3, %4, %cst {dimension_numbers = #tpu.dot_dimension_numbers<[1], [0], [0], [1], [0, 0, 1, 1], [], []>} : vector<16x128xbf16>, vector<128x128xbf16>, vector<16x128xf32> -> vector<16x128xf32>
    %c0_7 = arith.constant 0 : index
    %c0_8 = arith.constant 0 : index
    %6 = vector.load %arg5[%c0_7, %c0_8] : memref<1x128xf32, #tpu.memory_space<vmem>>, vector<1x128xf32>
    %7 = vector.broadcast %6 : vector<1x128xf32> to vector<16x128xf32>
    %8 = arith.addf %5, %7 : vector<16x128xf32>
    %c0_9 = arith.constant 0 : index
    %c0_10 = arith.constant 0 : index
    %9 = vector.load %arg6[%c0_9, %c0_10] : memref<128x256xbf16, #tpu.memory_space<vmem>>, vector<128x256xbf16>
    %cst_11 = arith.constant dense<0.000000e+00> : vector<16x256xf32>
    %10 = tpu.matmul %1, %9, %cst_11 {dimension_numbers = #tpu.dot_dimension_numbers<[1], [0], [0], [1], [0, 0, 1, 1], [], []>} : vector<16x128xbf16>, vector<128x256xbf16>, vector<16x256xf32> -> vector<16x256xf32>
    %c0_12 = arith.constant 0 : index
    %c0_13 = arith.constant 0 : index
    %11 = vector.load %arg7[%c0_12, %c0_13] : memref<1x256xf32, #tpu.memory_space<vmem>>, vector<1x256xf32>
    %12 = vector.broadcast %11 : vector<1x256xf32> to vector<16x256xf32>
    %13 = arith.addf %10, %12 : vector<16x256xf32>
    %14 = vector.extract_strided_slice %8 {offsets = [0, 0], sizes = [16, 32], strides = [1, 1]} : vector<16x128xf32> to vector<16x32xf32>
    %15 = arith.truncf %14 : vector<16x32xf32> to vector<16x32xbf16>
    %16 = vector.extract_strided_slice %13 {offsets = [0, 0], sizes = [16, 32], strides = [1, 1]} : vector<16x256xf32> to vector<16x32xf32>
    %17 = arith.truncf %16 : vector<16x32xf32> to vector<16x32xbf16>
    %18 = vector.extract_strided_slice %13 {offsets = [0, 128], sizes = [16, 32], strides = [1, 1]} : vector<16x256xf32> to vector<16x32xf32>
    %19 = arith.truncf %18 : vector<16x32xf32> to vector<16x32xbf16>
    "tpu.trace_start"() <{level = 10 : i32, message = "qd,kd->qk"}> : () -> ()
    %cst_14 = arith.constant dense<0.000000e+00> : vector<16x16xf32>
    %20 = tpu.matmul %15, %17, %cst_14 {dimension_numbers = #tpu.dot_dimension_numbers<[1], [1], [0], [0], [0, 0, 1, 0], [], []>} : vector<16x32xbf16>, vector<16x32xbf16>, vector<16x16xf32> -> vector<16x16xf32>
    "tpu.trace_stop"() : () -> ()
    %cst_15 = arith.constant dense<0xFF800000> : vector<16xf32>
    %21 = vector.multi_reduction <maximumf>, %20, %cst_15 [1] : vector<16x16xf32> to vector<16xf32>
    %22 = vector.shape_cast %21 : vector<16xf32> to vector<16x1xf32>
    %23 = vector.broadcast %22 : vector<16x1xf32> to vector<16x16xf32>
    %24 = arith.subf %20, %23 : vector<16x16xf32>
    %25 = math.exp %24 : vector<16x16xf32>
    %cst_16 = arith.constant dense<0.000000e+00> : vector<16xf32>
    %26 = vector.multi_reduction <add>, %25, %cst_16 [1] : vector<16x16xf32> to vector<16xf32>
    %27 = vector.shape_cast %26 : vector<16xf32> to vector<16x1xf32>
    %28 = tpu.reciprocal %27 {approx = true} : vector<16x1xf32> -> vector<16x1xf32>
    %29 = vector.broadcast %28 : vector<16x1xf32> to vector<16x16xf32>
    %30 = arith.mulf %25, %29 : vector<16x16xf32>
    %31 = arith.truncf %30 : vector<16x16xf32> to vector<16x16xbf16>
    %cst_17 = arith.constant dense<0.000000e+00> : vector<16x32xf32>
    %32 = tpu.matmul %31, %19, %cst_17 {dimension_numbers = #tpu.dot_dimension_numbers<[1], [0], [0], [1], [0, 0, 1, 1], [], []>} : vector<16x16xbf16>, vector<16x32xbf16>, vector<16x32xf32> -> vector<16x32xf32>
    %33 = arith.truncf %32 : vector<16x32xf32> to vector<16x32xbf16>
    %34 = vector.extract_strided_slice %8 {offsets = [0, 32], sizes = [16, 32], strides = [1, 1]} : vector<16x128xf32> to vector<16x32xf32>
    %35 = arith.truncf %34 : vector<16x32xf32> to vector<16x32xbf16>
    %36 = vector.extract_strided_slice %13 {offsets = [0, 32], sizes = [16, 32], strides = [1, 1]} : vector<16x256xf32> to vector<16x32xf32>
    %37 = arith.truncf %36 : vector<16x32xf32> to vector<16x32xbf16>
    %38 = vector.extract_strided_slice %13 {offsets = [0, 160], sizes = [16, 32], strides = [1, 1]} : vector<16x256xf32> to vector<16x32xf32>
    %39 = arith.truncf %38 : vector<16x32xf32> to vector<16x32xbf16>
    "tpu.trace_start"() <{level = 10 : i32, message = "qd,kd->qk"}> : () -> ()
    %cst_18 = arith.constant dense<0.000000e+00> : vector<16x16xf32>
    %40 = tpu.matmul %35, %37, %cst_18 {dimension_numbers = #tpu.dot_dimension_numbers<[1], [1], [0], [0], [0, 0, 1, 0], [], []>} : vector<16x32xbf16>, vector<16x32xbf16>, vector<16x16xf32> -> vector<16x16xf32>
    "tpu.trace_stop"() : () -> ()
    %cst_19 = arith.constant dense<0xFF800000> : vector<16xf32>
    %41 = vector.multi_reduction <maximumf>, %40, %cst_19 [1] : vector<16x16xf32> to vector<16xf32>
    %42 = vector.shape_cast %41 : vector<16xf32> to vector<16x1xf32>
    %43 = vector.broadcast %42 : vector<16x1xf32> to vector<16x16xf32>
    %44 = arith.subf %40, %43 : vector<16x16xf32>
    %45 = math.exp %44 : vector<16x16xf32>
    %cst_20 = arith.constant dense<0.000000e+00> : vector<16xf32>
    %46 = vector.multi_reduction <add>, %45, %cst_20 [1] : vector<16x16xf32> to vector<16xf32>
    %47 = vector.shape_cast %46 : vector<16xf32> to vector<16x1xf32>
    %48 = tpu.reciprocal %47 {approx = true} : vector<16x1xf32> -> vector<16x1xf32>
    %49 = vector.broadcast %48 : vector<16x1xf32> to vector<16x16xf32>
    %50 = arith.mulf %45, %49 : vector<16x16xf32>
    %51 = arith.truncf %50 : vector<16x16xf32> to vector<16x16xbf16>
    %cst_21 = arith.constant dense<0.000000e+00> : vector<16x32xf32>
    %52 = tpu.matmul %51, %39, %cst_21 {dimension_numbers = #tpu.dot_dimension_numbers<[1], [0], [0], [1], [0, 0, 1, 1], [], []>} : vector<16x16xbf16>, vector<16x32xbf16>, vector<16x32xf32> -> vector<16x32xf32>
    %53 = arith.truncf %52 : vector<16x32xf32> to vector<16x32xbf16>
    %54 = vector.extract_strided_slice %8 {offsets = [0, 64], sizes = [16, 32], strides = [1, 1]} : vector<16x128xf32> to vector<16x32xf32>
    %55 = arith.truncf %54 : vector<16x32xf32> to vector<16x32xbf16>
    %56 = vector.extract_strided_slice %13 {offsets = [0, 64], sizes = [16, 32], strides = [1, 1]} : vector<16x256xf32> to vector<16x32xf32>
    %57 = arith.truncf %56 : vector<16x32xf32> to vector<16x32xbf16>
    %58 = vector.extract_strided_slice %13 {offsets = [0, 192], sizes = [16, 32], strides = [1, 1]} : vector<16x256xf32> to vector<16x32xf32>
    %59 = arith.truncf %58 : vector<16x32xf32> to vector<16x32xbf16>
    "tpu.trace_start"() <{level = 10 : i32, message = "qd,kd->qk"}> : () -> ()
    %cst_22 = arith.constant dense<0.000000e+00> : vector<16x16xf32>
    %60 = tpu.matmul %55, %57, %cst_22 {dimension_numbers = #tpu.dot_dimension_numbers<[1], [1], [0], [0], [0, 0, 1, 0], [], []>} : vector<16x32xbf16>, vector<16x32xbf16>, vector<16x16xf32> -> vector<16x16xf32>
    "tpu.trace_stop"() : () -> ()
    %cst_23 = arith.constant dense<0xFF800000> : vector<16xf32>
    %61 = vector.multi_reduction <maximumf>, %60, %cst_23 [1] : vector<16x16xf32> to vector<16xf32>
    %62 = vector.shape_cast %61 : vector<16xf32> to vector<16x1xf32>
    %63 = vector.broadcast %62 : vector<16x1xf32> to vector<16x16xf32>
    %64 = arith.subf %60, %63 : vector<16x16xf32>
    %65 = math.exp %64 : vector<16x16xf32>
    %cst_24 = arith.constant dense<0.000000e+00> : vector<16xf32>
    %66 = vector.multi_reduction <add>, %65, %cst_24 [1] : vector<16x16xf32> to vector<16xf32>
    %67 = vector.shape_cast %66 : vector<16xf32> to vector<16x1xf32>
    %68 = tpu.reciprocal %67 {approx = true} : vector<16x1xf32> -> vector<16x1xf32>
    %69 = vector.broadcast %68 : vector<16x1xf32> to vector<16x16xf32>
    %70 = arith.mulf %65, %69 : vector<16x16xf32>
    %71 = arith.truncf %70 : vector<16x16xf32> to vector<16x16xbf16>
    %cst_25 = arith.constant dense<0.000000e+00> : vector<16x32xf32>
    %72 = tpu.matmul %71, %59, %cst_25 {dimension_numbers = #tpu.dot_dimension_numbers<[1], [0], [0], [1], [0, 0, 1, 1], [], []>} : vector<16x16xbf16>, vector<16x32xbf16>, vector<16x32xf32> -> vector<16x32xf32>
    %73 = arith.truncf %72 : vector<16x32xf32> to vector<16x32xbf16>
    %74 = vector.extract_strided_slice %8 {offsets = [0, 96], sizes = [16, 32], strides = [1, 1]} : vector<16x128xf32> to vector<16x32xf32>
    %75 = arith.truncf %74 : vector<16x32xf32> to vector<16x32xbf16>
    %76 = vector.extract_strided_slice %13 {offsets = [0, 96], sizes = [16, 32], strides = [1, 1]} : vector<16x256xf32> to vector<16x32xf32>
    %77 = arith.truncf %76 : vector<16x32xf32> to vector<16x32xbf16>
    %78 = vector.extract_strided_slice %13 {offsets = [0, 224], sizes = [16, 32], strides = [1, 1]} : vector<16x256xf32> to vector<16x32xf32>
    %79 = arith.truncf %78 : vector<16x32xf32> to vector<16x32xbf16>
    "tpu.trace_start"() <{level = 10 : i32, message = "qd,kd->qk"}> : () -> ()
    %cst_26 = arith.constant dense<0.000000e+00> : vector<16x16xf32>
    %80 = tpu.matmul %75, %77, %cst_26 {dimension_numbers = #tpu.dot_dimension_numbers<[1], [1], [0], [0], [0, 0, 1, 0], [], []>} : vector<16x32xbf16>, vector<16x32xbf16>, vector<16x16xf32> -> vector<16x16xf32>
    "tpu.trace_stop"() : () -> ()
    %cst_27 = arith.constant dense<0xFF800000> : vector<16xf32>
    %81 = vector.multi_reduction <maximumf>, %80, %cst_27 [1] : vector<16x16xf32> to vector<16xf32>
    %82 = vector.shape_cast %81 : vector<16xf32> to vector<16x1xf32>
    %83 = vector.broadcast %82 : vector<16x1xf32> to vector<16x16xf32>
    %84 = arith.subf %80, %83 : vector<16x16xf32>
    %85 = math.exp %84 : vector<16x16xf32>
    %cst_28 = arith.constant dense<0.000000e+00> : vector<16xf32>
    %86 = vector.multi_reduction <add>, %85, %cst_28 [1] : vector<16x16xf32> to vector<16xf32>
    %87 = vector.shape_cast %86 : vector<16xf32> to vector<16x1xf32>
    %88 = tpu.reciprocal %87 {approx = true} : vector<16x1xf32> -> vector<16x1xf32>
    %89 = vector.broadcast %88 : vector<16x1xf32> to vector<16x16xf32>
    %90 = arith.mulf %85, %89 : vector<16x16xf32>
    %91 = arith.truncf %90 : vector<16x16xf32> to vector<16x16xbf16>
    %cst_29 = arith.constant dense<0.000000e+00> : vector<16x32xf32>
    %92 = tpu.matmul %91, %79, %cst_29 {dimension_numbers = #tpu.dot_dimension_numbers<[1], [0], [0], [1], [0, 0, 1, 1], [], []>} : vector<16x16xbf16>, vector<16x32xbf16>, vector<16x32xf32> -> vector<16x32xf32>
    %93 = arith.truncf %92 : vector<16x32xf32> to vector<16x32xbf16>
    %94 = tpu.concatenate %33, %53, %73, %93 in 1 : vector<16x32xbf16>, vector<16x32xbf16>, vector<16x32xbf16>, vector<16x32xbf16> -> vector<16x128xbf16>
    %c0_30 = arith.constant 0 : index
    %c0_31 = arith.constant 0 : index
    %95 = vector.load %arg8[%c0_30, %c0_31] : memref<128x128xbf16, #tpu.memory_space<vmem>>, vector<128x128xbf16>
    %cst_32 = arith.constant dense<0.000000e+00> : vector<16x128xf32>
    %96 = tpu.matmul %94, %95, %cst_32 {dimension_numbers = #tpu.dot_dimension_numbers<[1], [0], [0], [1], [0, 0, 1, 1], [], []>} : vector<16x128xbf16>, vector<128x128xbf16>, vector<16x128xf32> -> vector<16x128xf32>
    %97 = arith.extf %3 : vector<16x128xbf16> to vector<16x128xf32>
    %98 = arith.addf %97, %96 : vector<16x128xf32>
    %c0_33 = arith.constant 0 : index
    %c0_34 = arith.constant 0 : index
    %99 = vector.load %arg9[%c0_33, %c0_34] : memref<1x128xf32, #tpu.memory_space<vmem>>, vector<1x128xf32>
    %100 = vector.broadcast %99 : vector<1x128xf32> to vector<16x128xf32>
    %101 = arith.addf %98, %100 : vector<16x128xf32>
    %c0_35 = arith.constant 0 : index
    %c0_36 = arith.constant 0 : index
    %102 = vector.load %arg10[%c0_35, %c0_36] : memref<1x128xf32, #tpu.memory_space<vmem>>, vector<1x128xf32>
    %c0_37 = arith.constant 0 : index
    %c0_38 = arith.constant 0 : index
    %103 = vector.load %arg11[%c0_37, %c0_38] : memref<1x128xf32, #tpu.memory_space<vmem>>, vector<1x128xf32>
    %cst_39 = arith.constant dense<0.000000e+00> : vector<16xf32>
    %104 = vector.multi_reduction <add>, %101, %cst_39 [1] : vector<16x128xf32> to vector<16xf32>
    %105 = vector.shape_cast %104 : vector<16xf32> to vector<16x1xf32>
    %cst_40 = arith.constant 1.280000e+02 : f32
    %106 = vector.broadcast %cst_40 : f32 to vector<16x1xf32>
    %107 = arith.divf %105, %106 : vector<16x1xf32>
    %108 = vector.broadcast %107 : vector<16x1xf32> to vector<16x128xf32>
    %109 = arith.subf %101, %108 : vector<16x128xf32>
    %110 = arith.mulf %109, %109 : vector<16x128xf32>
    %cst_41 = arith.constant dense<0.000000e+00> : vector<16xf32>
    %111 = vector.multi_reduction <add>, %110, %cst_41 [1] : vector<16x128xf32> to vector<16xf32>
    %112 = vector.shape_cast %111 : vector<16xf32> to vector<16x1xf32>
    %cst_42 = arith.constant 1.280000e+02 : f32
    %113 = vector.broadcast %cst_42 : f32 to vector<16x1xf32>
    %114 = arith.divf %112, %113 : vector<16x1xf32>
    %115 = vector.broadcast %107 : vector<16x1xf32> to vector<16x128xf32>
    %116 = arith.subf %101, %115 : vector<16x128xf32>
    %cst_43 = arith.constant 9.99999974E-6 : f32
    %117 = vector.broadcast %cst_43 : f32 to vector<16x1xf32>
    %118 = arith.addf %114, %117 : vector<16x1xf32>
    %119 = math.rsqrt %118 : vector<16x1xf32>
    %120 = vector.broadcast %119 : vector<16x1xf32> to vector<16x128xf32>
    %121 = arith.mulf %116, %120 : vector<16x128xf32>
    %122 = vector.broadcast %102 : vector<1x128xf32> to vector<16x128xf32>
    %123 = arith.mulf %121, %122 : vector<16x128xf32>
    %124 = vector.broadcast %103 : vector<1x128xf32> to vector<16x128xf32>
    %125 = arith.addf %123, %124 : vector<16x128xf32>
    %c0_44 = arith.constant 0 : index
    %c0_45 = arith.constant 0 : index
    %c0_46 = arith.constant 0 : index
    %126 = vector.load %arg12[%c0_44, %c0_45, %c0_46] : memref<1x16x1xf32, #tpu.memory_space<vmem>>, vector<1x16x1xf32>
    %127 = vector.shape_cast %126 : vector<1x16x1xf32> to vector<16x1xf32>
    %128 = vector.broadcast %127 : vector<16x1xf32> to vector<16x128xf32>
    %129 = arith.mulf %125, %128 : vector<16x128xf32>
    %130 = arith.truncf %129 : vector<16x128xf32> to vector<16x128xbf16>
    %c0_47 = arith.constant 0 : index
    %c0_48 = arith.constant 0 : index
    %c0_49 = arith.constant 0 : index
    %131 = vector.load %arg13[%c0_47, %c0_48, %c0_49] : memref<1x16x128xbf16, #tpu.memory_space<vmem>>, vector<1x16x128xbf16>
    %132 = vector.shape_cast %131 : vector<1x16x128xbf16> to vector<16x128xbf16>
    %133 = vector.shape_cast %130 : vector<16x128xbf16> to vector<1x16x128xbf16>
    tpu.vector_store %arg13[%c0_47, %c0_48, %c0_49], %133 {strides = array<i32>} : memref<1x16x128xbf16, #tpu.memory_space<vmem>>, vector<1x16x128xbf16>,
    return
  }
  func.func @transform_0(%arg0: i32, %arg1: i32) -> (i32, i32, i32) {
    %c0_i32 = arith.constant 0 : i32
    %c0_i32_0 = arith.constant 0 : i32
    return %arg0, %arg1, %c0_i32 : i32, i32, i32
  }
  func.func @transform_1(%arg0: i32, %arg1: i32) -> (i32, i32, i32) {
    %c0_i32 = arith.constant 0 : i32
    %c0_i32_0 = arith.constant 0 : i32
    %c0_i32_1 = arith.constant 0 : i32
    return %arg0, %c0_i32, %c0_i32_0 : i32, i32, i32
  }
  func.func @transform_2(%arg0: i32, %arg1: i32) -> (i32, i32) {
    %c0_i32 = arith.constant 0 : i32
    %c0_i32_0 = arith.constant 0 : i32
    %c0_i32_1 = arith.constant 0 : i32
    return %c0_i32, %c0_i32_0 : i32, i32
  }
  func.func @transform_3(%arg0: i32, %arg1: i32) -> (i32, i32) {
    %c0_i32 = arith.constant 0 : i32
    %c0_i32_0 = arith.constant 0 : i32
    %c0_i32_1 = arith.constant 0 : i32
    return %c0_i32, %c0_i32_0 : i32, i32
  }
  func.func @transform_4(%arg0: i32, %arg1: i32) -> (i32, i32) {
    %c0_i32 = arith.constant 0 : i32
    %c0_i32_0 = arith.constant 0 : i32
    %c0_i32_1 = arith.constant 0 : i32
    return %c0_i32, %c0_i32_0 : i32, i32
  }
  func.func @transform_5(%arg0: i32, %arg1: i32) -> (i32, i32) {
    %c0_i32 = arith.constant 0 : i32
    %c0_i32_0 = arith.constant 0 : i32
    %c0_i32_1 = arith.constant 0 : i32
    return %c0_i32, %c0_i32_0 : i32, i32
  }
  func.func @transform_6(%arg0: i32, %arg1: i32) -> (i32, i32) {
    %c0_i32 = arith.constant 0 : i32
    %c0_i32_0 = arith.constant 0 : i32
    %c0_i32_1 = arith.constant 0 : i32
    return %c0_i32, %c0_i32_0 : i32, i32
  }
  func.func @transform_7(%arg0: i32, %arg1: i32) -> (i32, i32) {
    %c0_i32 = arith.constant 0 : i32
    %c0_i32_0 = arith.constant 0 : i32
    %c0_i32_1 = arith.constant 0 : i32
    return %c0_i32, %c0_i32_0 : i32, i32
  }
  func.func @transform_8(%arg0: i32, %arg1: i32) -> (i32, i32) {
    %c0_i32 = arith.constant 0 : i32
    %c0_i32_0 = arith.constant 0 : i32
    %c0_i32_1 = arith.constant 0 : i32
    return %c0_i32, %c0_i32_0 : i32, i32
  }
  func.func @transform_9(%arg0: i32, %arg1: i32) -> (i32, i32) {
    %c0_i32 = arith.constant 0 : i32
    %c0_i32_0 = arith.constant 0 : i32
    %c0_i32_1 = arith.constant 0 : i32
    return %c0_i32, %c0_i32_0 : i32, i32
  }
  func.func @transform_10(%arg0: i32, %arg1: i32) -> (i32, i32, i32) {
    %c0_i32 = arith.constant 0 : i32
    %c0_i32_0 = arith.constant 0 : i32
    return %arg0, %arg1, %c0_i32 : i32, i32, i32
  }
  func.func @transform_11(%arg0: i32, %arg1: i32) -> (i32, i32, i32) {
    %c0_i32 = arith.constant 0 : i32
    %c0_i32_0 = arith.constant 0 : i32
    return %arg0, %arg1, %c0_i32 : i32, i32, i32
  }
}

module attributes {stable_mosaic.version = 11 : i64} {
  func.func @_ffn_kernel(%arg0: i32, %arg1: i32, %arg2: memref<1x16x128xbf16, #tpu.memory_space<vmem>>, %arg3: memref<128x256xbf16, #tpu.memory_space<vmem>>, %arg4: memref<1x256xf32, #tpu.memory_space<vmem>>, %arg5: memref<256x128xbf16, #tpu.memory_space<vmem>>, %arg6: memref<1x128xf32, #tpu.memory_space<vmem>>, %arg7: memref<1x128xf32, #tpu.memory_space<vmem>>, %arg8: memref<1x128xf32, #tpu.memory_space<vmem>>, %arg9: memref<1x16x1xf32, #tpu.memory_space<vmem>>, %arg10: memref<1x16x128xbf16, #tpu.memory_space<vmem>>) attributes {dimension_semantics = [#tpu.dimension_semantics<parallel>, #tpu.dimension_semantics<parallel>], iteration_bounds = array<i64: 2, 2>, scalar_prefetch = 0 : i64, scratch_operands = 0 : i64, tpu.core_type = #tpu.core_type<tc>, window_params = [{transform_indices = @transform_0, window_bounds = array<i64: 1, 16, 128>}, {pipeline_mode = #tpu.pipeline_mode<synchronous>, transform_indices = @transform_1, window_bounds = array<i64: 128, 256>}, {pipeline_mode = #tpu.pipeline_mode<synchronous>, transform_indices = @transform_2, window_bounds = array<i64: 1, 256>}, {pipeline_mode = #tpu.pipeline_mode<synchronous>, transform_indices = @transform_3, window_bounds = array<i64: 256, 128>}, {pipeline_mode = #tpu.pipeline_mode<synchronous>, transform_indices = @transform_4, window_bounds = array<i64: 1, 128>}, {pipeline_mode = #tpu.pipeline_mode<synchronous>, transform_indices = @transform_5, window_bounds = array<i64: 1, 128>}, {pipeline_mode = #tpu.pipeline_mode<synchronous>, transform_indices = @transform_6, window_bounds = array<i64: 1, 128>}, {transform_indices = @transform_7, window_bounds = array<i64: 1, 16, 1>}, {transform_indices = @transform_8, window_bounds = array<i64: 1, 16, 128>}]} {
    %c0 = arith.constant 0 : index
    %c0_0 = arith.constant 0 : index
    %c0_1 = arith.constant 0 : index
    %0 = vector.load %arg2[%c0, %c0_0, %c0_1] : memref<1x16x128xbf16, #tpu.memory_space<vmem>>, vector<1x16x128xbf16>
    %1 = vector.shape_cast %0 : vector<1x16x128xbf16> to vector<16x128xbf16>
    %c0_2 = arith.constant 0 : index
    %c0_3 = arith.constant 0 : index
    %2 = vector.load %arg3[%c0_2, %c0_3] : memref<128x256xbf16, #tpu.memory_space<vmem>>, vector<128x256xbf16>
    %cst = arith.constant dense<0.000000e+00> : vector<16x256xf32>
    %3 = tpu.matmul %1, %2, %cst {dimension_numbers = #tpu.dot_dimension_numbers<[1], [0], [0], [1], [0, 0, 1, 1], [], []>} : vector<16x128xbf16>, vector<128x256xbf16>, vector<16x256xf32> -> vector<16x256xf32>
    %c0_4 = arith.constant 0 : index
    %c0_5 = arith.constant 0 : index
    %4 = vector.load %arg4[%c0_4, %c0_5] : memref<1x256xf32, #tpu.memory_space<vmem>>, vector<1x256xf32>
    %5 = vector.broadcast %4 : vector<1x256xf32> to vector<16x256xf32>
    %6 = arith.addf %3, %5 : vector<16x256xf32>
    %cst_6 = arith.constant 0.000000e+00 : f32
    %7 = vector.broadcast %cst_6 : f32 to vector<16x256xf32>
    %8 = arith.maximumf %6, %7 : vector<16x256xf32>
    %9 = arith.truncf %8 : vector<16x256xf32> to vector<16x256xbf16>
    %c0_7 = arith.constant 0 : index
    %c0_8 = arith.constant 0 : index
    %10 = vector.load %arg5[%c0_7, %c0_8] : memref<256x128xbf16, #tpu.memory_space<vmem>>, vector<256x128xbf16>
    %cst_9 = arith.constant dense<0.000000e+00> : vector<16x128xf32>
    %11 = tpu.matmul %9, %10, %cst_9 {dimension_numbers = #tpu.dot_dimension_numbers<[1], [0], [0], [1], [0, 0, 1, 1], [], []>} : vector<16x256xbf16>, vector<256x128xbf16>, vector<16x128xf32> -> vector<16x128xf32>
    %c0_10 = arith.constant 0 : index
    %c0_11 = arith.constant 0 : index
    %12 = vector.load %arg6[%c0_10, %c0_11] : memref<1x128xf32, #tpu.memory_space<vmem>>, vector<1x128xf32>
    %13 = vector.broadcast %12 : vector<1x128xf32> to vector<16x128xf32>
    %14 = arith.addf %11, %13 : vector<16x128xf32>
    %15 = arith.extf %1 : vector<16x128xbf16> to vector<16x128xf32>
    %16 = arith.addf %15, %14 : vector<16x128xf32>
    %c0_12 = arith.constant 0 : index
    %c0_13 = arith.constant 0 : index
    %17 = vector.load %arg7[%c0_12, %c0_13] : memref<1x128xf32, #tpu.memory_space<vmem>>, vector<1x128xf32>
    %c0_14 = arith.constant 0 : index
    %c0_15 = arith.constant 0 : index
    %18 = vector.load %arg8[%c0_14, %c0_15] : memref<1x128xf32, #tpu.memory_space<vmem>>, vector<1x128xf32>
    %cst_16 = arith.constant dense<0.000000e+00> : vector<16xf32>
    %19 = vector.multi_reduction <add>, %16, %cst_16 [1] : vector<16x128xf32> to vector<16xf32>
    %20 = vector.shape_cast %19 : vector<16xf32> to vector<16x1xf32>
    %cst_17 = arith.constant 1.280000e+02 : f32
    %21 = vector.broadcast %cst_17 : f32 to vector<16x1xf32>
    %22 = arith.divf %20, %21 : vector<16x1xf32>
    %23 = vector.broadcast %22 : vector<16x1xf32> to vector<16x128xf32>
    %24 = arith.subf %16, %23 : vector<16x128xf32>
    %25 = arith.mulf %24, %24 : vector<16x128xf32>
    %cst_18 = arith.constant dense<0.000000e+00> : vector<16xf32>
    %26 = vector.multi_reduction <add>, %25, %cst_18 [1] : vector<16x128xf32> to vector<16xf32>
    %27 = vector.shape_cast %26 : vector<16xf32> to vector<16x1xf32>
    %cst_19 = arith.constant 1.280000e+02 : f32
    %28 = vector.broadcast %cst_19 : f32 to vector<16x1xf32>
    %29 = arith.divf %27, %28 : vector<16x1xf32>
    %30 = vector.broadcast %22 : vector<16x1xf32> to vector<16x128xf32>
    %31 = arith.subf %16, %30 : vector<16x128xf32>
    %cst_20 = arith.constant 9.99999974E-6 : f32
    %32 = vector.broadcast %cst_20 : f32 to vector<16x1xf32>
    %33 = arith.addf %29, %32 : vector<16x1xf32>
    %34 = math.rsqrt %33 : vector<16x1xf32>
    %35 = vector.broadcast %34 : vector<16x1xf32> to vector<16x128xf32>
    %36 = arith.mulf %31, %35 : vector<16x128xf32>
    %37 = vector.broadcast %17 : vector<1x128xf32> to vector<16x128xf32>
    %38 = arith.mulf %36, %37 : vector<16x128xf32>
    %39 = vector.broadcast %18 : vector<1x128xf32> to vector<16x128xf32>
    %40 = arith.addf %38, %39 : vector<16x128xf32>
    %c0_21 = arith.constant 0 : index
    %c0_22 = arith.constant 0 : index
    %c0_23 = arith.constant 0 : index
    %41 = vector.load %arg9[%c0_21, %c0_22, %c0_23] : memref<1x16x1xf32, #tpu.memory_space<vmem>>, vector<1x16x1xf32>
    %42 = vector.shape_cast %41 : vector<1x16x1xf32> to vector<16x1xf32>
    %43 = vector.broadcast %42 : vector<16x1xf32> to vector<16x128xf32>
    %44 = arith.mulf %40, %43 : vector<16x128xf32>
    %45 = arith.truncf %44 : vector<16x128xf32> to vector<16x128xbf16>
    %c0_24 = arith.constant 0 : index
    %c0_25 = arith.constant 0 : index
    %c0_26 = arith.constant 0 : index
    %46 = vector.load %arg10[%c0_24, %c0_25, %c0_26] : memref<1x16x128xbf16, #tpu.memory_space<vmem>>, vector<1x16x128xbf16>
    %47 = vector.shape_cast %46 : vector<1x16x128xbf16> to vector<16x128xbf16>
    %48 = vector.shape_cast %45 : vector<16x128xbf16> to vector<1x16x128xbf16>
    tpu.vector_store %arg10[%c0_24, %c0_25, %c0_26], %48 {strides = array<i32>} : memref<1x16x128xbf16, #tpu.memory_space<vmem>>, vector<1x16x128xbf16>,
    return
  }
  func.func @transform_0(%arg0: i32, %arg1: i32) -> (i32, i32, i32) {
    %c0_i32 = arith.constant 0 : i32
    %c0_i32_0 = arith.constant 0 : i32
    return %arg0, %arg1, %c0_i32 : i32, i32, i32
  }
  func.func @transform_1(%arg0: i32, %arg1: i32) -> (i32, i32) {
    %c0_i32 = arith.constant 0 : i32
    %c0_i32_0 = arith.constant 0 : i32
    %c0_i32_1 = arith.constant 0 : i32
    return %c0_i32, %c0_i32_0 : i32, i32
  }
  func.func @transform_2(%arg0: i32, %arg1: i32) -> (i32, i32) {
    %c0_i32 = arith.constant 0 : i32
    %c0_i32_0 = arith.constant 0 : i32
    %c0_i32_1 = arith.constant 0 : i32
    return %c0_i32, %c0_i32_0 : i32, i32
  }
  func.func @transform_3(%arg0: i32, %arg1: i32) -> (i32, i32) {
    %c0_i32 = arith.constant 0 : i32
    %c0_i32_0 = arith.constant 0 : i32
    %c0_i32_1 = arith.constant 0 : i32
    return %c0_i32, %c0_i32_0 : i32, i32
  }
  func.func @transform_4(%arg0: i32, %arg1: i32) -> (i32, i32) {
    %c0_i32 = arith.constant 0 : i32
    %c0_i32_0 = arith.constant 0 : i32
    %c0_i32_1 = arith.constant 0 : i32
    return %c0_i32, %c0_i32_0 : i32, i32
  }
  func.func @transform_5(%arg0: i32, %arg1: i32) -> (i32, i32) {
    %c0_i32 = arith.constant 0 : i32
    %c0_i32_0 = arith.constant 0 : i32
    %c0_i32_1 = arith.constant 0 : i32
    return %c0_i32, %c0_i32_0 : i32, i32
  }
  func.func @transform_6(%arg0: i32, %arg1: i32) -> (i32, i32) {
    %c0_i32 = arith.constant 0 : i32
    %c0_i32_0 = arith.constant 0 : i32
    %c0_i32_1 = arith.constant 0 : i32
    return %c0_i32, %c0_i32_0 : i32, i32
  }
  func.func @transform_7(%arg0: i32, %arg1: i32) -> (i32, i32, i32) {
    %c0_i32 = arith.constant 0 : i32
    %c0_i32_0 = arith.constant 0 : i32
    return %arg0, %arg1, %c0_i32 : i32, i32, i32
  }
  func.func @transform_8(%arg0: i32, %arg1: i32) -> (i32, i32, i32) {
    %c0_i32 = arith.constant 0 : i32
    %c0_i32_0 = arith.constant 0 : i32
    return %arg0, %arg1, %c0_i32 : i32, i32, i32
  }
}

module attributes {stable_mosaic.version = 11 : i64} {
  func.func @_mha_kernel(%arg0: i32, %arg1: i32, %arg2: memref<1x32x128xbf16, #tpu.memory_space<vmem>>, %arg3: memref<1x1x32xf32, #tpu.memory_space<vmem>>, %arg4: memref<128x128xbf16, #tpu.memory_space<vmem>>, %arg5: memref<1x128xf32, #tpu.memory_space<vmem>>, %arg6: memref<128x256xbf16, #tpu.memory_space<vmem>>, %arg7: memref<1x256xf32, #tpu.memory_space<vmem>>, %arg8: memref<128x128xbf16, #tpu.memory_space<vmem>>, %arg9: memref<1x128xf32, #tpu.memory_space<vmem>>, %arg10: memref<1x128xf32, #tpu.memory_space<vmem>>, %arg11: memref<1x128xf32, #tpu.memory_space<vmem>>, %arg12: memref<1x16x1xf32, #tpu.memory_space<vmem>>, %arg13: memref<1x16x128xbf16, #tpu.memory_space<vmem>>) attributes {dimension_semantics = [#tpu.dimension_semantics<parallel>, #tpu.dimension_semantics<parallel>], iteration_bounds = array<i64: 2, 2>, scalar_prefetch = 0 : i64, scratch_operands = 0 : i64, tpu.core_type = #tpu.core_type<tc>, window_params = [{transform_indices = @transform_0, window_bounds = array<i64: 1, 32, 128>}, {transform_indices = @transform_1, window_bounds = array<i64: 1, 1, 32>}, {pipeline_mode = #tpu.pipeline_mode<synchronous>, transform_indices = @transform_2, window_bounds = array<i64: 128, 128>}, {pipeline_mode = #tpu.pipeline_mode<synchronous>, transform_indices = @transform_3, window_bounds = array<i64: 1, 128>}, {pipeline_mode = #tpu.pipeline_mode<synchronous>, transform_indices = @transform_4, window_bounds = array<i64: 128, 256>}, {pipeline_mode = #tpu.pipeline_mode<synchronous>, transform_indices = @transform_5, window_bounds = array<i64: 1, 256>}, {pipeline_mode = #tpu.pipeline_mode<synchronous>, transform_indices = @transform_6, window_bounds = array<i64: 128, 128>}, {pipeline_mode = #tpu.pipeline_mode<synchronous>, transform_indices = @transform_7, window_bounds = array<i64: 1, 128>}, {pipeline_mode = #tpu.pipeline_mode<synchronous>, transform_indices = @transform_8, window_bounds = array<i64: 1, 128>}, {pipeline_mode = #tpu.pipeline_mode<synchronous>, transform_indices = @transform_9, window_bounds = array<i64: 1, 128>}, {transform_indices = @transform_10, window_bounds = array<i64: 1, 16, 1>}, {transform_indices = @transform_11, window_bounds = array<i64: 1, 16, 128>}]} {
    %c0 = arith.constant 0 : index
    %c0_0 = arith.constant 0 : index
    %c0_1 = arith.constant 0 : index
    %0 = vector.load %arg2[%c0, %c0_0, %c0_1] : memref<1x32x128xbf16, #tpu.memory_space<vmem>>, vector<1x32x128xbf16>
    %1 = vector.shape_cast %0 : vector<1x32x128xbf16> to vector<32x128xbf16>
    %c16_i32 = arith.constant 16 : i32
    %2 = arith.muli %arg1, %c16_i32 : i32
    %3 = tpu.assume_multiple %2, 16 : i32
    %c0_2 = arith.constant 0 : index
    %4 = arith.index_cast %3 : i32 to index
    %c0_3 = arith.constant 0 : index
    %5 = vector.load %arg2[%c0_2, %4, %c0_3] : memref<1x32x128xbf16, #tpu.memory_space<vmem>>, vector<1x16x128xbf16>
    %6 = vector.shape_cast %5 : vector<1x16x128xbf16> to vector<16x128xbf16>
    %c0_4 = arith.constant 0 : index
    %c0_5 = arith.constant 0 : index
    %7 = vector.load %arg4[%c0_4, %c0_5] : memref<128x128xbf16, #tpu.memory_space<vmem>>, vector<128x128xbf16>
    %cst = arith.constant dense<0.000000e+00> : vector<16x128xf32>
    %8 = tpu.matmul %6, %7, %cst {dimension_numbers = #tpu.dot_dimension_numbers<[1], [0], [0], [1], [0, 0, 1, 1], [], []>} : vector<16x128xbf16>, vector<128x128xbf16>, vector<16x128xf32> -> vector<16x128xf32>
    %c0_6 = arith.constant 0 : index
    %c0_7 = arith.constant 0 : index
    %9 = vector.load %arg5[%c0_6, %c0_7] : memref<1x128xf32, #tpu.memory_space<vmem>>, vector<1x128xf32>
    %10 = vector.broadcast %9 : vector<1x128xf32> to vector<16x128xf32>
    %11 = arith.addf %8, %10 : vector<16x128xf32>
    %c0_8 = arith.constant 0 : index
    %c0_9 = arith.constant 0 : index
    %12 = vector.load %arg6[%c0_8, %c0_9] : memref<128x256xbf16, #tpu.memory_space<vmem>>, vector<128x256xbf16>
    %cst_10 = arith.constant dense<0.000000e+00> : vector<32x256xf32>
    %13 = tpu.matmul %1, %12, %cst_10 {dimension_numbers = #tpu.dot_dimension_numbers<[1], [0], [0], [1], [0, 0, 1, 1], [], []>} : vector<32x128xbf16>, vector<128x256xbf16>, vector<32x256xf32> -> vector<32x256xf32>
    %c0_11 = arith.constant 0 : index
    %c0_12 = arith.constant 0 : index
    %14 = vector.load %arg7[%c0_11, %c0_12] : memref<1x256xf32, #tpu.memory_space<vmem>>, vector<1x256xf32>
    %15 = vector.broadcast %14 : vector<1x256xf32> to vector<32x256xf32>
    %16 = arith.addf %13, %15 : vector<32x256xf32>
    %17 = tpu.iota {dimensions = array<i32: 0>} : vector<16x32xi32>
    %18 = vector.broadcast %3 : i32 to vector<16x32xi32>
    %19 = arith.addi %18, %17 : vector<16x32xi32>
    %20 = tpu.iota {dimensions = array<i32: 1>} : vector<16x32xi32>
    %21 = arith.cmpi sgt, %20, %19 : vector<16x32xi32>
    %cst_13 = arith.constant -1.000000e+09 : f32
    %cst_14 = arith.constant 0.000000e+00 : f32
    %22 = vector.broadcast %cst_13 : f32 to vector<16x32xf32>
    %23 = vector.broadcast %cst_14 : f32 to vector<16x32xf32>
    %24 = arith.select %21, %22, %23 : vector<16x32xi1>, vector<16x32xf32>
    %c0_15 = arith.constant 0 : index
    %c0_16 = arith.constant 0 : index
    %c0_17 = arith.constant 0 : index
    %25 = vector.load %arg3[%c0_15, %c0_16, %c0_17] : memref<1x1x32xf32, #tpu.memory_space<vmem>>, vector<1x1x32xf32>
    %26 = vector.shape_cast %25 : vector<1x1x32xf32> to vector<1x32xf32>
    %cst_18 = arith.constant 5.000000e-01 : f32
    %27 = vector.broadcast %cst_18 : f32 to vector<1x32xf32>
    %28 = arith.cmpf ogt, %26, %27 : vector<1x32xf32>
    %cst_19 = arith.constant 0.000000e+00 : f32
    %cst_20 = arith.constant -1.000000e+09 : f32
    %29 = vector.broadcast %cst_19 : f32 to vector<1x32xf32>
    %30 = vector.broadcast %cst_20 : f32 to vector<1x32xf32>
    %31 = arith.select %28, %29, %30 : vector<1x32xi1>, vector<1x32xf32>
    %32 = vector.broadcast %31 : vector<1x32xf32> to vector<16x32xf32>
    %33 = arith.addf %24, %32 : vector<16x32xf32>
    %34 = vector.extract_strided_slice %11 {offsets = [0, 0], sizes = [16, 32], strides = [1, 1]} : vector<16x128xf32> to vector<16x32xf32>
    %35 = arith.truncf %34 : vector<16x32xf32> to vector<16x32xbf16>
    %36 = vector.extract_strided_slice %16 {offsets = [0, 0], sizes = [32, 32], strides = [1, 1]} : vector<32x256xf32> to vector<32x32xf32>
    %37 = arith.truncf %36 : vector<32x32xf32> to vector<32x32xbf16>
    %38 = vector.extract_strided_slice %16 {offsets = [0, 128], sizes = [32, 32], strides = [1, 1]} : vector<32x256xf32> to vector<32x32xf32>
    %39 = arith.truncf %38 : vector<32x32xf32> to vector<32x32xbf16>
    "tpu.trace_start"() <{level = 10 : i32, message = "qd,kd->qk"}> : () -> ()
    %cst_21 = arith.constant dense<0.000000e+00> : vector<16x32xf32>
    %40 = tpu.matmul %35, %37, %cst_21 {dimension_numbers = #tpu.dot_dimension_numbers<[1], [1], [0], [0], [0, 0, 1, 0], [], []>} : vector<16x32xbf16>, vector<32x32xbf16>, vector<16x32xf32> -> vector<16x32xf32>
    "tpu.trace_stop"() : () -> ()
    %41 = arith.addf %40, %33 : vector<16x32xf32>
    %cst_22 = arith.constant dense<0xFF800000> : vector<16xf32>
    %42 = vector.multi_reduction <maximumf>, %41, %cst_22 [1] : vector<16x32xf32> to vector<16xf32>
    %43 = vector.shape_cast %42 : vector<16xf32> to vector<16x1xf32>
    %44 = vector.broadcast %43 : vector<16x1xf32> to vector<16x32xf32>
    %45 = arith.subf %41, %44 : vector<16x32xf32>
    %46 = math.exp %45 : vector<16x32xf32>
    %cst_23 = arith.constant dense<0.000000e+00> : vector<16xf32>
    %47 = vector.multi_reduction <add>, %46, %cst_23 [1] : vector<16x32xf32> to vector<16xf32>
    %48 = vector.shape_cast %47 : vector<16xf32> to vector<16x1xf32>
    %49 = tpu.reciprocal %48 {approx = true} : vector<16x1xf32> -> vector<16x1xf32>
    %50 = vector.broadcast %49 : vector<16x1xf32> to vector<16x32xf32>
    %51 = arith.mulf %46, %50 : vector<16x32xf32>
    %52 = arith.truncf %51 : vector<16x32xf32> to vector<16x32xbf16>
    %cst_24 = arith.constant dense<0.000000e+00> : vector<16x32xf32>
    %53 = tpu.matmul %52, %39, %cst_24 {dimension_numbers = #tpu.dot_dimension_numbers<[1], [0], [0], [1], [0, 0, 1, 1], [], []>} : vector<16x32xbf16>, vector<32x32xbf16>, vector<16x32xf32> -> vector<16x32xf32>
    %54 = arith.truncf %53 : vector<16x32xf32> to vector<16x32xbf16>
    %55 = vector.extract_strided_slice %11 {offsets = [0, 32], sizes = [16, 32], strides = [1, 1]} : vector<16x128xf32> to vector<16x32xf32>
    %56 = arith.truncf %55 : vector<16x32xf32> to vector<16x32xbf16>
    %57 = vector.extract_strided_slice %16 {offsets = [0, 32], sizes = [32, 32], strides = [1, 1]} : vector<32x256xf32> to vector<32x32xf32>
    %58 = arith.truncf %57 : vector<32x32xf32> to vector<32x32xbf16>
    %59 = vector.extract_strided_slice %16 {offsets = [0, 160], sizes = [32, 32], strides = [1, 1]} : vector<32x256xf32> to vector<32x32xf32>
    %60 = arith.truncf %59 : vector<32x32xf32> to vector<32x32xbf16>
    "tpu.trace_start"() <{level = 10 : i32, message = "qd,kd->qk"}> : () -> ()
    %cst_25 = arith.constant dense<0.000000e+00> : vector<16x32xf32>
    %61 = tpu.matmul %56, %58, %cst_25 {dimension_numbers = #tpu.dot_dimension_numbers<[1], [1], [0], [0], [0, 0, 1, 0], [], []>} : vector<16x32xbf16>, vector<32x32xbf16>, vector<16x32xf32> -> vector<16x32xf32>
    "tpu.trace_stop"() : () -> ()
    %62 = arith.addf %61, %33 : vector<16x32xf32>
    %cst_26 = arith.constant dense<0xFF800000> : vector<16xf32>
    %63 = vector.multi_reduction <maximumf>, %62, %cst_26 [1] : vector<16x32xf32> to vector<16xf32>
    %64 = vector.shape_cast %63 : vector<16xf32> to vector<16x1xf32>
    %65 = vector.broadcast %64 : vector<16x1xf32> to vector<16x32xf32>
    %66 = arith.subf %62, %65 : vector<16x32xf32>
    %67 = math.exp %66 : vector<16x32xf32>
    %cst_27 = arith.constant dense<0.000000e+00> : vector<16xf32>
    %68 = vector.multi_reduction <add>, %67, %cst_27 [1] : vector<16x32xf32> to vector<16xf32>
    %69 = vector.shape_cast %68 : vector<16xf32> to vector<16x1xf32>
    %70 = tpu.reciprocal %69 {approx = true} : vector<16x1xf32> -> vector<16x1xf32>
    %71 = vector.broadcast %70 : vector<16x1xf32> to vector<16x32xf32>
    %72 = arith.mulf %67, %71 : vector<16x32xf32>
    %73 = arith.truncf %72 : vector<16x32xf32> to vector<16x32xbf16>
    %cst_28 = arith.constant dense<0.000000e+00> : vector<16x32xf32>
    %74 = tpu.matmul %73, %60, %cst_28 {dimension_numbers = #tpu.dot_dimension_numbers<[1], [0], [0], [1], [0, 0, 1, 1], [], []>} : vector<16x32xbf16>, vector<32x32xbf16>, vector<16x32xf32> -> vector<16x32xf32>
    %75 = arith.truncf %74 : vector<16x32xf32> to vector<16x32xbf16>
    %76 = vector.extract_strided_slice %11 {offsets = [0, 64], sizes = [16, 32], strides = [1, 1]} : vector<16x128xf32> to vector<16x32xf32>
    %77 = arith.truncf %76 : vector<16x32xf32> to vector<16x32xbf16>
    %78 = vector.extract_strided_slice %16 {offsets = [0, 64], sizes = [32, 32], strides = [1, 1]} : vector<32x256xf32> to vector<32x32xf32>
    %79 = arith.truncf %78 : vector<32x32xf32> to vector<32x32xbf16>
    %80 = vector.extract_strided_slice %16 {offsets = [0, 192], sizes = [32, 32], strides = [1, 1]} : vector<32x256xf32> to vector<32x32xf32>
    %81 = arith.truncf %80 : vector<32x32xf32> to vector<32x32xbf16>
    "tpu.trace_start"() <{level = 10 : i32, message = "qd,kd->qk"}> : () -> ()
    %cst_29 = arith.constant dense<0.000000e+00> : vector<16x32xf32>
    %82 = tpu.matmul %77, %79, %cst_29 {dimension_numbers = #tpu.dot_dimension_numbers<[1], [1], [0], [0], [0, 0, 1, 0], [], []>} : vector<16x32xbf16>, vector<32x32xbf16>, vector<16x32xf32> -> vector<16x32xf32>
    "tpu.trace_stop"() : () -> ()
    %83 = arith.addf %82, %33 : vector<16x32xf32>
    %cst_30 = arith.constant dense<0xFF800000> : vector<16xf32>
    %84 = vector.multi_reduction <maximumf>, %83, %cst_30 [1] : vector<16x32xf32> to vector<16xf32>
    %85 = vector.shape_cast %84 : vector<16xf32> to vector<16x1xf32>
    %86 = vector.broadcast %85 : vector<16x1xf32> to vector<16x32xf32>
    %87 = arith.subf %83, %86 : vector<16x32xf32>
    %88 = math.exp %87 : vector<16x32xf32>
    %cst_31 = arith.constant dense<0.000000e+00> : vector<16xf32>
    %89 = vector.multi_reduction <add>, %88, %cst_31 [1] : vector<16x32xf32> to vector<16xf32>
    %90 = vector.shape_cast %89 : vector<16xf32> to vector<16x1xf32>
    %91 = tpu.reciprocal %90 {approx = true} : vector<16x1xf32> -> vector<16x1xf32>
    %92 = vector.broadcast %91 : vector<16x1xf32> to vector<16x32xf32>
    %93 = arith.mulf %88, %92 : vector<16x32xf32>
    %94 = arith.truncf %93 : vector<16x32xf32> to vector<16x32xbf16>
    %cst_32 = arith.constant dense<0.000000e+00> : vector<16x32xf32>
    %95 = tpu.matmul %94, %81, %cst_32 {dimension_numbers = #tpu.dot_dimension_numbers<[1], [0], [0], [1], [0, 0, 1, 1], [], []>} : vector<16x32xbf16>, vector<32x32xbf16>, vector<16x32xf32> -> vector<16x32xf32>
    %96 = arith.truncf %95 : vector<16x32xf32> to vector<16x32xbf16>
    %97 = vector.extract_strided_slice %11 {offsets = [0, 96], sizes = [16, 32], strides = [1, 1]} : vector<16x128xf32> to vector<16x32xf32>
    %98 = arith.truncf %97 : vector<16x32xf32> to vector<16x32xbf16>
    %99 = vector.extract_strided_slice %16 {offsets = [0, 96], sizes = [32, 32], strides = [1, 1]} : vector<32x256xf32> to vector<32x32xf32>
    %100 = arith.truncf %99 : vector<32x32xf32> to vector<32x32xbf16>
    %101 = vector.extract_strided_slice %16 {offsets = [0, 224], sizes = [32, 32], strides = [1, 1]} : vector<32x256xf32> to vector<32x32xf32>
    %102 = arith.truncf %101 : vector<32x32xf32> to vector<32x32xbf16>
    "tpu.trace_start"() <{level = 10 : i32, message = "qd,kd->qk"}> : () -> ()
    %cst_33 = arith.constant dense<0.000000e+00> : vector<16x32xf32>
    %103 = tpu.matmul %98, %100, %cst_33 {dimension_numbers = #tpu.dot_dimension_numbers<[1], [1], [0], [0], [0, 0, 1, 0], [], []>} : vector<16x32xbf16>, vector<32x32xbf16>, vector<16x32xf32> -> vector<16x32xf32>
    "tpu.trace_stop"() : () -> ()
    %104 = arith.addf %103, %33 : vector<16x32xf32>
    %cst_34 = arith.constant dense<0xFF800000> : vector<16xf32>
    %105 = vector.multi_reduction <maximumf>, %104, %cst_34 [1] : vector<16x32xf32> to vector<16xf32>
    %106 = vector.shape_cast %105 : vector<16xf32> to vector<16x1xf32>
    %107 = vector.broadcast %106 : vector<16x1xf32> to vector<16x32xf32>
    %108 = arith.subf %104, %107 : vector<16x32xf32>
    %109 = math.exp %108 : vector<16x32xf32>
    %cst_35 = arith.constant dense<0.000000e+00> : vector<16xf32>
    %110 = vector.multi_reduction <add>, %109, %cst_35 [1] : vector<16x32xf32> to vector<16xf32>
    %111 = vector.shape_cast %110 : vector<16xf32> to vector<16x1xf32>
    %112 = tpu.reciprocal %111 {approx = true} : vector<16x1xf32> -> vector<16x1xf32>
    %113 = vector.broadcast %112 : vector<16x1xf32> to vector<16x32xf32>
    %114 = arith.mulf %109, %113 : vector<16x32xf32>
    %115 = arith.truncf %114 : vector<16x32xf32> to vector<16x32xbf16>
    %cst_36 = arith.constant dense<0.000000e+00> : vector<16x32xf32>
    %116 = tpu.matmul %115, %102, %cst_36 {dimension_numbers = #tpu.dot_dimension_numbers<[1], [0], [0], [1], [0, 0, 1, 1], [], []>} : vector<16x32xbf16>, vector<32x32xbf16>, vector<16x32xf32> -> vector<16x32xf32>
    %117 = arith.truncf %116 : vector<16x32xf32> to vector<16x32xbf16>
    %118 = tpu.concatenate %54, %75, %96, %117 in 1 : vector<16x32xbf16>, vector<16x32xbf16>, vector<16x32xbf16>, vector<16x32xbf16> -> vector<16x128xbf16>
    %c0_37 = arith.constant 0 : index
    %c0_38 = arith.constant 0 : index
    %119 = vector.load %arg8[%c0_37, %c0_38] : memref<128x128xbf16, #tpu.memory_space<vmem>>, vector<128x128xbf16>
    %cst_39 = arith.constant dense<0.000000e+00> : vector<16x128xf32>
    %120 = tpu.matmul %118, %119, %cst_39 {dimension_numbers = #tpu.dot_dimension_numbers<[1], [0], [0], [1], [0, 0, 1, 1], [], []>} : vector<16x128xbf16>, vector<128x128xbf16>, vector<16x128xf32> -> vector<16x128xf32>
    %121 = arith.extf %6 : vector<16x128xbf16> to vector<16x128xf32>
    %122 = arith.addf %121, %120 : vector<16x128xf32>
    %c0_40 = arith.constant 0 : index
    %c0_41 = arith.constant 0 : index
    %123 = vector.load %arg9[%c0_40, %c0_41] : memref<1x128xf32, #tpu.memory_space<vmem>>, vector<1x128xf32>
    %124 = vector.broadcast %123 : vector<1x128xf32> to vector<16x128xf32>
    %125 = arith.addf %122, %124 : vector<16x128xf32>
    %c0_42 = arith.constant 0 : index
    %c0_43 = arith.constant 0 : index
    %126 = vector.load %arg10[%c0_42, %c0_43] : memref<1x128xf32, #tpu.memory_space<vmem>>, vector<1x128xf32>
    %c0_44 = arith.constant 0 : index
    %c0_45 = arith.constant 0 : index
    %127 = vector.load %arg11[%c0_44, %c0_45] : memref<1x128xf32, #tpu.memory_space<vmem>>, vector<1x128xf32>
    %cst_46 = arith.constant dense<0.000000e+00> : vector<16xf32>
    %128 = vector.multi_reduction <add>, %125, %cst_46 [1] : vector<16x128xf32> to vector<16xf32>
    %129 = vector.shape_cast %128 : vector<16xf32> to vector<16x1xf32>
    %cst_47 = arith.constant 1.280000e+02 : f32
    %130 = vector.broadcast %cst_47 : f32 to vector<16x1xf32>
    %131 = arith.divf %129, %130 : vector<16x1xf32>
    %132 = vector.broadcast %131 : vector<16x1xf32> to vector<16x128xf32>
    %133 = arith.subf %125, %132 : vector<16x128xf32>
    %134 = arith.mulf %133, %133 : vector<16x128xf32>
    %cst_48 = arith.constant dense<0.000000e+00> : vector<16xf32>
    %135 = vector.multi_reduction <add>, %134, %cst_48 [1] : vector<16x128xf32> to vector<16xf32>
    %136 = vector.shape_cast %135 : vector<16xf32> to vector<16x1xf32>
    %cst_49 = arith.constant 1.280000e+02 : f32
    %137 = vector.broadcast %cst_49 : f32 to vector<16x1xf32>
    %138 = arith.divf %136, %137 : vector<16x1xf32>
    %139 = vector.broadcast %131 : vector<16x1xf32> to vector<16x128xf32>
    %140 = arith.subf %125, %139 : vector<16x128xf32>
    %cst_50 = arith.constant 9.99999974E-6 : f32
    %141 = vector.broadcast %cst_50 : f32 to vector<16x1xf32>
    %142 = arith.addf %138, %141 : vector<16x1xf32>
    %143 = math.rsqrt %142 : vector<16x1xf32>
    %144 = vector.broadcast %143 : vector<16x1xf32> to vector<16x128xf32>
    %145 = arith.mulf %140, %144 : vector<16x128xf32>
    %146 = vector.broadcast %126 : vector<1x128xf32> to vector<16x128xf32>
    %147 = arith.mulf %145, %146 : vector<16x128xf32>
    %148 = vector.broadcast %127 : vector<1x128xf32> to vector<16x128xf32>
    %149 = arith.addf %147, %148 : vector<16x128xf32>
    %c0_51 = arith.constant 0 : index
    %c0_52 = arith.constant 0 : index
    %c0_53 = arith.constant 0 : index
    %150 = vector.load %arg12[%c0_51, %c0_52, %c0_53] : memref<1x16x1xf32, #tpu.memory_space<vmem>>, vector<1x16x1xf32>
    %151 = vector.shape_cast %150 : vector<1x16x1xf32> to vector<16x1xf32>
    %152 = vector.broadcast %151 : vector<16x1xf32> to vector<16x128xf32>
    %153 = arith.mulf %149, %152 : vector<16x128xf32>
    %154 = arith.truncf %153 : vector<16x128xf32> to vector<16x128xbf16>
    %c0_54 = arith.constant 0 : index
    %c0_55 = arith.constant 0 : index
    %c0_56 = arith.constant 0 : index
    %155 = vector.load %arg13[%c0_54, %c0_55, %c0_56] : memref<1x16x128xbf16, #tpu.memory_space<vmem>>, vector<1x16x128xbf16>
    %156 = vector.shape_cast %155 : vector<1x16x128xbf16> to vector<16x128xbf16>
    %157 = vector.shape_cast %154 : vector<16x128xbf16> to vector<1x16x128xbf16>
    tpu.vector_store %arg13[%c0_54, %c0_55, %c0_56], %157 {strides = array<i32>} : memref<1x16x128xbf16, #tpu.memory_space<vmem>>, vector<1x16x128xbf16>,
    return
  }
  func.func @transform_0(%arg0: i32, %arg1: i32) -> (i32, i32, i32) {
    %c0_i32 = arith.constant 0 : i32
    %c0_i32_0 = arith.constant 0 : i32
    %c0_i32_1 = arith.constant 0 : i32
    return %arg0, %c0_i32, %c0_i32_0 : i32, i32, i32
  }
  func.func @transform_1(%arg0: i32, %arg1: i32) -> (i32, i32, i32) {
    %c0_i32 = arith.constant 0 : i32
    %c0_i32_0 = arith.constant 0 : i32
    %c0_i32_1 = arith.constant 0 : i32
    return %arg0, %c0_i32, %c0_i32_0 : i32, i32, i32
  }
  func.func @transform_2(%arg0: i32, %arg1: i32) -> (i32, i32) {
    %c0_i32 = arith.constant 0 : i32
    %c0_i32_0 = arith.constant 0 : i32
    %c0_i32_1 = arith.constant 0 : i32
    return %c0_i32, %c0_i32_0 : i32, i32
  }
  func.func @transform_3(%arg0: i32, %arg1: i32) -> (i32, i32) {
    %c0_i32 = arith.constant 0 : i32
    %c0_i32_0 = arith.constant 0 : i32
    %c0_i32_1 = arith.constant 0 : i32
    return %c0_i32, %c0_i32_0 : i32, i32
  }
  func.func @transform_4(%arg0: i32, %arg1: i32) -> (i32, i32) {
    %c0_i32 = arith.constant 0 : i32
    %c0_i32_0 = arith.constant 0 : i32
    %c0_i32_1 = arith.constant 0 : i32
    return %c0_i32, %c0_i32_0 : i32, i32
  }
  func.func @transform_5(%arg0: i32, %arg1: i32) -> (i32, i32) {
    %c0_i32 = arith.constant 0 : i32
    %c0_i32_0 = arith.constant 0 : i32
    %c0_i32_1 = arith.constant 0 : i32
    return %c0_i32, %c0_i32_0 : i32, i32
  }
  func.func @transform_6(%arg0: i32, %arg1: i32) -> (i32, i32) {
    %c0_i32 = arith.constant 0 : i32
    %c0_i32_0 = arith.constant 0 : i32
    %c0_i32_1 = arith.constant 0 : i32
    return %c0_i32, %c0_i32_0 : i32, i32
  }
  func.func @transform_7(%arg0: i32, %arg1: i32) -> (i32, i32) {
    %c0_i32 = arith.constant 0 : i32
    %c0_i32_0 = arith.constant 0 : i32
    %c0_i32_1 = arith.constant 0 : i32
    return %c0_i32, %c0_i32_0 : i32, i32
  }
  func.func @transform_8(%arg0: i32, %arg1: i32) -> (i32, i32) {
    %c0_i32 = arith.constant 0 : i32
    %c0_i32_0 = arith.constant 0 : i32
    %c0_i32_1 = arith.constant 0 : i32
    return %c0_i32, %c0_i32_0 : i32, i32
  }
  func.func @transform_9(%arg0: i32, %arg1: i32) -> (i32, i32) {
    %c0_i32 = arith.constant 0 : i32
    %c0_i32_0 = arith.constant 0 : i32
    %c0_i32_1 = arith.constant 0 : i32
    return %c0_i32, %c0_i32_0 : i32, i32
  }
  func.func @transform_10(%arg0: i32, %arg1: i32) -> (i32, i32, i32) {
    %c0_i32 = arith.constant 0 : i32
    %c0_i32_0 = arith.constant 0 : i32
    return %arg0, %arg1, %c0_i32 : i32, i32, i32
  }
  func.func @transform_11(%arg0: i32, %arg1: i32) -> (i32, i32, i32) {
    %c0_i32 = arith.constant 0 : i32
    %c0_i32_0 = arith.constant 0 : i32
    return %arg0, %arg1, %c0_i32 : i32, i32, i32
  }
}

module attributes {stable_mosaic.version = 11 : i64} {
  func.func @_fc_logsoftmax_kernel(%arg0: i32, %arg1: i32, %arg2: memref<1x16x128xbf16, #tpu.memory_space<vmem>>, %arg3: memref<128x512xbf16, #tpu.memory_space<vmem>>, %arg4: memref<1x16x512xf32, #tpu.memory_space<vmem>>) attributes {dimension_semantics = [#tpu.dimension_semantics<parallel>, #tpu.dimension_semantics<parallel>], iteration_bounds = array<i64: 2, 2>, scalar_prefetch = 0 : i64, scratch_operands = 0 : i64, tpu.core_type = #tpu.core_type<tc>, window_params = [{transform_indices = @transform_0, window_bounds = array<i64: 1, 16, 128>}, {pipeline_mode = #tpu.pipeline_mode<synchronous>, transform_indices = @transform_1, window_bounds = array<i64: 128, 512>}, {transform_indices = @transform_2, window_bounds = array<i64: 1, 16, 512>}]} {
    %c0 = arith.constant 0 : index
    %c0_0 = arith.constant 0 : index
    %c0_1 = arith.constant 0 : index
    %0 = vector.load %arg2[%c0, %c0_0, %c0_1] : memref<1x16x128xbf16, #tpu.memory_space<vmem>>, vector<1x16x128xbf16>
    %1 = vector.shape_cast %0 : vector<1x16x128xbf16> to vector<16x128xbf16>
    %c0_2 = arith.constant 0 : index
    %c0_3 = arith.constant 0 : index
    %2 = vector.load %arg3[%c0_2, %c0_3] : memref<128x512xbf16, #tpu.memory_space<vmem>>, vector<128x512xbf16>
    %cst = arith.constant dense<0.000000e+00> : vector<16x512xf32>
    %3 = tpu.matmul %1, %2, %cst {dimension_numbers = #tpu.dot_dimension_numbers<[1], [0], [0], [1], [0, 0, 1, 1], [], []>} : vector<16x128xbf16>, vector<128x512xbf16>, vector<16x512xf32> -> vector<16x512xf32>
    %cst_4 = arith.constant dense<0xFF800000> : vector<16xf32>
    %4 = vector.multi_reduction <maximumf>, %3, %cst_4 [1] : vector<16x512xf32> to vector<16xf32>
    %5 = vector.shape_cast %4 : vector<16xf32> to vector<16x1xf32>
    %6 = vector.broadcast %5 : vector<16x1xf32> to vector<16x512xf32>
    %7 = arith.subf %3, %6 : vector<16x512xf32>
    %8 = math.exp %7 : vector<16x512xf32>
    %cst_5 = arith.constant dense<0.000000e+00> : vector<16xf32>
    %9 = vector.multi_reduction <add>, %8, %cst_5 [1] : vector<16x512xf32> to vector<16xf32>
    %10 = vector.shape_cast %9 : vector<16xf32> to vector<16x1xf32>
    %11 = math.log %10 : vector<16x1xf32>
    %12 = vector.broadcast %11 : vector<16x1xf32> to vector<16x512xf32>
    %13 = arith.subf %7, %12 : vector<16x512xf32>
    %c0_6 = arith.constant 0 : index
    %c0_7 = arith.constant 0 : index
    %c0_8 = arith.constant 0 : index
    %14 = vector.load %arg4[%c0_6, %c0_7, %c0_8] : memref<1x16x512xf32, #tpu.memory_space<vmem>>, vector<1x16x512xf32>
    %15 = vector.shape_cast %14 : vector<1x16x512xf32> to vector<16x512xf32>
    %16 = vector.shape_cast %13 : vector<16x512xf32> to vector<1x16x512xf32>
    tpu.vector_store %arg4[%c0_6, %c0_7, %c0_8], %16 {strides = array<i32>} : memref<1x16x512xf32, #tpu.memory_space<vmem>>, vector<1x16x512xf32>,
    return
  }
  func.func @transform_0(%arg0: i32, %arg1: i32) -> (i32, i32, i32) {
    %c0_i32 = arith.constant 0 : i32
    %c0_i32_0 = arith.constant 0 : i32
    return %arg0, %arg1, %c0_i32 : i32, i32, i32
  }
  func.func @transform_1(%arg0: i32, %arg1: i32) -> (i32, i32) {
    %c0_i32 = arith.constant 0 : i32
    %c0_i32_0 = arith.constant 0 : i32
    %c0_i32_1 = arith.constant 0 : i32
    return %c0_i32, %c0_i32_0 : i32, i32
  }
  func.func @transform_2(%arg0: i32, %arg1: i32) -> (i32, i32, i32) {
    %c0_i32 = arith.constant 0 : i32
    %c0_i32_0 = arith.constant 0 : i32
    return %arg0, %arg1, %c0_i32 : i32, i32, i32
  }
}

</mosaic_0001>

<llo_original>
// kernel: transformer_decoder.9
$region0: #{transformer_decoder.9}
  #allocation0 [shape = 'u32[]', space=smem, size = 0x4, offset = 0x4, fixed_abs, tag = 'smem constant byte address 0x4 - core index']
  #allocation1 [shape = 'u32[144,128]{1,0:T(1,128)}', space=vmem, size = 0x12000, scoped, tag = 'internal scratch']
  %s0 = inlined_call_operand.vmem [shape: bf16[2,32,128], index: 0, kind: input, shape index: {}]
  %s1 = inlined_call_operand.vmem [shape: bf16[128,256], index: 1, kind: input, shape index: {}]
  %s2 = inlined_call_operand.vmem [shape: f32[1,256], index: 2, kind: input, shape index: {}]
  %s3 = inlined_call_operand.vmem [shape: bf16[256,128], index: 3, kind: input, shape index: {}]
  %s4 = inlined_call_operand.vmem [shape: f32[1,128], index: 4, kind: input, shape index: {}]
  %s5 = inlined_call_operand.vmem [shape: f32[1,128], index: 5, kind: input, shape index: {}]
  %s6 = inlined_call_operand.vmem [shape: f32[1,128], index: 6, kind: input, shape index: {}]
  %s7 = inlined_call_operand.vmem [shape: f32[2,32,1], index: 7, kind: input, shape index: {}]
  %s8 = inlined_call_operand.vmem [shape: bf16[2,32,128], index: 8, kind: output, shape index: {}]
  %s9 = sld [smem:[#allocation0]]
  $region65: #{transformer_decoder.9} parent=0
    _
  %s11 = ssub.s32 1, %s9
  %s12 = scalar_select 0, %s11, %s9
  loop: start=0, step=1, limit=6
  $region2: #{transformer_decoder.9} parent=0 // loop_pre_header
    _
  $region3: #{transformer_decoder.9} parent=0 // loop_header
    %s14 = sphi 0, %s18
    %p15 = scmp.ge.s32.totalorder %s14, 6
    %s21 = sphi 0, %s33
    %s22 = sphi 0, %s29
    %s23 = sphi 0, %s21
    %s24 = sphi 0, %s22
    %s25 = sphi 0, %s23
    %s26 = sphi 0, %s24
    %s38 = sphi 0, %s40
    %s41 = sphi 0, %s38
    %s42 = sphi 0, %s41
    %s58 = sphi 0, %s42
    %s62 = sphi 0, %s62
    %s64 = sphi 0, %s62
    %s65 = sphi 0, %s64
    %s79 = sphi 0, %s65
    %s83 = sphi 0, %s83
    %s85 = sphi 0, %s83
    %s86 = sphi 0, %s85
    %s100 = sphi 0, %s86
    %s104 = sphi 0, %s104
    %s106 = sphi 0, %s104
    %s107 = sphi 0, %s106
    %s121 = sphi 0, %s107
    %s125 = sphi 0, %s125
    %s127 = sphi 0, %s125
    %s128 = sphi 0, %s127
    %s142 = sphi 0, %s128
    %s146 = sphi 0, %s146
    %s148 = sphi 0, %s146
    %s149 = sphi 0, %s148
    %s163 = sphi 0, %s149
    %s167 = sphi 0, %s167
    %s169 = sphi 0, %s167
    %s170 = sphi 0, %s169
    %s184 = sphi 0, %s170
    %s192 = sphi 0, %s194
    %s195 = sphi 0, %s192
    %s196 = sphi 0, %s195
    %s212 = sphi 0, %s196
    %s220 = sphi 0, %s222
    %s223 = sphi 0, %s220
    %s224 = sphi 0, %s223
    %s240 = sphi 0, %s224
  $region4: #{transformer_decoder.9} parent=0 // loop_header_branch
    %17 = sbr.rel (%p15) target = $region8
  $region5: #{transformer_decoder.9} parent=0 // loop_body
    %s19 = ssub.s32 %s14, 1
    %s20 = ssub.s32 %s14, 2
    %s27 = sadd.s32 1, %s22
    %p28 = scmp.ge.s32.totalorder %s27, 2
    %s29 = scalar_select %p28, 0, %s27
    %s30 = sadd.s32 1, %s21
    %s31 = scalar_select %p28, %s30, %s21
    %p32 = scmp.ge.s32.totalorder %s31, 2
    %s33 = scalar_select %p32, 0, %s31
    %s34 = ssub.s32 %s21, %s33
    %s35 = ssub.s32 %s22, %s29
    %s36 = sor.u32 %s34, %s35
    %p37 = scmp.eq.s32.totalorder %s36, 0
    %s39 = sadd.s32 %s38, 1
    %s40 = scalar_select %p37, %s38, %s39
    %p43 = pneg %p37
    %p44 = scmp.eq.s32.totalorder %s14, 3
    %p45 = por %p43, %p44
    %p46 = scmp.ne.s32.totalorder %s38, %s41
    %p47 = scmp.eq.s32.totalorder %s14, 0
    %p48 = por %p46, %p47
    %p49 = scmp.ne.s32.totalorder %s38, %s41
    %p50 = scmp.eq.s32.totalorder %s19, 3
    %p51 = por %p49, %p50
    %p52 = scmp.ne.s32.totalorder %s41, %s42
    %p53 = scmp.eq.s32.totalorder %s19, 0
    %p54 = por %p52, %p53
    %p55 = scmp.ne.s32.totalorder %s41, %s42
    %p56 = scmp.eq.s32.totalorder %s20, 3
    %p57 = por %p55, %p56
    %p59 = scmp.ne.s32.totalorder %s42, %s58
    %p60 = scmp.eq.s32.totalorder %s20, 0
    %p61 = por %p59, %p60
    %s63 = sadd.s32 %s62, 1
    %p66 = scmp.eq.s32.totalorder %s14, 3
    %p67 = scmp.ne.s32.totalorder %s62, %s64
    %p68 = scmp.eq.s32.totalorder %s14, 0
    %p69 = por %p67, %p68
    %p70 = scmp.ne.s32.totalorder %s62, %s64
    %p71 = scmp.eq.s32.totalorder %s19, 3
    %p72 = por %p70, %p71
    %p73 = scmp.ne.s32.totalorder %s64, %s65
    %p74 = scmp.eq.s32.totalorder %s19, 0
    %p75 = por %p73, %p74
    %p76 = scmp.ne.s32.totalorder %s64, %s65
    %p77 = scmp.eq.s32.totalorder %s20, 3
    %p78 = por %p76, %p77
    %p80 = scmp.ne.s32.totalorder %s65, %s79
    %p81 = scmp.eq.s32.totalorder %s20, 0
    %p82 = por %p80, %p81
    %s84 = sadd.s32 %s83, 1
    %p87 = scmp.eq.s32.totalorder %s14, 3
    %p88 = scmp.ne.s32.totalorder %s83, %s85
    %p89 = scmp.eq.s32.totalorder %s14, 0
    %p90 = por %p88, %p89
    %p91 = scmp.ne.s32.totalorder %s83, %s85
    %p92 = scmp.eq.s32.totalorder %s19, 3
    %p93 = por %p91, %p92
    %p94 = scmp.ne.s32.totalorder %s85, %s86
    %p95 = scmp.eq.s32.totalorder %s19, 0
    %p96 = por %p94, %p95
    %p97 = scmp.ne.s32.totalorder %s85, %s86
    %p98 = scmp.eq.s32.totalorder %s20, 3
    %p99 = por %p97, %p98
    %p101 = scmp.ne.s32.totalorder %s86, %s100
    %p102 = scmp.eq.s32.totalorder %s20, 0
    %p103 = por %p101, %p102
    %s105 = sadd.s32 %s104, 1
    %p108 = scmp.eq.s32.totalorder %s14, 3
    %p109 = scmp.ne.s32.totalorder %s104, %s106
    %p110 = scmp.eq.s32.totalorder %s14, 0
    %p111 = por %p109, %p110
    %p112 = scmp.ne.s32.totalorder %s104, %s106
    %p113 = scmp.eq.s32.totalorder %s19, 3
    %p114 = por %p112, %p113
    %p115 = scmp.ne.s32.totalorder %s106, %s107
    %p116 = scmp.eq.s32.totalorder %s19, 0
    %p117 = por %p115, %p116
    %p118 = scmp.ne.s32.totalorder %s106, %s107
    %p119 = scmp.eq.s32.totalorder %s20, 3
    %p120 = por %p118, %p119
    %p122 = scmp.ne.s32.totalorder %s107, %s121
    %p123 = scmp.eq.s32.totalorder %s20, 0
    %p124 = por %p122, %p123
    %s126 = sadd.s32 %s125, 1
    %p129 = scmp.eq.s32.totalorder %s14, 3
    %p130 = scmp.ne.s32.totalorder %s125, %s127
    %p131 = scmp.eq.s32.totalorder %s14, 0
    %p132 = por %p130, %p131
    %p133 = scmp.ne.s32.totalorder %s125, %s127
    %p134 = scmp.eq.s32.totalorder %s19, 3
    %p135 = por %p133, %p134
    %p136 = scmp.ne.s32.totalorder %s127, %s128
    %p137 = scmp.eq.s32.totalorder %s19, 0
    %p138 = por %p136, %p137
    %p139 = scmp.ne.s32.totalorder %s127, %s128
    %p140 = scmp.eq.s32.totalorder %s20, 3
    %p141 = por %p139, %p140
    %p143 = scmp.ne.s32.totalorder %s128, %s142
    %p144 = scmp.eq.s32.totalorder %s20, 0
    %p145 = por %p143, %p144
    %s147 = sadd.s32 %s146, 1
    %p150 = scmp.eq.s32.totalorder %s14, 3
    %p151 = scmp.ne.s32.totalorder %s146, %s148
    %p152 = scmp.eq.s32.totalorder %s14, 0
    %p153 = por %p151, %p152
    %p154 = scmp.ne.s32.totalorder %s146, %s148
    %p155 = scmp.eq.s32.totalorder %s19, 3
    %p156 = por %p154, %p155
    %p157 = scmp.ne.s32.totalorder %s148, %s149
    %p158 = scmp.eq.s32.totalorder %s19, 0
    %p159 = por %p157, %p158
    %p160 = scmp.ne.s32.totalorder %s148, %s149
    %p161 = scmp.eq.s32.totalorder %s20, 3
    %p162 = por %p160, %p161
    %p164 = scmp.ne.s32.totalorder %s149, %s163
    %p165 = scmp.eq.s32.totalorder %s20, 0
    %p166 = por %p164, %p165
    %s168 = sadd.s32 %s167, 1
    %p171 = scmp.eq.s32.totalorder %s14, 3
    %p172 = scmp.ne.s32.totalorder %s167, %s169
    %p173 = scmp.eq.s32.totalorder %s14, 0
    %p174 = por %p172, %p173
    %p175 = scmp.ne.s32.totalorder %s167, %s169
    %p176 = scmp.eq.s32.totalorder %s19, 3
    %p177 = por %p175, %p176
    %p178 = scmp.ne.s32.totalorder %s169, %s170
    %p179 = scmp.eq.s32.totalorder %s19, 0
    %p180 = por %p178, %p179
    %p181 = scmp.ne.s32.totalorder %s169, %s170
    %p182 = scmp.eq.s32.totalorder %s20, 3
    %p183 = por %p181, %p182
    %p185 = scmp.ne.s32.totalorder %s170, %s184
    %p186 = scmp.eq.s32.totalorder %s20, 0
    %p187 = por %p185, %p186
    %s188 = ssub.s32 %s21, %s33
    %s189 = ssub.s32 %s22, %s29
    %s190 = sor.u32 %s188, %s189
    %p191 = scmp.eq.s32.totalorder %s190, 0
    %s193 = sadd.s32 %s192, 1
    %s194 = scalar_select %p191, %s192, %s193
    %p197 = pneg %p191
    %p198 = scmp.eq.s32.totalorder %s14, 3
    %p199 = por %p197, %p198
    %p200 = scmp.ne.s32.totalorder %s192, %s195
    %p201 = scmp.eq.s32.totalorder %s14, 0
    %p202 = por %p200, %p201
    %p203 = scmp.ne.s32.totalorder %s192, %s195
    %p204 = scmp.eq.s32.totalorder %s19, 3
    %p205 = por %p203, %p204
    %p206 = scmp.ne.s32.totalorder %s195, %s196
    %p207 = scmp.eq.s32.totalorder %s19, 0
    %p208 = por %p206, %p207
    %p209 = scmp.ne.s32.totalorder %s195, %s196
    %p210 = scmp.eq.s32.totalorder %s20, 3
    %p211 = por %p209, %p210
    %p213 = scmp.ne.s32.totalorder %s196, %s212
    %p214 = scmp.eq.s32.totalorder %s20, 0
    %p215 = por %p213, %p214
    %s216 = ssub.s32 %s21, %s33
    %s217 = ssub.s32 %s22, %s29
    %s218 = sor.u32 %s216, %s217
    %p219 = scmp.eq.s32.totalorder %s218, 0
    %s221 = sadd.s32 %s220, 1
    %s222 = scalar_select %p219, %s220, %s221
    %p225 = pneg %p219
    %p226 = scmp.eq.s32.totalorder %s14, 3
    %p227 = por %p225, %p226
    %p228 = scmp.ne.s32.totalorder %s220, %s223
    %p229 = scmp.eq.s32.totalorder %s14, 0
    %p230 = por %p228, %p229
    %p231 = scmp.ne.s32.totalorder %s220, %s223
    %p232 = scmp.eq.s32.totalorder %s19, 3
    %p233 = por %p231, %p232
    %p234 = scmp.ne.s32.totalorder %s223, %s224
    %p235 = scmp.eq.s32.totalorder %s19, 0
    %p236 = por %p234, %p235
    %p237 = scmp.ne.s32.totalorder %s223, %s224
    %p238 = scmp.eq.s32.totalorder %s20, 3
    %p239 = por %p237, %p238
    %p241 = scmp.ne.s32.totalorder %s224, %s240
    %p242 = scmp.eq.s32.totalorder %s20, 0
    %p243 = por %p241, %p242
    %p244 = scmp.le.s32.totalorder 1, %s14
    %p245 = scmp.lt.s32.totalorder %s14, 5
    %p246 = pnand %p244, %p245
    %p247 = pneg %p246
    // Predicated region
    $region9: #{transformer_decoder.9} parent=5 // pred_check
      _
    $region10: #{transformer_decoder.9} parent=5 // pred_check_branch
      %249 = sbr.rel (%p246) target = $region12
    $region11: #{transformer_decoder.9} parent=5 // pred_region
      %s250 = ssub.s32 %s14, 1
      // Predicated region
      $region13: #{transformer_decoder.9} parent=11 // pred_check
        %p251 = pneg %p75
      $region14: #{transformer_decoder.9} parent=11 // pred_check_branch
        %253 = sbr.rel (%p251) target = $region16
      $region15: #{transformer_decoder.9} parent=11 // pred_region
        _
      $region16: #{transformer_decoder.9} parent=11 // pred_fallthru
        _
      // Predicated region
      $region17: #{transformer_decoder.9} parent=11 // pred_check
        %p254 = pneg %p96
      $region18: #{transformer_decoder.9} parent=11 // pred_check_branch
        %256 = sbr.rel (%p254) target = $region20
      $region19: #{transformer_decoder.9} parent=11 // pred_region
        _
      $region20: #{transformer_decoder.9} parent=11 // pred_fallthru
        _
      // Predicated region
      $region21: #{transformer_decoder.9} parent=11 // pred_check
        %p257 = pneg %p117
      $region22: #{transformer_decoder.9} parent=11 // pred_check_branch
        %259 = sbr.rel (%p257) target = $region24
      $region23: #{transformer_decoder.9} parent=11 // pred_region
        _
      $region24: #{transformer_decoder.9} parent=11 // pred_fallthru
        _
      // Predicated region
      $region25: #{transformer_decoder.9} parent=11 // pred_check
        %p260 = pneg %p138
      $region26: #{transformer_decoder.9} parent=11 // pred_check_branch
        %262 = sbr.rel (%p260) target = $region28
      $region27: #{transformer_decoder.9} parent=11 // pred_region
        _
      $region28: #{transformer_decoder.9} parent=11 // pred_fallthru
        _
      // Predicated region
      $region29: #{transformer_decoder.9} parent=11 // pred_check
        %p263 = pneg %p159
      $region30: #{transformer_decoder.9} parent=11 // pred_check_branch
        %265 = sbr.rel (%p263) target = $region32
      $region31: #{transformer_decoder.9} parent=11 // pred_region
        _
      $region32: #{transformer_decoder.9} parent=11 // pred_fallthru
        _
      // Predicated region
      $region33: #{transformer_decoder.9} parent=11 // pred_check
        %p266 = pneg %p180
      $region34: #{transformer_decoder.9} parent=11 // pred_check_branch
        %268 = sbr.rel (%p266) target = $region36
      $region35: #{transformer_decoder.9} parent=11 // pred_region
        _
      $region36: #{transformer_decoder.9} parent=11 // pred_fallthru
        _
    $region12: #{transformer_decoder.9} parent=5 // pred_fallthru
      _
    %p269 = scmp.lt.s32.totalorder %s14, 4
    // Predicated region
    $region37: #{transformer_decoder.9} parent=5 // pred_check
      %p270 = pneg %p269
    $region38: #{transformer_decoder.9} parent=5 // pred_check_branch
      %272 = sbr.rel (%p270) target = $region40
    $region39: #{transformer_decoder.9} parent=5 // pred_region
      // Predicated region
      $region41: #{transformer_decoder.9} parent=39 // pred_check
        %p273 = pneg %p48
      $region42: #{transformer_decoder.9} parent=39 // pred_check_branch
        %275 = sbr.rel (%p273) target = $region44
      $region43: #{transformer_decoder.9} parent=39 // pred_region
        %s276 = smul.u32 2, %s22
        %p277 = scmp.lt.s32.totalorder %s21, 1
        %s278 = scalar_select %p277, %s21, 1
        %p279 = scmp.lt.s32.totalorder %s276, 3
        %s280 = scalar_select %p279, %s276, 3
        %s281 = smul.addr %s278, 4
        %s282 = sadd.s32 %s280, %s281
        %s283 = smul.addr %s282, 4
        %s284 = scalar_lea.vmem %s0, %s283
        %s285 = smul.u32 2, %s22
      $region44: #{transformer_decoder.9} parent=39 // pred_fallthru
        _
      // Predicated region
      $region45: #{transformer_decoder.9} parent=39 // pred_check
        %p286 = pneg %p202
      $region46: #{transformer_decoder.9} parent=39 // pred_check_branch
        %288 = sbr.rel (%p286) target = $region48
      $region47: #{transformer_decoder.9} parent=39 // pred_region
        %s289 = smul.u32 2, %s22
        %p290 = scmp.lt.s32.totalorder %s21, 1
        %s291 = scalar_select %p290, %s21, 1
        %p292 = scmp.lt.s32.totalorder %s289, 3
        %s293 = scalar_select %p292, %s289, 3
        %s294 = smul.addr %s291, 4
        %s295 = sadd.s32 %s293, %s294
        %s296 = smul.addr %s295, 8
        %s297 = scalar_lea.vmem %s7, %s296
        %s298 = smul.u32 2, %s22
      $region48: #{transformer_decoder.9} parent=39 // pred_fallthru
        _
    $region40: #{transformer_decoder.9} parent=5 // pred_fallthru
      _
    %p299 = scmp.le.s32.totalorder 1, %s14
    %p300 = scmp.lt.s32.totalorder %s14, 5
    %p301 = pnand %p299, %p300
    %p302 = pneg %p301
    // Predicated region
    $region49: #{transformer_decoder.9} parent=5 // pred_check
      _
    $region50: #{transformer_decoder.9} parent=5 // pred_check_branch
      %304 = sbr.rel (%p301) target = $region52
    $region51: #{transformer_decoder.9} parent=5 // pred_region
      %s305 = ssub.s32 %s14, 1
      %s306 = smul.u32 2, %s24
      %p307 = scmp.lt.s32.totalorder %s23, 1
      %s308 = scalar_select %p307, %s23, 1
      %p309 = scmp.lt.s32.totalorder %s306, 3
      %s310 = scalar_select %p309, %s306, 3
      %s311 = smul.addr %s308, 4
      %s312 = sadd.s32 %s310, %s311
      %s313 = smul.addr %s312, 4
      %s314 = scalar_lea.vmem %s0, %s313
      %p315 = pneg %p54
      %p316 = pneg %p51
      %p317 = pneg %p75
      %p318 = pneg %p72
      %p319 = pneg %p96
      %p320 = pneg %p93
      %p321 = pneg %p117
      %p322 = pneg %p114
      %p323 = pneg %p138
      %p324 = pneg %p135
      %p325 = pneg %p159
      %p326 = pneg %p156
      %p327 = pneg %p180
      %p328 = pneg %p177
      %s329 = smul.u32 2, %s24
      %p330 = scmp.lt.s32.totalorder %s23, 1
      %s331 = scalar_select %p330, %s23, 1
      %p332 = scmp.lt.s32.totalorder %s329, 3
      %s333 = scalar_select %p332, %s329, 3
      %s334 = smul.addr %s331, 4
      %s335 = sadd.s32 %s333, %s334
      %s336 = smul.addr %s335, 8
      %s337 = scalar_lea.vmem %s7, %s336
      %p338 = pneg %p208
      %p339 = pneg %p205
      %p340 = pneg %p236
      %p341 = pneg %p233
      %s342 = smul.u32 2, %s24
      %p343 = scmp.lt.s32.totalorder %s23, 1
      %s344 = scalar_select %p343, %s23, 1
      %p345 = scmp.lt.s32.totalorder %s342, 3
      %s346 = scalar_select %p345, %s342, 3
      %s347 = smul.addr %s344, 4
      %s348 = sadd.s32 %s346, %s347
      %s349 = smul.addr %s348, 4
      %s350 = scalar_lea.vmem %s8, %s349
      %s351 = smul.u32 2, %s24
      %p352 = scmp.lt.s32.totalorder %s23, 1
      %s353 = scalar_select %p352, %s23, 1
      %p354 = scmp.lt.s32.totalorder %s351, 3
      %s355 = scalar_select %p354, %s351, 3
      %s356 = smul.addr %s353, 4
      %s357 = sadd.s32 %s355, %s356
      %s358 = smul.addr %s357, 4
      %s359 = scalar_lea.vmem %s0, %s358
      %s360 = smul.u32 2, %s24
      %s361 = smul.u32 2, %s24
      %p362 = scmp.lt.s32.totalorder %s23, 1
      %s363 = scalar_select %p362, %s23, 1
      %p364 = scmp.lt.s32.totalorder %s361, 3
      %s365 = scalar_select %p364, %s361, 3
      %s366 = smul.addr %s363, 4
      %s367 = sadd.s32 %s365, %s366
      %s368 = smul.addr %s367, 8
      %s369 = scalar_lea.vmem %s7, %s368
      %s370 = smul.u32 2, %s24
      %s371 = smul.u32 2, %s24
      %p372 = scmp.lt.s32.totalorder %s23, 1
      %s373 = scalar_select %p372, %s23, 1
      %p374 = scmp.lt.s32.totalorder %s371, 3
      %s375 = scalar_select %p374, %s371, 3
      %s376 = smul.addr %s373, 4
      %s377 = sadd.s32 %s375, %s376
      %s378 = smul.addr %s377, 4
      %s379 = scalar_lea.vmem %s8, %s378
      %s380 = smul.u32 2, %s24
      %v382 = vld [vmem:[%s359] sm:$0xf]
      %v383 = vld [vmem:[%s359 + $0x4] sm:$0xf]
      %v384 = vld [vmem:[%s1] sm:$0xff]
      %v385 = vld [vmem:[%s1 + $0x8] sm:$0xff]
      %v386 = vld [vmem:[%s1 + $0x10] sm:$0xff]
      %v387 = vld [vmem:[%s1 + $0x18] sm:$0xff]
      %v388 = vld [vmem:[%s1 + $0x20] sm:$0xff]
      %v389 = vld [vmem:[%s1 + $0x28] sm:$0xff]
      %v390 = vld [vmem:[%s1 + $0x30] sm:$0xff]
      %v391 = vld [vmem:[%s1 + $0x38] sm:$0xff]
      %v392 = vld [vmem:[%s1 + $0x40] sm:$0xff]
      %v393 = vld [vmem:[%s1 + $0x48] sm:$0xff]
      %v394 = vld [vmem:[%s1 + $0x50] sm:$0xff]
      %v395 = vld [vmem:[%s1 + $0x58] sm:$0xff]
      %v396 = vld [vmem:[%s1 + $0x60] sm:$0xff]
      %v397 = vld [vmem:[%s1 + $0x68] sm:$0xff]
      %v398 = vld [vmem:[%s1 + $0x70] sm:$0xff]
      %v399 = vld [vmem:[%s1 + $0x78] sm:$0xff]
      %v400 = vld [vmem:[%s2] sm:$0x3]
      %v402 = vlaneseq
      %v403 = vshrl.u32 %v402, 7
      %v404 = vsub.s32 0, %v403
      %v405 = vrot.slane %v400, %v404
      %v406 = vlaneseq
      %v407 = vshrl.u32 %v406, 7
      %v408 = vsub.s32 1, %v407
      %v409 = vrot.slane %v400, %v408
      %v414 = vunpack.c.l.b16 %v382
      %v415 = vunpack.c.l.b16 %v383
      %v416 = vpack.c.b16 %v415, %v414
      %v434 = vunpack.c.l.b16 %v384
      %v435 = vunpack.c.h.b16 %v384
      %v436 = vunpack.c.l.b16 %v385
      %v437 = vunpack.c.h.b16 %v385
      %v438 = vunpack.c.l.b16 %v386
      %v439 = vunpack.c.h.b16 %v386
      %v440 = vunpack.c.l.b16 %v387
      %v441 = vunpack.c.h.b16 %v387
      %v442 = vunpack.c.l.b16 %v388
      %v443 = vunpack.c.h.b16 %v388
      %v444 = vunpack.c.l.b16 %v389
      %v445 = vunpack.c.h.b16 %v389
      %v446 = vunpack.c.l.b16 %v390
      %v447 = vunpack.c.h.b16 %v390
      %v448 = vunpack.c.l.b16 %v391
      %v449 = vunpack.c.h.b16 %v391
      %v450 = vunpack.c.l.b16 %v392
      %v451 = vunpack.c.h.b16 %v392
      %v452 = vunpack.c.l.b16 %v393
      %v453 = vunpack.c.h.b16 %v393
      %v454 = vunpack.c.l.b16 %v394
      %v455 = vunpack.c.h.b16 %v394
      %v456 = vunpack.c.l.b16 %v395
      %v457 = vunpack.c.h.b16 %v395
      %v458 = vunpack.c.l.b16 %v396
      %v459 = vunpack.c.h.b16 %v396
      %v460 = vunpack.c.l.b16 %v397
      %v461 = vunpack.c.h.b16 %v397
      %v462 = vunpack.c.l.b16 %v398
      %v463 = vunpack.c.h.b16 %v398
      %v464 = vunpack.c.l.b16 %v399
      %v465 = vunpack.c.h.b16 %v399
      %v466 = vpack.c.b16 %v436, %v434
      %v467 = vpack.c.b16 %v437, %v435
      %v468 = vpack.c.b16 %v440, %v438
      %v469 = vpack.c.b16 %v441, %v439
      %v470 = vpack.c.b16 %v444, %v442
      %v471 = vpack.c.b16 %v445, %v443
      %v472 = vpack.c.b16 %v448, %v446
      %v473 = vpack.c.b16 %v449, %v447
      %v474 = vpack.c.b16 %v452, %v450
      %v475 = vpack.c.b16 %v453, %v451
      %v476 = vpack.c.b16 %v456, %v454
      %v477 = vpack.c.b16 %v457, %v455
      %v478 = vpack.c.b16 %v460, %v458
      %v479 = vpack.c.b16 %v461, %v459
      %v480 = vpack.c.b16 %v464, %v462
      %v481 = vpack.c.b16 %v465, %v463
      %498 = vmatprep.subr.bf16.mxu0 %v467
      %499 = vmatpush1.bf16.msra.mxu0 %v466
      %500 = vmatprep.subr.bf16.mxu0 %v469
      %501 = vmatpush1.bf16.msra.mxu0 %v468
      %502 = vmatprep.subr.bf16.mxu0 %v471
      %503 = vmatpush1.bf16.msra.mxu0 %v470
      %504 = vmatprep.subr.bf16.mxu0 %v473
      %505 = vmatpush1.bf16.msra.mxu0 %v472
      %506 = vmatprep.subr.bf16.mxu0 %v475
      %507 = vmatpush1.bf16.msra.mxu0 %v474
      %508 = vmatprep.subr.bf16.mxu0 %v477
      %509 = vmatpush1.bf16.msra.mxu0 %v476
      %510 = vmatprep.subr.bf16.mxu0 %v479
      %511 = vmatpush1.bf16.msra.mxu0 %v478
      %512 = vmatprep.subr.bf16.mxu0 %v481
      %513 = vmatpush1.bf16.msra.mxu0 %v480
      %514 = vmatprep.subr.bf16.mxu0 0
      %515 = vmatpush1.bf16.msra.mxu0 0
      %516 = vmatprep.subr.bf16.mxu0 0
      %517 = vmatpush1.bf16.msra.mxu0 0
      %518 = vmatprep.subr.bf16.mxu0 0
      %519 = vmatpush1.bf16.msra.mxu0 0
      %520 = vmatprep.subr.bf16.mxu0 0
      %521 = vmatpush1.bf16.msra.mxu0 0
      %522 = vmatprep.subr.bf16.mxu0 0
      %523 = vmatpush1.bf16.msra.mxu0 0
      %524 = vmatprep.subr.bf16.mxu0 0
      %525 = vmatpush1.bf16.msra.mxu0 0
      %526 = vmatprep.subr.bf16.mxu0 0
      %527 = vmatpush1.bf16.msra.mxu0 0
      %528 = vmatprep.subr.bf16.mxu0 0
      %529 = vmatpush1.bf16.msra.mxu0 0
      %530 = vmatprep.mubr.bf16.mxu0 0
      %531 = vmatmul.mubr.bf16.gmra.mrb[0].mxu0 %v416
      %v532 = vpop.f32.mrb[0].mxu0
      %v533 = vadd.f32 %v405, %v532
      %v534 = vpop.f32.mrb[0].mxu0
      %v535 = vadd.f32 %v409, %v534
      %v536 = vpop.f32.mrb[0].mxu0
      %v537 = vadd.f32 %v405, %v536
      %v538 = vpop.f32.mrb[0].mxu0
      %v539 = vadd.f32 %v409, %v538
      %540 = vdwg.mxu0
      %v541 = vmax.f32 %v533, 0.0
      %v542 = vmax.f32 %v535, 0.0
      %v543 = vmax.f32 %v537, 0.0
      %v544 = vmax.f32 %v539, 0.0
      %v545 = vpack.c.bf16 %v543, %v541
      %v546 = vpack.c.bf16 %v544, %v542
      %v547 = vld [vmem:[%s3] sm:$0xf]
      %v548 = vld [vmem:[%s3 + $0x4] sm:$0xf]
      %v549 = vld [vmem:[%s3 + $0x8] sm:$0xf]
      %v550 = vld [vmem:[%s3 + $0xc] sm:$0xf]
      %v551 = vld [vmem:[%s3 + $0x10] sm:$0xf]
      %v552 = vld [vmem:[%s3 + $0x14] sm:$0xf]
      %v553 = vld [vmem:[%s3 + $0x18] sm:$0xf]
      %v554 = vld [vmem:[%s3 + $0x1c] sm:$0xf]
      %v555 = vld [vmem:[%s3 + $0x20] sm:$0xf]
      %v556 = vld [vmem:[%s3 + $0x24] sm:$0xf]
      %v557 = vld [vmem:[%s3 + $0x28] sm:$0xf]
      %v558 = vld [vmem:[%s3 + $0x2c] sm:$0xf]
      %v559 = vld [vmem:[%s3 + $0x30] sm:$0xf]
      %v560 = vld [vmem:[%s3 + $0x34] sm:$0xf]
      %v561 = vld [vmem:[%s3 + $0x38] sm:$0xf]
      %v562 = vld [vmem:[%s3 + $0x3c] sm:$0xf]
      %v563 = vld [vmem:[%s3 + $0x40] sm:$0xf]
      %v564 = vld [vmem:[%s3 + $0x44] sm:$0xf]
      %v565 = vld [vmem:[%s3 + $0x48] sm:$0xf]
      %v566 = vld [vmem:[%s3 + $0x4c] sm:$0xf]
      %v567 = vld [vmem:[%s3 + $0x50] sm:$0xf]
      %v568 = vld [vmem:[%s3 + $0x54] sm:$0xf]
      %v569 = vld [vmem:[%s3 + $0x58] sm:$0xf]
      %v570 = vld [vmem:[%s3 + $0x5c] sm:$0xf]
      %v571 = vld [vmem:[%s3 + $0x60] sm:$0xf]
      %v572 = vld [vmem:[%s3 + $0x64] sm:$0xf]
      %v573 = vld [vmem:[%s3 + $0x68] sm:$0xf]
      %v574 = vld [vmem:[%s3 + $0x6c] sm:$0xf]
      %v575 = vld [vmem:[%s3 + $0x70] sm:$0xf]
      %v576 = vld [vmem:[%s3 + $0x74] sm:$0xf]
      %v577 = vld [vmem:[%s3 + $0x78] sm:$0xf]
      %v578 = vld [vmem:[%s3 + $0x7c] sm:$0xf]
      %v579 = vld [vmem:[%s4] sm:$0x1]
      %v581 = vlaneseq
      %v582 = vshrl.u32 %v581, 7
      %v583 = vsub.s32 0, %v582
      %v584 = vrot.slane %v579, %v583
      %v618 = vunpack.c.l.b16 %v547
      %v619 = vunpack.c.l.b16 %v548
      %v620 = vunpack.c.l.b16 %v549
      %v621 = vunpack.c.l.b16 %v550
      %v622 = vunpack.c.l.b16 %v551
      %v623 = vunpack.c.l.b16 %v552
      %v624 = vunpack.c.l.b16 %v553
      %v625 = vunpack.c.l.b16 %v554
      %v626 = vunpack.c.l.b16 %v555
      %v627 = vunpack.c.l.b16 %v556
      %v628 = vunpack.c.l.b16 %v557
      %v629 = vunpack.c.l.b16 %v558
      %v630 = vunpack.c.l.b16 %v559
      %v631 = vunpack.c.l.b16 %v560
      %v632 = vunpack.c.l.b16 %v561
      %v633 = vunpack.c.l.b16 %v562
      %v634 = vunpack.c.l.b16 %v563
      %v635 = vunpack.c.l.b16 %v564
      %v636 = vunpack.c.l.b16 %v565
      %v637 = vunpack.c.l.b16 %v566
      %v638 = vunpack.c.l.b16 %v567
      %v639 = vunpack.c.l.b16 %v568
      %v640 = vunpack.c.l.b16 %v569
      %v641 = vunpack.c.l.b16 %v570
      %v642 = vunpack.c.l.b16 %v571
      %v643 = vunpack.c.l.b16 %v572
      %v644 = vunpack.c.l.b16 %v573
      %v645 = vunpack.c.l.b16 %v574
      %v646 = vunpack.c.l.b16 %v575
      %v647 = vunpack.c.l.b16 %v576
      %v648 = vunpack.c.l.b16 %v577
      %v649 = vunpack.c.l.b16 %v578
      %v650 = vpack.c.b16 %v619, %v618
      %v651 = vpack.c.b16 %v621, %v620
      %v652 = vpack.c.b16 %v623, %v622
      %v653 = vpack.c.b16 %v625, %v624
      %v654 = vpack.c.b16 %v627, %v626
      %v655 = vpack.c.b16 %v629, %v628
      %v656 = vpack.c.b16 %v631, %v630
      %v657 = vpack.c.b16 %v633, %v632
      %v658 = vpack.c.b16 %v635, %v634
      %v659 = vpack.c.b16 %v637, %v636
      %v660 = vpack.c.b16 %v639, %v638
      %v661 = vpack.c.b16 %v641, %v640
      %v662 = vpack.c.b16 %v643, %v642
      %v663 = vpack.c.b16 %v645, %v644
      %v664 = vpack.c.b16 %v647, %v646
      %v665 = vpack.c.b16 %v649, %v648
      %682 = vmatprep.subr.bf16.mxu0 0
      %683 = vmatpush1.bf16.msra.mxu0 %v650
      %684 = vmatprep.subr.bf16.mxu0 0
      %685 = vmatpush1.bf16.msra.mxu0 %v651
      %686 = vmatprep.subr.bf16.mxu0 0
      %687 = vmatpush1.bf16.msra.mxu0 %v652
      %688 = vmatprep.subr.bf16.mxu0 0
      %689 = vmatpush1.bf16.msra.mxu0 %v653
      %690 = vmatprep.subr.bf16.mxu0 0
      %691 = vmatpush1.bf16.msra.mxu0 %v654
      %692 = vmatprep.subr.bf16.mxu0 0
      %693 = vmatpush1.bf16.msra.mxu0 %v655
      %694 = vmatprep.subr.bf16.mxu0 0
      %695 = vmatpush1.bf16.msra.mxu0 %v656
      %696 = vmatprep.subr.bf16.mxu0 0
      %697 = vmatpush1.bf16.msra.mxu0 %v657
      %698 = vmatprep.subr.bf16.mxu0 0
      %699 = vmatpush1.bf16.msra.mxu0 %v658
      %700 = vmatprep.subr.bf16.mxu0 0
      %701 = vmatpush1.bf16.msra.mxu0 %v659
      %702 = vmatprep.subr.bf16.mxu0 0
      %703 = vmatpush1.bf16.msra.mxu0 %v660
      %704 = vmatprep.subr.bf16.mxu0 0
      %705 = vmatpush1.bf16.msra.mxu0 %v661
      %706 = vmatprep.subr.bf16.mxu0 0
      %707 = vmatpush1.bf16.msra.mxu0 %v662
      %708 = vmatprep.subr.bf16.mxu0 0
      %709 = vmatpush1.bf16.msra.mxu0 %v663
      %710 = vmatprep.subr.bf16.mxu0 0
      %711 = vmatpush1.bf16.msra.mxu0 %v664
      %712 = vmatprep.subr.bf16.mxu0 0
      %713 = vmatpush1.bf16.msra.mxu0 %v665
      %714 = vmatprep.mubr.bf16.mxu0 %v546
      %715 = vmatmul.mubr.bf16.gmra.mrb[0].mxu0 %v545
      %v716 = vpop.f32.mrb[0].mxu0
      %v717 = vadd.f32 %v584, %v716
      %v718 = vpop.f32.mrb[0].mxu0
      %v719 = vpop.f32.mrb[0].mxu0
      %v720 = vadd.f32 %v584, %v719
      %v721 = vpop.f32.mrb[0].mxu0
      %722 = vdwg.mxu0
      %v723 = vunpack.c.l.bf16 %v382
      %v724 = vunpack.c.l.bf16 %v383
      %v725 = vadd.f32 %v723, %v717
      %v726 = vadd.f32 %v724, %v720
      %v727 = vld [vmem:[%s5] sm:$0x1]
      %v728 = vld [vmem:[%s6] sm:$0x1]
      %729 = vadd.xlane.f32.xlu0 %v725
      %v730 = vpop.xlane.xlu0 %729
      %731 = vadd.xlane.f32.xlu0 %v726
      %v732 = vpop.xlane.xlu0 %731
      %v733 = vrcp.pop 128.0
      %v734 = vmul.f32 %v730, %v733
      %v735 = vmul.f32 %v732, %v733
      %v736 = vsub.f32 %v725, %v734
      %v737 = vsub.f32 %v726, %v735
      %v738 = vmul.f32 %v736, %v736
      %v739 = vmul.f32 %v737, %v737
      %740 = vadd.xlane.f32.xlu0 %v738
      %v741 = vpop.xlane.xlu0 %740
      %742 = vadd.xlane.f32.xlu0 %v739
      %v743 = vpop.xlane.xlu0 %742
      %v744 = vmul.f32 %v741, %v733
      %v745 = vmul.f32 %v743, %v733
      %v746 = vadd.f32 %v744, 1e-05
      %v747 = vadd.f32 %v745, 1e-05
      %v748 = vrsqrt.pop %v746
      %v749 = vrsqrt.pop %v747
      %v750 = vmul.f32 %v736, %v748
      %v751 = vmul.f32 %v737, %v749
      %v753 = vlaneseq
      %v754 = vshrl.u32 %v753, 7
      %v755 = vsub.s32 0, %v754
      %v756 = vrot.slane %v727, %v755
      %v758 = vmul.f32 %v750, %v756
      %v759 = vmul.f32 %v751, %v756
      %v761 = vlaneseq
      %v762 = vshrl.u32 %v761, 7
      %v763 = vsub.s32 0, %v762
      %v764 = vrot.slane %v728, %v763
      %v766 = vadd.f32 %v758, %v764
      %v767 = vadd.f32 %v759, %v764
      %v768 = vld [vmem:[%s369] sm:$0xff]
      %v769 = vld [vmem:[%s369 + $0x8] sm:$0xff]
      %771 = vset.pattern.permute.xlu0 0
      %772 = vperm.xlu0 %771, %v768
      %v773 = vpop.permute.xlu0 %772
      %776 = vset.pattern.permute.xlu0 0
      %777 = vperm.xlu0 %776, %v769
      %v778 = vpop.permute.xlu0 %777
      %v780 = vmul.f32 %v766, %v773
      %v781 = vmul.f32 %v767, %v778
      %v782 = vpack.c.bf16 %v781, %v780
      %v784 = vunpack.c.l.b16 %v782
      %v785 = vunpack.c.h.b16 %v782
      %v786 = vpack.c.b16 %v784, %v784
      %v787 = vpack.c.b16 %v785, %v785
      %790 = vst [vmem:[%s379] sm:$0xf] %v786
      %791 = vst [vmem:[%s379 + $0x4] sm:$0xf] %v787
      %s792 = smul.u32 2, %s24
      %p793 = scmp.lt.s32.totalorder %s23, 1
      %s794 = scalar_select %p793, %s23, 1
      %p795 = scmp.lt.s32.totalorder %s792, 3
      %s796 = scalar_select %p795, %s792, 3
      %s797 = smul.addr %s794, 4
      %s798 = sadd.s32 %s796, %s797
      %s799 = smul.addr %s798, 4
      %s800 = scalar_lea.vmem %s8, %s799
      // Predicated region
      $region53: #{transformer_decoder.9} parent=51 // pred_check
        %p801 = pneg %p233
      $region54: #{transformer_decoder.9} parent=51 // pred_check_branch
        %803 = sbr.rel (%p801) target = $region56
      $region55: #{transformer_decoder.9} parent=51 // pred_region
        %s804 = smul.u32 2, %s24
      $region56: #{transformer_decoder.9} parent=51 // pred_fallthru
        _
    $region52: #{transformer_decoder.9} parent=5 // pred_fallthru
      _
    %p805 = scmp.le.s32.totalorder 2, %s14
    // Predicated region
    $region57: #{transformer_decoder.9} parent=5 // pred_check
      %p806 = pneg %p805
    $region58: #{transformer_decoder.9} parent=5 // pred_check_branch
      %808 = sbr.rel (%p806) target = $region60
    $region59: #{transformer_decoder.9} parent=5 // pred_region
      %s809 = ssub.s32 %s14, 2
      // Predicated region
      $region61: #{transformer_decoder.9} parent=59 // pred_check
        %p810 = pneg %p239
      $region62: #{transformer_decoder.9} parent=59 // pred_check_branch
        %812 = sbr.rel (%p810) target = $region64
      $region63: #{transformer_decoder.9} parent=59 // pred_region
        %s813 = smul.u32 2, %s26
        %p814 = scmp.lt.s32.totalorder %s25, 1
        %s815 = scalar_select %p814, %s25, 1
        %p816 = scmp.lt.s32.totalorder %s813, 3
        %s817 = scalar_select %p816, %s813, 3
        %s818 = smul.addr %s815, 4
        %s819 = sadd.s32 %s817, %s818
        %s820 = smul.addr %s819, 4
        %s821 = scalar_lea.vmem %s8, %s820
      $region64: #{transformer_decoder.9} parent=59 // pred_fallthru
        _
    $region60: #{transformer_decoder.9} parent=5 // pred_fallthru
      _
  $region6: #{transformer_decoder.9} parent=0 // loop_footer
    %s18 = sadd.s32 1, %s14
  $region7: #{transformer_decoder.9} parent=0 // loop_footer_branch
    %13 = sbr.rel target = $region3
  $region8: #{transformer_decoder.9} parent=0 // loop_exit
    _

// kernel: transformer_decoder.13
$region0: #{transformer_decoder.13}
  #allocation0 [shape = 'u32[]', space=smem, size = 0x4, offset = 0x4, fixed_abs, tag = 'smem constant byte address 0x4 - core index']
  #allocation1 [shape = 'u32[144,128]{1,0:T(1,128)}', space=vmem, size = 0x12000, scoped, tag = 'internal scratch']
  %s0 = inlined_call_operand.vmem [shape: bf16[2,32,128], index: 0, kind: input, shape index: {}]
  %s1 = inlined_call_operand.vmem [shape: bf16[128,512], index: 1, kind: input, shape index: {}]
  %s2 = inlined_call_operand.hbm [shape: f32[2,32,512], index: 2, kind: output, shape index: {}]
  %s3 = sld [smem:[#allocation0]]
  $region41: #{transformer_decoder.13} parent=0
    _
  %s5 = ssub.s32 1, %s3
  %s6 = scalar_select 0, %s5, %s3
  $region1: #{transformer_decoder.13} parent=0
    #allocation2 [shape = 'u8[65536]{0}', space=vmem, size = 0x10000, scoped, tag = 'output window, operand 0']
    #allocation3 [shape = 's32[2]{0}', space=sflag, size = 0x8, scoped, tag = 'scoped memory for transformer_decoder.13']
    %7 = vsyncpa [#allocation3], 0
    %s8 = scalar_lea.sflag [#allocation3], 1
    %9 = vsyncpa %s8, 0
    loop: start=0, step=1, limit=6
    $region2: #{transformer_decoder.13} parent=1 // loop_pre_header
      _
    $region3: #{transformer_decoder.13} parent=1 // loop_header
      %s11 = sphi 0, %s15
      %p12 = scmp.ge.s32.totalorder %s11, 6
      %s18 = sphi 0, %s30
      %s19 = sphi 0, %s26
      %s20 = sphi 0, %s18
      %s21 = sphi 0, %s19
      %s22 = sphi 0, %s20
      %s23 = sphi 0, %s21
      %s35 = sphi 0, %s37
      %s38 = sphi 0, %s35
      %s39 = sphi 0, %s38
      %s55 = sphi 0, %s39
      %s59 = sphi 0, %s59
      %s61 = sphi 0, %s59
      %s62 = sphi 0, %s61
      %s76 = sphi 0, %s62
      %s84 = sphi 0, %s86
      %s87 = sphi 0, %s84
      %s88 = sphi 0, %s87
      %s104 = sphi 0, %s88
    $region4: #{transformer_decoder.13} parent=1 // loop_header_branch
      %14 = sbr.rel (%p12) target = $region8
    $region5: #{transformer_decoder.13} parent=1 // loop_body
      %s16 = ssub.s32 %s11, 1
      %s17 = ssub.s32 %s11, 2
      %s24 = sadd.s32 1, %s19
      %p25 = scmp.ge.s32.totalorder %s24, 2
      %s26 = scalar_select %p25, 0, %s24
      %s27 = sadd.s32 1, %s18
      %s28 = scalar_select %p25, %s27, %s18
      %p29 = scmp.ge.s32.totalorder %s28, 2
      %s30 = scalar_select %p29, 0, %s28
      %s31 = ssub.s32 %s18, %s30
      %s32 = ssub.s32 %s19, %s26
      %s33 = sor.u32 %s31, %s32
      %p34 = scmp.eq.s32.totalorder %s33, 0
      %s36 = sadd.s32 %s35, 1
      %s37 = scalar_select %p34, %s35, %s36
      %p40 = pneg %p34
      %p41 = scmp.eq.s32.totalorder %s11, 3
      %p42 = por %p40, %p41
      %p43 = scmp.ne.s32.totalorder %s35, %s38
      %p44 = scmp.eq.s32.totalorder %s11, 0
      %p45 = por %p43, %p44
      %p46 = scmp.ne.s32.totalorder %s35, %s38
      %p47 = scmp.eq.s32.totalorder %s16, 3
      %p48 = por %p46, %p47
      %p49 = scmp.ne.s32.totalorder %s38, %s39
      %p50 = scmp.eq.s32.totalorder %s16, 0
      %p51 = por %p49, %p50
      %p52 = scmp.ne.s32.totalorder %s38, %s39
      %p53 = scmp.eq.s32.totalorder %s17, 3
      %p54 = por %p52, %p53
      %p56 = scmp.ne.s32.totalorder %s39, %s55
      %p57 = scmp.eq.s32.totalorder %s17, 0
      %p58 = por %p56, %p57
      %s60 = sadd.s32 %s59, 1
      %p63 = scmp.eq.s32.totalorder %s11, 3
      %p64 = scmp.ne.s32.totalorder %s59, %s61
      %p65 = scmp.eq.s32.totalorder %s11, 0
      %p66 = por %p64, %p65
      %p67 = scmp.ne.s32.totalorder %s59, %s61
      %p68 = scmp.eq.s32.totalorder %s16, 3
      %p69 = por %p67, %p68
      %p70 = scmp.ne.s32.totalorder %s61, %s62
      %p71 = scmp.eq.s32.totalorder %s16, 0
      %p72 = por %p70, %p71
      %p73 = scmp.ne.s32.totalorder %s61, %s62
      %p74 = scmp.eq.s32.totalorder %s17, 3
      %p75 = por %p73, %p74
      %p77 = scmp.ne.s32.totalorder %s62, %s76
      %p78 = scmp.eq.s32.totalorder %s17, 0
      %p79 = por %p77, %p78
      %s80 = ssub.s32 %s18, %s30
      %s81 = ssub.s32 %s19, %s26
      %s82 = sor.u32 %s80, %s81
      %p83 = scmp.eq.s32.totalorder %s82, 0
      %s85 = sadd.s32 %s84, 1
      %s86 = scalar_select %p83, %s84, %s85
      %p89 = pneg %p83
      %p90 = scmp.eq.s32.totalorder %s11, 3
      %p91 = por %p89, %p90
      %p92 = scmp.ne.s32.totalorder %s84, %s87
      %p93 = scmp.eq.s32.totalorder %s11, 0
      %p94 = por %p92, %p93
      %p95 = scmp.ne.s32.totalorder %s84, %s87
      %p96 = scmp.eq.s32.totalorder %s16, 3
      %p97 = por %p95, %p96
      %p98 = scmp.ne.s32.totalorder %s87, %s88
      %p99 = scmp.eq.s32.totalorder %s16, 0
      %p100 = por %p98, %p99
      %p101 = scmp.ne.s32.totalorder %s87, %s88
      %p102 = scmp.eq.s32.totalorder %s17, 3
      %p103 = por %p101, %p102
      %p105 = scmp.ne.s32.totalorder %s88, %s104
      %p106 = scmp.eq.s32.totalorder %s17, 0
      %p107 = por %p105, %p106
      %p108 = scmp.le.s32.totalorder 1, %s11
      %p109 = scmp.lt.s32.totalorder %s11, 5
      %p110 = pnand %p108, %p109
      %p111 = pneg %p110
      // Predicated region
      $region9: #{transformer_decoder.13} parent=5 // pred_check
        _
      $region10: #{transformer_decoder.13} parent=5 // pred_check_branch
        %113 = sbr.rel (%p110) target = $region12
      $region11: #{transformer_decoder.13} parent=5 // pred_region
        %s114 = ssub.s32 %s11, 1
        // Predicated region
        $region13: #{transformer_decoder.13} parent=11 // pred_check
          %p115 = pneg %p72
        $region14: #{transformer_decoder.13} parent=11 // pred_check_branch
          %117 = sbr.rel (%p115) target = $region16
        $region15: #{transformer_decoder.13} parent=11 // pred_region
          _
        $region16: #{transformer_decoder.13} parent=11 // pred_fallthru
          _
      $region12: #{transformer_decoder.13} parent=5 // pred_fallthru
        _
      %p118 = scmp.lt.s32.totalorder %s11, 4
      // Predicated region
      $region17: #{transformer_decoder.13} parent=5 // pred_check
        %p119 = pneg %p118
      $region18: #{transformer_decoder.13} parent=5 // pred_check_branch
        %121 = sbr.rel (%p119) target = $region20
      $region19: #{transformer_decoder.13} parent=5 // pred_region
        // Predicated region
        $region21: #{transformer_decoder.13} parent=19 // pred_check
          %p122 = pneg %p45
        $region22: #{transformer_decoder.13} parent=19 // pred_check_branch
          %124 = sbr.rel (%p122) target = $region24
        $region23: #{transformer_decoder.13} parent=19 // pred_region
          %s125 = smul.u32 2, %s19
          %p126 = scmp.lt.s32.totalorder %s18, 1
          %s127 = scalar_select %p126, %s18, 1
          %p128 = scmp.lt.s32.totalorder %s125, 3
          %s129 = scalar_select %p128, %s125, 3
          %s130 = smul.addr %s127, 4
          %s131 = sadd.s32 %s129, %s130
          %s132 = smul.addr %s131, 4
          %s133 = scalar_lea.vmem %s0, %s132
          %s134 = smul.u32 2, %s19
        $region24: #{transformer_decoder.13} parent=19 // pred_fallthru
          _
      $region20: #{transformer_decoder.13} parent=5 // pred_fallthru
        _
      %p135 = scmp.le.s32.totalorder 1, %s11
      %p136 = scmp.lt.s32.totalorder %s11, 5
      %p137 = pnand %p135, %p136
      %p138 = pneg %p137
      // Predicated region
      $region25: #{transformer_decoder.13} parent=5 // pred_check
        _
      $region26: #{transformer_decoder.13} parent=5 // pred_check_branch
        %140 = sbr.rel (%p137) target = $region28
      $region27: #{transformer_decoder.13} parent=5 // pred_region
        %s141 = ssub.s32 %s11, 1
        %s142 = smul.u32 2, %s21
        %p143 = scmp.lt.s32.totalorder %s20, 1
        %s144 = scalar_select %p143, %s20, 1
        %p145 = scmp.lt.s32.totalorder %s142, 3
        %s146 = scalar_select %p145, %s142, 3
        %s147 = smul.addr %s144, 4
        %s148 = sadd.s32 %s146, %s147
        %s149 = smul.addr %s148, 4
        %s150 = scalar_lea.vmem %s0, %s149
        %p151 = pneg %p51
        %p152 = pneg %p48
        %p153 = pneg %p72
        %p154 = pneg %p69
        %p155 = pneg %p100
        %p156 = pneg %p97
        %s157 = sand.u32 %s87, 1
        %s158 = scalar_lea.sflag [#allocation3], %s157
        %s159 = sand.u32 %s87, 1
        %s160 = smul.addr %s159, 64
        %s161 = scalar_lea.vmem [#allocation2], %s160
        %s162 = smul.u32 2, %s21
        %p163 = scmp.lt.s32.totalorder %s20, 1
        %s164 = scalar_select %p163, %s20, 1
        %p165 = scmp.lt.s32.totalorder %s162, 3
        %s166 = scalar_select %p165, %s162, 3
        %s167 = smul.addr %s164, 4
        %s168 = sadd.s32 %s166, %s167
        %s169 = smul.addr %s168, 4
        %s170 = scalar_lea.vmem %s0, %s169
        %s171 = smul.u32 2, %s21
        %s172 = smul.u32 2, %s21
        %v174 = vld [vmem:[%s170] sm:$0xf]
        %v175 = vld [vmem:[%s170 + $0x4] sm:$0xf]
        %v176 = vld [vmem:[%s1] sm:$0xff]
        %v177 = vld [vmem:[%s1 + $0x8] sm:$0xff]
        %v178 = vld [vmem:[%s1 + $0x10] sm:$0xff]
        %v179 = vld [vmem:[%s1 + $0x18] sm:$0xff]
        %v180 = vld [vmem:[%s1 + $0x20] sm:$0xff]
        %v181 = vld [vmem:[%s1 + $0x28] sm:$0xff]
        %v182 = vld [vmem:[%s1 + $0x30] sm:$0xff]
        %v183 = vld [vmem:[%s1 + $0x38] sm:$0xff]
        %v184 = vld [vmem:[%s1 + $0x40] sm:$0xff]
        %v185 = vld [vmem:[%s1 + $0x48] sm:$0xff]
        %v186 = vld [vmem:[%s1 + $0x50] sm:$0xff]
        %v187 = vld [vmem:[%s1 + $0x58] sm:$0xff]
        %v188 = vld [vmem:[%s1 + $0x60] sm:$0xff]
        %v189 = vld [vmem:[%s1 + $0x68] sm:$0xff]
        %v190 = vld [vmem:[%s1 + $0x70] sm:$0xff]
        %v191 = vld [vmem:[%s1 + $0x78] sm:$0xff]
        %v192 = vld [vmem:[%s1 + $0x80] sm:$0xff]
        %v193 = vld [vmem:[%s1 + $0x88] sm:$0xff]
        %v194 = vld [vmem:[%s1 + $0x90] sm:$0xff]
        %v195 = vld [vmem:[%s1 + $0x98] sm:$0xff]
        %v196 = vld [vmem:[%s1 + $0xa0] sm:$0xff]
        %v197 = vld [vmem:[%s1 + $0xa8] sm:$0xff]
        %v198 = vld [vmem:[%s1 + $0xb0] sm:$0xff]
        %v199 = vld [vmem:[%s1 + $0xb8] sm:$0xff]
        %v200 = vld [vmem:[%s1 + $0xc0] sm:$0xff]
        %v201 = vld [vmem:[%s1 + $0xc8] sm:$0xff]
        %v202 = vld [vmem:[%s1 + $0xd0] sm:$0xff]
        %v203 = vld [vmem:[%s1 + $0xd8] sm:$0xff]
        %v204 = vld [vmem:[%s1 + $0xe0] sm:$0xff]
        %v205 = vld [vmem:[%s1 + $0xe8] sm:$0xff]
        %v206 = vld [vmem:[%s1 + $0xf0] sm:$0xff]
        %v207 = vld [vmem:[%s1 + $0xf8] sm:$0xff]
        %v210 = vunpack.c.l.b16 %v174
        %v211 = vunpack.c.l.b16 %v175
        %v212 = vpack.c.b16 %v211, %v210
        %v246 = vunpack.c.l.b16 %v176
        %v247 = vunpack.c.h.b16 %v176
        %v248 = vunpack.c.l.b16 %v177
        %v249 = vunpack.c.h.b16 %v177
        %v250 = vunpack.c.l.b16 %v178
        %v251 = vunpack.c.h.b16 %v178
        %v252 = vunpack.c.l.b16 %v179
        %v253 = vunpack.c.h.b16 %v179
        %v254 = vunpack.c.l.b16 %v180
        %v255 = vunpack.c.h.b16 %v180
        %v256 = vunpack.c.l.b16 %v181
        %v257 = vunpack.c.h.b16 %v181
        %v258 = vunpack.c.l.b16 %v182
        %v259 = vunpack.c.h.b16 %v182
        %v260 = vunpack.c.l.b16 %v183
        %v261 = vunpack.c.h.b16 %v183
        %v262 = vunpack.c.l.b16 %v184
        %v263 = vunpack.c.h.b16 %v184
        %v264 = vunpack.c.l.b16 %v185
        %v265 = vunpack.c.h.b16 %v185
        %v266 = vunpack.c.l.b16 %v186
        %v267 = vunpack.c.h.b16 %v186
        %v268 = vunpack.c.l.b16 %v187
        %v269 = vunpack.c.h.b16 %v187
        %v270 = vunpack.c.l.b16 %v188
        %v271 = vunpack.c.h.b16 %v188
        %v272 = vunpack.c.l.b16 %v189
        %v273 = vunpack.c.h.b16 %v189
        %v274 = vunpack.c.l.b16 %v190
        %v275 = vunpack.c.h.b16 %v190
        %v276 = vunpack.c.l.b16 %v191
        %v277 = vunpack.c.h.b16 %v191
        %v278 = vunpack.c.l.b16 %v192
        %v279 = vunpack.c.h.b16 %v192
        %v280 = vunpack.c.l.b16 %v193
        %v281 = vunpack.c.h.b16 %v193
        %v282 = vunpack.c.l.b16 %v194
        %v283 = vunpack.c.h.b16 %v194
        %v284 = vunpack.c.l.b16 %v195
        %v285 = vunpack.c.h.b16 %v195
        %v286 = vunpack.c.l.b16 %v196
        %v287 = vunpack.c.h.b16 %v196
        %v288 = vunpack.c.l.b16 %v197
        %v289 = vunpack.c.h.b16 %v197
        %v290 = vunpack.c.l.b16 %v198
        %v291 = vunpack.c.h.b16 %v198
        %v292 = vunpack.c.l.b16 %v199
        %v293 = vunpack.c.h.b16 %v199
        %v294 = vunpack.c.l.b16 %v200
        %v295 = vunpack.c.h.b16 %v200
        %v296 = vunpack.c.l.b16 %v201
        %v297 = vunpack.c.h.b16 %v201
        %v298 = vunpack.c.l.b16 %v202
        %v299 = vunpack.c.h.b16 %v202
        %v300 = vunpack.c.l.b16 %v203
        %v301 = vunpack.c.h.b16 %v203
        %v302 = vunpack.c.l.b16 %v204
        %v303 = vunpack.c.h.b16 %v204
        %v304 = vunpack.c.l.b16 %v205
        %v305 = vunpack.c.h.b16 %v205
        %v306 = vunpack.c.l.b16 %v206
        %v307 = vunpack.c.h.b16 %v206
        %v308 = vunpack.c.l.b16 %v207
        %v309 = vunpack.c.h.b16 %v207
        %v310 = vpack.c.b16 %v250, %v246
        %v311 = vpack.c.b16 %v251, %v247
        %v312 = vpack.c.b16 %v252, %v248
        %v313 = vpack.c.b16 %v253, %v249
        %v314 = vpack.c.b16 %v258, %v254
        %v315 = vpack.c.b16 %v259, %v255
        %v316 = vpack.c.b16 %v260, %v256
        %v317 = vpack.c.b16 %v261, %v257
        %v318 = vpack.c.b16 %v266, %v262
        %v319 = vpack.c.b16 %v267, %v263
        %v320 = vpack.c.b16 %v268, %v264
        %v321 = vpack.c.b16 %v269, %v265
        %v322 = vpack.c.b16 %v274, %v270
        %v323 = vpack.c.b16 %v275, %v271
        %v324 = vpack.c.b16 %v276, %v272
        %v325 = vpack.c.b16 %v277, %v273
        %v326 = vpack.c.b16 %v282, %v278
        %v327 = vpack.c.b16 %v283, %v279
        %v328 = vpack.c.b16 %v284, %v280
        %v329 = vpack.c.b16 %v285, %v281
        %v330 = vpack.c.b16 %v290, %v286
        %v331 = vpack.c.b16 %v291, %v287
        %v332 = vpack.c.b16 %v292, %v288
        %v333 = vpack.c.b16 %v293, %v289
        %v334 = vpack.c.b16 %v298, %v294
        %v335 = vpack.c.b16 %v299, %v295
        %v336 = vpack.c.b16 %v300, %v296
        %v337 = vpack.c.b16 %v301, %v297
        %v338 = vpack.c.b16 %v306, %v302
        %v339 = vpack.c.b16 %v307, %v303
        %v340 = vpack.c.b16 %v308, %v304
        %v341 = vpack.c.b16 %v309, %v305
        %374 = vmatprep.subr.bf16.mxu0 %v311
        %375 = vmatpush1.bf16.msra.mxu0 %v310
        %376 = vmatprep.subr.bf16.mxu0 %v315
        %377 = vmatpush1.bf16.msra.mxu0 %v314
        %378 = vmatprep.subr.bf16.mxu0 %v319
        %379 = vmatpush1.bf16.msra.mxu0 %v318
        %380 = vmatprep.subr.bf16.mxu0 %v323
        %381 = vmatpush1.bf16.msra.mxu0 %v322
        %382 = vmatprep.subr.bf16.mxu0 %v327
        %383 = vmatpush1.bf16.msra.mxu0 %v326
        %384 = vmatprep.subr.bf16.mxu0 %v331
        %385 = vmatpush1.bf16.msra.mxu0 %v330
        %386 = vmatprep.subr.bf16.mxu0 %v335
        %387 = vmatpush1.bf16.msra.mxu0 %v334
        %388 = vmatprep.subr.bf16.mxu0 %v339
        %389 = vmatpush1.bf16.msra.mxu0 %v338
        %390 = vmatprep.subr.bf16.mxu0 0
        %391 = vmatpush1.bf16.msra.mxu0 0
        %392 = vmatprep.subr.bf16.mxu0 0
        %393 = vmatpush1.bf16.msra.mxu0 0
        %394 = vmatprep.subr.bf16.mxu0 0
        %395 = vmatpush1.bf16.msra.mxu0 0
        %396 = vmatprep.subr.bf16.mxu0 0
        %397 = vmatpush1.bf16.msra.mxu0 0
        %398 = vmatprep.subr.bf16.mxu0 0
        %399 = vmatpush1.bf16.msra.mxu0 0
        %400 = vmatprep.subr.bf16.mxu0 0
        %401 = vmatpush1.bf16.msra.mxu0 0
        %402 = vmatprep.subr.bf16.mxu0 0
        %403 = vmatpush1.bf16.msra.mxu0 0
        %404 = vmatprep.subr.bf16.mxu0 0
        %405 = vmatpush1.bf16.msra.mxu0 0
        %406 = vmatprep.mubr.bf16.mxu0 0
        %407 = vmatmul.mubr.bf16.gmra.mrb[0].mxu0 %v212
        %v408 = vpop.f32.mrb[0].mxu0
        %v409 = vadd.f32 0.0, %v408
        %v410 = vpop.f32.mrb[0].mxu0
        %v411 = vadd.f32 0.0, %v410
        %v412 = vpop.f32.mrb[0].mxu0
        %v413 = vadd.f32 0.0, %v412
        %v414 = vpop.f32.mrb[0].mxu0
        %v415 = vadd.f32 0.0, %v414
        %416 = vdwg.mxu0
        %417 = vmatprep.subr.bf16.mxu0 %v313
        %418 = vmatpush1.bf16.msra.mxu0 %v312
        %419 = vmatprep.subr.bf16.mxu0 %v317
        %420 = vmatpush1.bf16.msra.mxu0 %v316
        %421 = vmatprep.subr.bf16.mxu0 %v321
        %422 = vmatpush1.bf16.msra.mxu0 %v320
        %423 = vmatprep.subr.bf16.mxu0 %v325
        %424 = vmatpush1.bf16.msra.mxu0 %v324
        %425 = vmatprep.subr.bf16.mxu0 %v329
        %426 = vmatpush1.bf16.msra.mxu0 %v328
        %427 = vmatprep.subr.bf16.mxu0 %v333
        %428 = vmatpush1.bf16.msra.mxu0 %v332
        %429 = vmatprep.subr.bf16.mxu0 %v337
        %430 = vmatpush1.bf16.msra.mxu0 %v336
        %431 = vmatprep.subr.bf16.mxu0 %v341
        %432 = vmatpush1.bf16.msra.mxu0 %v340
        %433 = vmatprep.subr.bf16.mxu0 0
        %434 = vmatpush1.bf16.msra.mxu0 0
        %435 = vmatprep.subr.bf16.mxu0 0
        %436 = vmatpush1.bf16.msra.mxu0 0
        %437 = vmatprep.subr.bf16.mxu0 0
        %438 = vmatpush1.bf16.msra.mxu0 0
        %439 = vmatprep.subr.bf16.mxu0 0
        %440 = vmatpush1.bf16.msra.mxu0 0
        %441 = vmatprep.subr.bf16.mxu0 0
        %442 = vmatpush1.bf16.msra.mxu0 0
        %443 = vmatprep.subr.bf16.mxu0 0
        %444 = vmatpush1.bf16.msra.mxu0 0
        %445 = vmatprep.subr.bf16.mxu0 0
        %446 = vmatpush1.bf16.msra.mxu0 0
        %447 = vmatprep.subr.bf16.mxu0 0
        %448 = vmatpush1.bf16.msra.mxu0 0
        %449 = vmatprep.mubr.bf16.mxu0 0
        %450 = vmatmul.mubr.bf16.gmra.mrb[0].mxu0 %v212
        %v451 = vpop.f32.mrb[0].mxu0
        %v452 = vadd.f32 0.0, %v451
        %v453 = vpop.f32.mrb[0].mxu0
        %v454 = vadd.f32 0.0, %v453
        %v455 = vpop.f32.mrb[0].mxu0
        %v456 = vadd.f32 0.0, %v455
        %v457 = vpop.f32.mrb[0].mxu0
        %v458 = vadd.f32 0.0, %v457
        %459 = vdwg.mxu0
        %v460 = vmax.f32 %v409, %v452
        %v461 = vmax.f32 %v411, %v454
        %v462 = vmax.f32 %v460, %v461
        %463 = vmax.xlane.f32.xlu0 %v462
        %v464 = vpop.xlane.xlu0 %463
        %v465 = vmax.f32 %v413, %v456
        %v466 = vmax.f32 %v415, %v458
        %v467 = vmax.f32 %v465, %v466
        %468 = vmax.xlane.f32.xlu0 %v467
        %v469 = vpop.xlane.xlu0 %468
        %v470 = vsub.f32 %v409, %v464
        %v471 = vsub.f32 %v411, %v464
        %v472 = vsub.f32 %v452, %v464
        %v473 = vsub.f32 %v454, %v464
        %v474 = vsub.f32 %v413, %v469
        %v475 = vsub.f32 %v415, %v469
        %v476 = vsub.f32 %v456, %v469
        %v477 = vsub.f32 %v458, %v469
        %v478 = vmul.f32 %v470, 1.442695
        %v479 = vpow.pop %v478
        %v480 = vmul.f32 %v471, 1.442695
        %v481 = vpow.pop %v480
        %v482 = vmul.f32 %v472, 1.442695
        %v483 = vpow.pop %v482
        %v484 = vmul.f32 %v473, 1.442695
        %v485 = vpow.pop %v484
        %v486 = vmul.f32 %v474, 1.442695
        %v487 = vpow.pop %v486
        %v488 = vmul.f32 %v475, 1.442695
        %v489 = vpow.pop %v488
        %v490 = vmul.f32 %v476, 1.442695
        %v491 = vpow.pop %v490
        %v492 = vmul.f32 %v477, 1.442695
        %v493 = vpow.pop %v492
        %v494 = vadd.f32 %v479, %v481
        %v495 = vadd.f32 %v494, %v483
        %v496 = vadd.f32 %v495, %v485
        %497 = vadd.xlane.f32.xlu0 %v496
        %v498 = vpop.xlane.xlu0 %497
        %v499 = vadd.f32 %v487, %v489
        %v500 = vadd.f32 %v499, %v491
        %v501 = vadd.f32 %v500, %v493
        %502 = vadd.xlane.f32.xlu0 %v501
        %v503 = vpop.xlane.xlu0 %502
        %v504 = vlog2.pop %v498
        %v505 = vmul.f32 %v504, 0.6931472
        %v506 = vlog2.pop %v503
        %v507 = vmul.f32 %v506, 0.6931472
        %v508 = vsub.f32 %v470, %v505
        %v509 = vsub.f32 %v471, %v505
        %v510 = vsub.f32 %v472, %v505
        %v511 = vsub.f32 %v473, %v505
        %v512 = vsub.f32 %v474, %v507
        %v513 = vsub.f32 %v475, %v507
        %v514 = vsub.f32 %v476, %v507
        %v515 = vsub.f32 %v477, %v507
        %516 = vst [vmem:[%s161] sm:$0xff] %v508
        %517 = vst [vmem:[%s161 + $0x8] sm:$0xff] %v509
        %518 = vst [vmem:[%s161 + $0x10] sm:$0xff] %v510
        %519 = vst [vmem:[%s161 + $0x18] sm:$0xff] %v511
        %520 = vst [vmem:[%s161 + $0x20] sm:$0xff] %v512
        %521 = vst [vmem:[%s161 + $0x28] sm:$0xff] %v513
        %522 = vst [vmem:[%s161 + $0x30] sm:$0xff] %v514
        %523 = vst [vmem:[%s161 + $0x38] sm:$0xff] %v515
        %s524 = sand.u32 %s87, 1
        %s525 = scalar_lea.sflag [#allocation3], %s524
        %s526 = sand.u32 %s87, 1
        %s527 = smul.addr %s526, 64
        %s528 = scalar_lea.vmem [#allocation2], %s527
        // Predicated region
        $region29: #{transformer_decoder.13} parent=27 // pred_check
          %p529 = pneg %p97
        $region30: #{transformer_decoder.13} parent=27 // pred_check_branch
          %531 = sbr.rel (%p529) target = $region32
        $region31: #{transformer_decoder.13} parent=27 // pred_region
          %s532 = smul.u32 2, %s21
          %s534 = ssub.s32 1024, 1024
          %535 = vsyncadd %s525, %s534
          %s536 = smul.addr %s532, 4
          %s537 = smul.addr %s20, 16
          %s538 = sadd.s32 %s536, %s537
          %s539 = smul.addr %s538, 128
          %s540 = scalar_lea.hbm %s2, %s539
          %s541 = sshll.u32 %s528, 4
          %s542 = int_to_ptr.vmem [resolvable:$true] %s541
          %547 = dma.vmem_to_hbm [thread:$0]  %s542, 1024, %s540, %s525, 512, 512, 32
        $region32: #{transformer_decoder.13} parent=27 // pred_fallthru
          _
      $region28: #{transformer_decoder.13} parent=5 // pred_fallthru
        _
      %p548 = scmp.le.s32.totalorder 2, %s11
      // Predicated region
      $region33: #{transformer_decoder.13} parent=5 // pred_check
        %p549 = pneg %p548
      $region34: #{transformer_decoder.13} parent=5 // pred_check_branch
        %551 = sbr.rel (%p549) target = $region36
      $region35: #{transformer_decoder.13} parent=5 // pred_region
        %s552 = ssub.s32 %s11, 2
        // Predicated region
        $region37: #{transformer_decoder.13} parent=35 // pred_check
          %p553 = pneg %p103
        $region38: #{transformer_decoder.13} parent=35 // pred_check_branch
          %555 = sbr.rel (%p553) target = $region40
        $region39: #{transformer_decoder.13} parent=35 // pred_region
          %s556 = sand.u32 %s88, 1
          %s557 = scalar_lea.sflag [#allocation3], %s556
          %s558 = sand.u32 %s88, 1
          %s559 = smul.addr %s558, 64
          %s560 = scalar_lea.vmem [#allocation2], %s559
          %561 = dma.done %s557, 1024
        $region40: #{transformer_decoder.13} parent=35 // pred_fallthru
          _
      $region36: #{transformer_decoder.13} parent=5 // pred_fallthru
        _
    $region6: #{transformer_decoder.13} parent=1 // loop_footer
      %s15 = sadd.s32 1, %s11
    $region7: #{transformer_decoder.13} parent=1 // loop_footer_branch
      %10 = sbr.rel target = $region3
    $region8: #{transformer_decoder.13} parent=1 // loop_exit
      _
    %562 = vsyncpa [#allocation3], 1
    %s563 = scalar_lea.sflag [#allocation3], 1
    %564 = vsyncpa %s563, 1

// kernel: transformer_decoder.8
$region0: #{transformer_decoder.8}
  #allocation0 [shape = 'u32[]', space=smem, size = 0x4, offset = 0x4, fixed_abs, tag = 'smem constant byte address 0x4 - core index']
  #allocation1 [shape = 'u32[144,128]{1,0:T(1,128)}', space=vmem, size = 0x12000, scoped, tag = 'internal scratch']
  %s0 = inlined_call_operand.vmem [shape: bf16[2,32,128], index: 0, kind: input, shape index: {}]
  %s1 = inlined_call_operand.vmem [shape: bf16[2,16,128], index: 1, kind: input, shape index: {}]
  %s2 = inlined_call_operand.vmem [shape: bf16[128,128], index: 2, kind: input, shape index: {}]
  %s3 = inlined_call_operand.vmem [shape: f32[1,128], index: 3, kind: input, shape index: {}]
  %s4 = inlined_call_operand.vmem [shape: bf16[128,256], index: 4, kind: input, shape index: {}]
  %s5 = inlined_call_operand.vmem [shape: f32[1,256], index: 5, kind: input, shape index: {}]
  %s6 = inlined_call_operand.vmem [shape: bf16[128,128], index: 6, kind: input, shape index: {}]
  %s7 = inlined_call_operand.vmem [shape: f32[1,128], index: 7, kind: input, shape index: {}]
  %s8 = inlined_call_operand.vmem [shape: f32[1,128], index: 8, kind: input, shape index: {}]
  %s9 = inlined_call_operand.vmem [shape: f32[1,128], index: 9, kind: input, shape index: {}]
  %s10 = inlined_call_operand.vmem [shape: f32[2,32,1], index: 10, kind: input, shape index: {}]
  %s11 = inlined_call_operand.vmem [shape: bf16[2,32,128], index: 11, kind: output, shape index: {}]
  %s12 = sld [smem:[#allocation0]]
  $region77: #{transformer_decoder.8} parent=0
    _
  %s14 = ssub.s32 1, %s12
  %s15 = scalar_select 0, %s14, %s12
  loop: start=0, step=1, limit=6
  $region2: #{transformer_decoder.8} parent=0 // loop_pre_header
    _
  $region3: #{transformer_decoder.8} parent=0 // loop_header
    %s17 = sphi 0, %s21
    %p18 = scmp.ge.s32.totalorder %s17, 6
    %s24 = sphi 0, %s36
    %s25 = sphi 0, %s32
    %s26 = sphi 0, %s24
    %s27 = sphi 0, %s25
    %s28 = sphi 0, %s26
    %s29 = sphi 0, %s27
    %s41 = sphi 0, %s43
    %s44 = sphi 0, %s41
    %s45 = sphi 0, %s44
    %s61 = sphi 0, %s45
    %s67 = sphi 0, %s69
    %s70 = sphi 0, %s67
    %s71 = sphi 0, %s70
    %s87 = sphi 0, %s71
    %s91 = sphi 0, %s91
    %s93 = sphi 0, %s91
    %s94 = sphi 0, %s93
    %s108 = sphi 0, %s94
    %s112 = sphi 0, %s112
    %s114 = sphi 0, %s112
    %s115 = sphi 0, %s114
    %s129 = sphi 0, %s115
    %s133 = sphi 0, %s133
    %s135 = sphi 0, %s133
    %s136 = sphi 0, %s135
    %s150 = sphi 0, %s136
    %s154 = sphi 0, %s154
    %s156 = sphi 0, %s154
    %s157 = sphi 0, %s156
    %s171 = sphi 0, %s157
    %s175 = sphi 0, %s175
    %s177 = sphi 0, %s175
    %s178 = sphi 0, %s177
    %s192 = sphi 0, %s178
    %s196 = sphi 0, %s196
    %s198 = sphi 0, %s196
    %s199 = sphi 0, %s198
    %s213 = sphi 0, %s199
    %s217 = sphi 0, %s217
    %s219 = sphi 0, %s217
    %s220 = sphi 0, %s219
    %s234 = sphi 0, %s220
    %s238 = sphi 0, %s238
    %s240 = sphi 0, %s238
    %s241 = sphi 0, %s240
    %s255 = sphi 0, %s241
    %s263 = sphi 0, %s265
    %s266 = sphi 0, %s263
    %s267 = sphi 0, %s266
    %s283 = sphi 0, %s267
    %s291 = sphi 0, %s293
    %s294 = sphi 0, %s291
    %s295 = sphi 0, %s294
    %s311 = sphi 0, %s295
  $region4: #{transformer_decoder.8} parent=0 // loop_header_branch
    %20 = sbr.rel (%p18) target = $region8
  $region5: #{transformer_decoder.8} parent=0 // loop_body
    %s22 = ssub.s32 %s17, 1
    %s23 = ssub.s32 %s17, 2
    %s30 = sadd.s32 1, %s25
    %p31 = scmp.ge.s32.totalorder %s30, 2
    %s32 = scalar_select %p31, 0, %s30
    %s33 = sadd.s32 1, %s24
    %s34 = scalar_select %p31, %s33, %s24
    %p35 = scmp.ge.s32.totalorder %s34, 2
    %s36 = scalar_select %p35, 0, %s34
    %s37 = ssub.s32 %s24, %s36
    %s38 = ssub.s32 %s25, %s32
    %s39 = sor.u32 %s37, %s38
    %p40 = scmp.eq.s32.totalorder %s39, 0
    %s42 = sadd.s32 %s41, 1
    %s43 = scalar_select %p40, %s41, %s42
    %p46 = pneg %p40
    %p47 = scmp.eq.s32.totalorder %s17, 3
    %p48 = por %p46, %p47
    %p49 = scmp.ne.s32.totalorder %s41, %s44
    %p50 = scmp.eq.s32.totalorder %s17, 0
    %p51 = por %p49, %p50
    %p52 = scmp.ne.s32.totalorder %s41, %s44
    %p53 = scmp.eq.s32.totalorder %s22, 3
    %p54 = por %p52, %p53
    %p55 = scmp.ne.s32.totalorder %s44, %s45
    %p56 = scmp.eq.s32.totalorder %s22, 0
    %p57 = por %p55, %p56
    %p58 = scmp.ne.s32.totalorder %s44, %s45
    %p59 = scmp.eq.s32.totalorder %s23, 3
    %p60 = por %p58, %p59
    %p62 = scmp.ne.s32.totalorder %s45, %s61
    %p63 = scmp.eq.s32.totalorder %s23, 0
    %p64 = por %p62, %p63
    %s65 = ssub.s32 %s24, %s36
    %p66 = scmp.eq.s32.totalorder %s65, 0
    %s68 = sadd.s32 %s67, 1
    %s69 = scalar_select %p66, %s67, %s68
    %p72 = pneg %p66
    %p73 = scmp.eq.s32.totalorder %s17, 3
    %p74 = por %p72, %p73
    %p75 = scmp.ne.s32.totalorder %s67, %s70
    %p76 = scmp.eq.s32.totalorder %s17, 0
    %p77 = por %p75, %p76
    %p78 = scmp.ne.s32.totalorder %s67, %s70
    %p79 = scmp.eq.s32.totalorder %s22, 3
    %p80 = por %p78, %p79
    %p81 = scmp.ne.s32.totalorder %s70, %s71
    %p82 = scmp.eq.s32.totalorder %s22, 0
    %p83 = por %p81, %p82
    %p84 = scmp.ne.s32.totalorder %s70, %s71
    %p85 = scmp.eq.s32.totalorder %s23, 3
    %p86 = por %p84, %p85
    %p88 = scmp.ne.s32.totalorder %s71, %s87
    %p89 = scmp.eq.s32.totalorder %s23, 0
    %p90 = por %p88, %p89
    %s92 = sadd.s32 %s91, 1
    %p95 = scmp.eq.s32.totalorder %s17, 3
    %p96 = scmp.ne.s32.totalorder %s91, %s93
    %p97 = scmp.eq.s32.totalorder %s17, 0
    %p98 = por %p96, %p97
    %p99 = scmp.ne.s32.totalorder %s91, %s93
    %p100 = scmp.eq.s32.totalorder %s22, 3
    %p101 = por %p99, %p100
    %p102 = scmp.ne.s32.totalorder %s93, %s94
    %p103 = scmp.eq.s32.totalorder %s22, 0
    %p104 = por %p102, %p103
    %p105 = scmp.ne.s32.totalorder %s93, %s94
    %p106 = scmp.eq.s32.totalorder %s23, 3
    %p107 = por %p105, %p106
    %p109 = scmp.ne.s32.totalorder %s94, %s108
    %p110 = scmp.eq.s32.totalorder %s23, 0
    %p111 = por %p109, %p110
    %s113 = sadd.s32 %s112, 1
    %p116 = scmp.eq.s32.totalorder %s17, 3
    %p117 = scmp.ne.s32.totalorder %s112, %s114
    %p118 = scmp.eq.s32.totalorder %s17, 0
    %p119 = por %p117, %p118
    %p120 = scmp.ne.s32.totalorder %s112, %s114
    %p121 = scmp.eq.s32.totalorder %s22, 3
    %p122 = por %p120, %p121
    %p123 = scmp.ne.s32.totalorder %s114, %s115
    %p124 = scmp.eq.s32.totalorder %s22, 0
    %p125 = por %p123, %p124
    %p126 = scmp.ne.s32.totalorder %s114, %s115
    %p127 = scmp.eq.s32.totalorder %s23, 3
    %p128 = por %p126, %p127
    %p130 = scmp.ne.s32.totalorder %s115, %s129
    %p131 = scmp.eq.s32.totalorder %s23, 0
    %p132 = por %p130, %p131
    %s134 = sadd.s32 %s133, 1
    %p137 = scmp.eq.s32.totalorder %s17, 3
    %p138 = scmp.ne.s32.totalorder %s133, %s135
    %p139 = scmp.eq.s32.totalorder %s17, 0
    %p140 = por %p138, %p139
    %p141 = scmp.ne.s32.totalorder %s133, %s135
    %p142 = scmp.eq.s32.totalorder %s22, 3
    %p143 = por %p141, %p142
    %p144 = scmp.ne.s32.totalorder %s135, %s136
    %p145 = scmp.eq.s32.totalorder %s22, 0
    %p146 = por %p144, %p145
    %p147 = scmp.ne.s32.totalorder %s135, %s136
    %p148 = scmp.eq.s32.totalorder %s23, 3
    %p149 = por %p147, %p148
    %p151 = scmp.ne.s32.totalorder %s136, %s150
    %p152 = scmp.eq.s32.totalorder %s23, 0
    %p153 = por %p151, %p152
    %s155 = sadd.s32 %s154, 1
    %p158 = scmp.eq.s32.totalorder %s17, 3
    %p159 = scmp.ne.s32.totalorder %s154, %s156
    %p160 = scmp.eq.s32.totalorder %s17, 0
    %p161 = por %p159, %p160
    %p162 = scmp.ne.s32.totalorder %s154, %s156
    %p163 = scmp.eq.s32.totalorder %s22, 3
    %p164 = por %p162, %p163
    %p165 = scmp.ne.s32.totalorder %s156, %s157
    %p166 = scmp.eq.s32.totalorder %s22, 0
    %p167 = por %p165, %p166
    %p168 = scmp.ne.s32.totalorder %s156, %s157
    %p169 = scmp.eq.s32.totalorder %s23, 3
    %p170 = por %p168, %p169
    %p172 = scmp.ne.s32.totalorder %s157, %s171
    %p173 = scmp.eq.s32.totalorder %s23, 0
    %p174 = por %p172, %p173
    %s176 = sadd.s32 %s175, 1
    %p179 = scmp.eq.s32.totalorder %s17, 3
    %p180 = scmp.ne.s32.totalorder %s175, %s177
    %p181 = scmp.eq.s32.totalorder %s17, 0
    %p182 = por %p180, %p181
    %p183 = scmp.ne.s32.totalorder %s175, %s177
    %p184 = scmp.eq.s32.totalorder %s22, 3
    %p185 = por %p183, %p184
    %p186 = scmp.ne.s32.totalorder %s177, %s178
    %p187 = scmp.eq.s32.totalorder %s22, 0
    %p188 = por %p186, %p187
    %p189 = scmp.ne.s32.totalorder %s177, %s178
    %p190 = scmp.eq.s32.totalorder %s23, 3
    %p191 = por %p189, %p190
    %p193 = scmp.ne.s32.totalorder %s178, %s192
    %p194 = scmp.eq.s32.totalorder %s23, 0
    %p195 = por %p193, %p194
    %s197 = sadd.s32 %s196, 1
    %p200 = scmp.eq.s32.totalorder %s17, 3
    %p201 = scmp.ne.s32.totalorder %s196, %s198
    %p202 = scmp.eq.s32.totalorder %s17, 0
    %p203 = por %p201, %p202
    %p204 = scmp.ne.s32.totalorder %s196, %s198
    %p205 = scmp.eq.s32.totalorder %s22, 3
    %p206 = por %p204, %p205
    %p207 = scmp.ne.s32.totalorder %s198, %s199
    %p208 = scmp.eq.s32.totalorder %s22, 0
    %p209 = por %p207, %p208
    %p210 = scmp.ne.s32.totalorder %s198, %s199
    %p211 = scmp.eq.s32.totalorder %s23, 3
    %p212 = por %p210, %p211
    %p214 = scmp.ne.s32.totalorder %s199, %s213
    %p215 = scmp.eq.s32.totalorder %s23, 0
    %p216 = por %p214, %p215
    %s218 = sadd.s32 %s217, 1
    %p221 = scmp.eq.s32.totalorder %s17, 3
    %p222 = scmp.ne.s32.totalorder %s217, %s219
    %p223 = scmp.eq.s32.totalorder %s17, 0
    %p224 = por %p222, %p223
    %p225 = scmp.ne.s32.totalorder %s217, %s219
    %p226 = scmp.eq.s32.totalorder %s22, 3
    %p227 = por %p225, %p226
    %p228 = scmp.ne.s32.totalorder %s219, %s220
    %p229 = scmp.eq.s32.totalorder %s22, 0
    %p230 = por %p228, %p229
    %p231 = scmp.ne.s32.totalorder %s219, %s220
    %p232 = scmp.eq.s32.totalorder %s23, 3
    %p233 = por %p231, %p232
    %p235 = scmp.ne.s32.totalorder %s220, %s234
    %p236 = scmp.eq.s32.totalorder %s23, 0
    %p237 = por %p235, %p236
    %s239 = sadd.s32 %s238, 1
    %p242 = scmp.eq.s32.totalorder %s17, 3
    %p243 = scmp.ne.s32.totalorder %s238, %s240
    %p244 = scmp.eq.s32.totalorder %s17, 0
    %p245 = por %p243, %p244
    %p246 = scmp.ne.s32.totalorder %s238, %s240
    %p247 = scmp.eq.s32.totalorder %s22, 3
    %p248 = por %p246, %p247
    %p249 = scmp.ne.s32.totalorder %s240, %s241
    %p250 = scmp.eq.s32.totalorder %s22, 0
    %p251 = por %p249, %p250
    %p252 = scmp.ne.s32.totalorder %s240, %s241
    %p253 = scmp.eq.s32.totalorder %s23, 3
    %p254 = por %p252, %p253
    %p256 = scmp.ne.s32.totalorder %s241, %s255
    %p257 = scmp.eq.s32.totalorder %s23, 0
    %p258 = por %p256, %p257
    %s259 = ssub.s32 %s24, %s36
    %s260 = ssub.s32 %s25, %s32
    %s261 = sor.u32 %s259, %s260
    %p262 = scmp.eq.s32.totalorder %s261, 0
    %s264 = sadd.s32 %s263, 1
    %s265 = scalar_select %p262, %s263, %s264
    %p268 = pneg %p262
    %p269 = scmp.eq.s32.totalorder %s17, 3
    %p270 = por %p268, %p269
    %p271 = scmp.ne.s32.totalorder %s263, %s266
    %p272 = scmp.eq.s32.totalorder %s17, 0
    %p273 = por %p271, %p272
    %p274 = scmp.ne.s32.totalorder %s263, %s266
    %p275 = scmp.eq.s32.totalorder %s22, 3
    %p276 = por %p274, %p275
    %p277 = scmp.ne.s32.totalorder %s266, %s267
    %p278 = scmp.eq.s32.totalorder %s22, 0
    %p279 = por %p277, %p278
    %p280 = scmp.ne.s32.totalorder %s266, %s267
    %p281 = scmp.eq.s32.totalorder %s23, 3
    %p282 = por %p280, %p281
    %p284 = scmp.ne.s32.totalorder %s267, %s283
    %p285 = scmp.eq.s32.totalorder %s23, 0
    %p286 = por %p284, %p285
    %s287 = ssub.s32 %s24, %s36
    %s288 = ssub.s32 %s25, %s32
    %s289 = sor.u32 %s287, %s288
    %p290 = scmp.eq.s32.totalorder %s289, 0
    %s292 = sadd.s32 %s291, 1
    %s293 = scalar_select %p290, %s291, %s292
    %p296 = pneg %p290
    %p297 = scmp.eq.s32.totalorder %s17, 3
    %p298 = por %p296, %p297
    %p299 = scmp.ne.s32.totalorder %s291, %s294
    %p300 = scmp.eq.s32.totalorder %s17, 0
    %p301 = por %p299, %p300
    %p302 = scmp.ne.s32.totalorder %s291, %s294
    %p303 = scmp.eq.s32.totalorder %s22, 3
    %p304 = por %p302, %p303
    %p305 = scmp.ne.s32.totalorder %s294, %s295
    %p306 = scmp.eq.s32.totalorder %s22, 0
    %p307 = por %p305, %p306
    %p308 = scmp.ne.s32.totalorder %s294, %s295
    %p309 = scmp.eq.s32.totalorder %s23, 3
    %p310 = por %p308, %p309
    %p312 = scmp.ne.s32.totalorder %s295, %s311
    %p313 = scmp.eq.s32.totalorder %s23, 0
    %p314 = por %p312, %p313
    %p315 = scmp.le.s32.totalorder 1, %s17
    %p316 = scmp.lt.s32.totalorder %s17, 5
    %p317 = pnand %p315, %p316
    %p318 = pneg %p317
    // Predicated region
    $region9: #{transformer_decoder.8} parent=5 // pred_check
      _
    $region10: #{transformer_decoder.8} parent=5 // pred_check_branch
      %320 = sbr.rel (%p317) target = $region12
    $region11: #{transformer_decoder.8} parent=5 // pred_region
      %s321 = ssub.s32 %s17, 1
      // Predicated region
      $region13: #{transformer_decoder.8} parent=11 // pred_check
        %p322 = pneg %p104
      $region14: #{transformer_decoder.8} parent=11 // pred_check_branch
        %324 = sbr.rel (%p322) target = $region16
      $region15: #{transformer_decoder.8} parent=11 // pred_region
        _
      $region16: #{transformer_decoder.8} parent=11 // pred_fallthru
        _
      // Predicated region
      $region17: #{transformer_decoder.8} parent=11 // pred_check
        %p325 = pneg %p125
      $region18: #{transformer_decoder.8} parent=11 // pred_check_branch
        %327 = sbr.rel (%p325) target = $region20
      $region19: #{transformer_decoder.8} parent=11 // pred_region
        _
      $region20: #{transformer_decoder.8} parent=11 // pred_fallthru
        _
      // Predicated region
      $region21: #{transformer_decoder.8} parent=11 // pred_check
        %p328 = pneg %p146
      $region22: #{transformer_decoder.8} parent=11 // pred_check_branch
        %330 = sbr.rel (%p328) target = $region24
      $region23: #{transformer_decoder.8} parent=11 // pred_region
        _
      $region24: #{transformer_decoder.8} parent=11 // pred_fallthru
        _
      // Predicated region
      $region25: #{transformer_decoder.8} parent=11 // pred_check
        %p331 = pneg %p167
      $region26: #{transformer_decoder.8} parent=11 // pred_check_branch
        %333 = sbr.rel (%p331) target = $region28
      $region27: #{transformer_decoder.8} parent=11 // pred_region
        _
      $region28: #{transformer_decoder.8} parent=11 // pred_fallthru
        _
      // Predicated region
      $region29: #{transformer_decoder.8} parent=11 // pred_check
        %p334 = pneg %p188
      $region30: #{transformer_decoder.8} parent=11 // pred_check_branch
        %336 = sbr.rel (%p334) target = $region32
      $region31: #{transformer_decoder.8} parent=11 // pred_region
        _
      $region32: #{transformer_decoder.8} parent=11 // pred_fallthru
        _
      // Predicated region
      $region33: #{transformer_decoder.8} parent=11 // pred_check
        %p337 = pneg %p209
      $region34: #{transformer_decoder.8} parent=11 // pred_check_branch
        %339 = sbr.rel (%p337) target = $region36
      $region35: #{transformer_decoder.8} parent=11 // pred_region
        _
      $region36: #{transformer_decoder.8} parent=11 // pred_fallthru
        _
      // Predicated region
      $region37: #{transformer_decoder.8} parent=11 // pred_check
        %p340 = pneg %p230
      $region38: #{transformer_decoder.8} parent=11 // pred_check_branch
        %342 = sbr.rel (%p340) target = $region40
      $region39: #{transformer_decoder.8} parent=11 // pred_region
        _
      $region40: #{transformer_decoder.8} parent=11 // pred_fallthru
        _
      // Predicated region
      $region41: #{transformer_decoder.8} parent=11 // pred_check
        %p343 = pneg %p251
      $region42: #{transformer_decoder.8} parent=11 // pred_check_branch
        %345 = sbr.rel (%p343) target = $region44
      $region43: #{transformer_decoder.8} parent=11 // pred_region
        _
      $region44: #{transformer_decoder.8} parent=11 // pred_fallthru
        _
    $region12: #{transformer_decoder.8} parent=5 // pred_fallthru
      _
    %p346 = scmp.lt.s32.totalorder %s17, 4
    // Predicated region
    $region45: #{transformer_decoder.8} parent=5 // pred_check
      %p347 = pneg %p346
    $region46: #{transformer_decoder.8} parent=5 // pred_check_branch
      %349 = sbr.rel (%p347) target = $region48
    $region47: #{transformer_decoder.8} parent=5 // pred_region
      // Predicated region
      $region49: #{transformer_decoder.8} parent=47 // pred_check
        %p350 = pneg %p51
      $region50: #{transformer_decoder.8} parent=47 // pred_check_branch
        %352 = sbr.rel (%p350) target = $region52
      $region51: #{transformer_decoder.8} parent=47 // pred_region
        %s353 = smul.u32 2, %s25
        %p354 = scmp.lt.s32.totalorder %s24, 1
        %s355 = scalar_select %p354, %s24, 1
        %p356 = scmp.lt.s32.totalorder %s353, 3
        %s357 = scalar_select %p356, %s353, 3
        %s358 = smul.addr %s355, 4
        %s359 = sadd.s32 %s357, %s358
        %s360 = smul.addr %s359, 4
        %s361 = scalar_lea.vmem %s0, %s360
        %s362 = smul.u32 2, %s25
      $region52: #{transformer_decoder.8} parent=47 // pred_fallthru
        _
      // Predicated region
      $region53: #{transformer_decoder.8} parent=47 // pred_check
        %p363 = pneg %p77
      $region54: #{transformer_decoder.8} parent=47 // pred_check_branch
        %365 = sbr.rel (%p363) target = $region56
      $region55: #{transformer_decoder.8} parent=47 // pred_region
        %p366 = scmp.lt.s32.totalorder %s24, 1
        %s367 = scalar_select %p366, %s24, 1
        %s368 = smul.addr %s367, 2
        %s369 = smul.addr %s368, 4
        %s370 = scalar_lea.vmem %s1, %s369
      $region56: #{transformer_decoder.8} parent=47 // pred_fallthru
        _
      // Predicated region
      $region57: #{transformer_decoder.8} parent=47 // pred_check
        %p371 = pneg %p273
      $region58: #{transformer_decoder.8} parent=47 // pred_check_branch
        %373 = sbr.rel (%p371) target = $region60
      $region59: #{transformer_decoder.8} parent=47 // pred_region
        %s374 = smul.u32 2, %s25
        %p375 = scmp.lt.s32.totalorder %s24, 1
        %s376 = scalar_select %p375, %s24, 1
        %p377 = scmp.lt.s32.totalorder %s374, 3
        %s378 = scalar_select %p377, %s374, 3
        %s379 = smul.addr %s376, 4
        %s380 = sadd.s32 %s378, %s379
        %s381 = smul.addr %s380, 8
        %s382 = scalar_lea.vmem %s10, %s381
        %s383 = smul.u32 2, %s25
      $region60: #{transformer_decoder.8} parent=47 // pred_fallthru
        _
    $region48: #{transformer_decoder.8} parent=5 // pred_fallthru
      _
    %p384 = scmp.le.s32.totalorder 1, %s17
    %p385 = scmp.lt.s32.totalorder %s17, 5
    %p386 = pnand %p384, %p385
    %p387 = pneg %p386
    // Predicated region
    $region61: #{transformer_decoder.8} parent=5 // pred_check
      _
    $region62: #{transformer_decoder.8} parent=5 // pred_check_branch
      %389 = sbr.rel (%p386) target = $region64
    $region63: #{transformer_decoder.8} parent=5 // pred_region
      %s390 = ssub.s32 %s17, 1
      %s391 = smul.u32 2, %s27
      %p392 = scmp.lt.s32.totalorder %s26, 1
      %s393 = scalar_select %p392, %s26, 1
      %p394 = scmp.lt.s32.totalorder %s391, 3
      %s395 = scalar_select %p394, %s391, 3
      %s396 = smul.addr %s393, 4
      %s397 = sadd.s32 %s395, %s396
      %s398 = smul.addr %s397, 4
      %s399 = scalar_lea.vmem %s0, %s398
      %p400 = pneg %p57
      %p401 = pneg %p54
      %p402 = scmp.lt.s32.totalorder %s26, 1
      %s403 = scalar_select %p402, %s26, 1
      %s404 = smul.addr %s403, 2
      %s405 = smul.addr %s404, 4
      %s406 = scalar_lea.vmem %s1, %s405
      %p407 = pneg %p83
      %p408 = pneg %p80
      %p409 = pneg %p104
      %p410 = pneg %p101
      %p411 = pneg %p125
      %p412 = pneg %p122
      %p413 = pneg %p146
      %p414 = pneg %p143
      %p415 = pneg %p167
      %p416 = pneg %p164
      %p417 = pneg %p188
      %p418 = pneg %p185
      %p419 = pneg %p209
      %p420 = pneg %p206
      %p421 = pneg %p230
      %p422 = pneg %p227
      %p423 = pneg %p251
      %p424 = pneg %p248
      %s425 = smul.u32 2, %s27
      %p426 = scmp.lt.s32.totalorder %s26, 1
      %s427 = scalar_select %p426, %s26, 1
      %p428 = scmp.lt.s32.totalorder %s425, 3
      %s429 = scalar_select %p428, %s425, 3
      %s430 = smul.addr %s427, 4
      %s431 = sadd.s32 %s429, %s430
      %s432 = smul.addr %s431, 8
      %s433 = scalar_lea.vmem %s10, %s432
      %p434 = pneg %p279
      %p435 = pneg %p276
      %p436 = pneg %p307
      %p437 = pneg %p304
      %s438 = smul.u32 2, %s27
      %p439 = scmp.lt.s32.totalorder %s26, 1
      %s440 = scalar_select %p439, %s26, 1
      %p441 = scmp.lt.s32.totalorder %s438, 3
      %s442 = scalar_select %p441, %s438, 3
      %s443 = smul.addr %s440, 4
      %s444 = sadd.s32 %s442, %s443
      %s445 = smul.addr %s444, 4
      %s446 = scalar_lea.vmem %s11, %s445
      %s447 = smul.u32 2, %s27
      %p448 = scmp.lt.s32.totalorder %s26, 1
      %s449 = scalar_select %p448, %s26, 1
      %p450 = scmp.lt.s32.totalorder %s447, 3
      %s451 = scalar_select %p450, %s447, 3
      %s452 = smul.addr %s449, 4
      %s453 = sadd.s32 %s451, %s452
      %s454 = smul.addr %s453, 4
      %s455 = scalar_lea.vmem %s0, %s454
      %s456 = smul.u32 2, %s27
      %p457 = scmp.lt.s32.totalorder %s26, 1
      %s458 = scalar_select %p457, %s26, 1
      %s459 = smul.addr %s458, 2
      %s460 = smul.addr %s459, 4
      %s461 = scalar_lea.vmem %s1, %s460
      %s462 = smul.u32 2, %s27
      %p463 = scmp.lt.s32.totalorder %s26, 1
      %s464 = scalar_select %p463, %s26, 1
      %p465 = scmp.lt.s32.totalorder %s462, 3
      %s466 = scalar_select %p465, %s462, 3
      %s467 = smul.addr %s464, 4
      %s468 = sadd.s32 %s466, %s467
      %s469 = smul.addr %s468, 8
      %s470 = scalar_lea.vmem %s10, %s469
      %s471 = smul.u32 2, %s27
      %s472 = smul.u32 2, %s27
      %p473 = scmp.lt.s32.totalorder %s26, 1
      %s474 = scalar_select %p473, %s26, 1
      %p475 = scmp.lt.s32.totalorder %s472, 3
      %s476 = scalar_select %p475, %s472, 3
      %s477 = smul.addr %s474, 4
      %s478 = sadd.s32 %s476, %s477
      %s479 = smul.addr %s478, 4
      %s480 = scalar_lea.vmem %s11, %s479
      %s481 = smul.u32 2, %s27
      %v483 = vld [vmem:[%s461] sm:$0xf]
      %v484 = vld [vmem:[%s461 + $0x4] sm:$0xf]
      %v485 = vld [vmem:[%s455] sm:$0xf]
      %v486 = vld [vmem:[%s455 + $0x4] sm:$0xf]
      %v487 = vld [vmem:[%s2] sm:$0xf]
      %v488 = vld [vmem:[%s2 + $0x4] sm:$0xf]
      %v489 = vld [vmem:[%s2 + $0x8] sm:$0xf]
      %v490 = vld [vmem:[%s2 + $0xc] sm:$0xf]
      %v491 = vld [vmem:[%s2 + $0x10] sm:$0xf]
      %v492 = vld [vmem:[%s2 + $0x14] sm:$0xf]
      %v493 = vld [vmem:[%s2 + $0x18] sm:$0xf]
      %v494 = vld [vmem:[%s2 + $0x1c] sm:$0xf]
      %v495 = vld [vmem:[%s2 + $0x20] sm:$0xf]
      %v496 = vld [vmem:[%s2 + $0x24] sm:$0xf]
      %v497 = vld [vmem:[%s2 + $0x28] sm:$0xf]
      %v498 = vld [vmem:[%s2 + $0x2c] sm:$0xf]
      %v499 = vld [vmem:[%s2 + $0x30] sm:$0xf]
      %v500 = vld [vmem:[%s2 + $0x34] sm:$0xf]
      %v501 = vld [vmem:[%s2 + $0x38] sm:$0xf]
      %v502 = vld [vmem:[%s2 + $0x3c] sm:$0xf]
      %v503 = vld [vmem:[%s3] sm:$0x1]
      %v505 = vlaneseq
      %v506 = vshrl.u32 %v505, 7
      %v507 = vsub.s32 0, %v506
      %v508 = vrot.slane %v503, %v507
      %v512 = vunpack.c.l.b16 %v485
      %v513 = vunpack.c.l.b16 %v486
      %v514 = vpack.c.b16 %v513, %v512
      %v532 = vunpack.c.l.b16 %v487
      %v533 = vunpack.c.l.b16 %v488
      %v534 = vunpack.c.l.b16 %v489
      %v535 = vunpack.c.l.b16 %v490
      %v536 = vunpack.c.l.b16 %v491
      %v537 = vunpack.c.l.b16 %v492
      %v538 = vunpack.c.l.b16 %v493
      %v539 = vunpack.c.l.b16 %v494
      %v540 = vunpack.c.l.b16 %v495
      %v541 = vunpack.c.l.b16 %v496
      %v542 = vunpack.c.l.b16 %v497
      %v543 = vunpack.c.l.b16 %v498
      %v544 = vunpack.c.l.b16 %v499
      %v545 = vunpack.c.l.b16 %v500
      %v546 = vunpack.c.l.b16 %v501
      %v547 = vunpack.c.l.b16 %v502
      %v548 = vpack.c.b16 %v533, %v532
      %v549 = vpack.c.b16 %v535, %v534
      %v550 = vpack.c.b16 %v537, %v536
      %v551 = vpack.c.b16 %v539, %v538
      %v552 = vpack.c.b16 %v541, %v540
      %v553 = vpack.c.b16 %v543, %v542
      %v554 = vpack.c.b16 %v545, %v544
      %v555 = vpack.c.b16 %v547, %v546
      %564 = vmatprep.subr.bf16.mxu0 0
      %565 = vmatpush1.bf16.msra.mxu0 %v548
      %566 = vmatprep.subr.bf16.mxu0 0
      %567 = vmatpush1.bf16.msra.mxu0 %v549
      %568 = vmatprep.subr.bf16.mxu0 0
      %569 = vmatpush1.bf16.msra.mxu0 %v550
      %570 = vmatprep.subr.bf16.mxu0 0
      %571 = vmatpush1.bf16.msra.mxu0 %v551
      %572 = vmatprep.subr.bf16.mxu0 0
      %573 = vmatpush1.bf16.msra.mxu0 %v552
      %574 = vmatprep.subr.bf16.mxu0 0
      %575 = vmatpush1.bf16.msra.mxu0 %v553
      %576 = vmatprep.subr.bf16.mxu0 0
      %577 = vmatpush1.bf16.msra.mxu0 %v554
      %578 = vmatprep.subr.bf16.mxu0 0
      %579 = vmatpush1.bf16.msra.mxu0 %v555
      %580 = vmatprep.subr.bf16.mxu0 0
      %581 = vmatpush1.bf16.msra.mxu0 0
      %582 = vmatprep.subr.bf16.mxu0 0
      %583 = vmatpush1.bf16.msra.mxu0 0
      %584 = vmatprep.subr.bf16.mxu0 0
      %585 = vmatpush1.bf16.msra.mxu0 0
      %586 = vmatprep.subr.bf16.mxu0 0
      %587 = vmatpush1.bf16.msra.mxu0 0
      %588 = vmatprep.subr.bf16.mxu0 0
      %589 = vmatpush1.bf16.msra.mxu0 0
      %590 = vmatprep.subr.bf16.mxu0 0
      %591 = vmatpush1.bf16.msra.mxu0 0
      %592 = vmatprep.subr.bf16.mxu0 0
      %593 = vmatpush1.bf16.msra.mxu0 0
      %594 = vmatprep.subr.bf16.mxu0 0
      %595 = vmatpush1.bf16.msra.mxu0 0
      %596 = vmatprep.mubr.bf16.mxu0 0
      %597 = vmatmul.mubr.bf16.gmra.mrb[0].mxu0 %v514
      %v598 = vpop.f32.mrb[0].mxu0
      %v599 = vadd.f32 %v508, %v598
      %v600 = vpop.f32.mrb[0].mxu0
      %v601 = vpop.f32.mrb[0].mxu0
      %v602 = vadd.f32 %v508, %v601
      %v603 = vpop.f32.mrb[0].mxu0
      %604 = vdwg.mxu0
      %v605 = vld [vmem:[%s4] sm:$0xff]
      %v606 = vld [vmem:[%s4 + $0x8] sm:$0xff]
      %v607 = vld [vmem:[%s4 + $0x10] sm:$0xff]
      %v608 = vld [vmem:[%s4 + $0x18] sm:$0xff]
      %v609 = vld [vmem:[%s4 + $0x20] sm:$0xff]
      %v610 = vld [vmem:[%s4 + $0x28] sm:$0xff]
      %v611 = vld [vmem:[%s4 + $0x30] sm:$0xff]
      %v612 = vld [vmem:[%s4 + $0x38] sm:$0xff]
      %v613 = vld [vmem:[%s4 + $0x40] sm:$0xff]
      %v614 = vld [vmem:[%s4 + $0x48] sm:$0xff]
      %v615 = vld [vmem:[%s4 + $0x50] sm:$0xff]
      %v616 = vld [vmem:[%s4 + $0x58] sm:$0xff]
      %v617 = vld [vmem:[%s4 + $0x60] sm:$0xff]
      %v618 = vld [vmem:[%s4 + $0x68] sm:$0xff]
      %v619 = vld [vmem:[%s4 + $0x70] sm:$0xff]
      %v620 = vld [vmem:[%s4 + $0x78] sm:$0xff]
      %v621 = vld [vmem:[%s5] sm:$0x3]
      %v623 = vlaneseq
      %v624 = vshrl.u32 %v623, 7
      %v625 = vsub.s32 0, %v624
      %v626 = vrot.slane %v621, %v625
      %v627 = vlaneseq
      %v628 = vshrl.u32 %v627, 7
      %v629 = vsub.s32 1, %v628
      %v630 = vrot.slane %v621, %v629
      %v635 = vunpack.c.l.b16 %v483
      %v636 = vunpack.c.l.b16 %v484
      %v637 = vpack.c.b16 %v636, %v635
      %v655 = vunpack.c.l.b16 %v605
      %v656 = vunpack.c.h.b16 %v605
      %v657 = vunpack.c.l.b16 %v606
      %v658 = vunpack.c.h.b16 %v606
      %v659 = vunpack.c.l.b16 %v607
      %v660 = vunpack.c.h.b16 %v607
      %v661 = vunpack.c.l.b16 %v608
      %v662 = vunpack.c.h.b16 %v608
      %v663 = vunpack.c.l.b16 %v609
      %v664 = vunpack.c.h.b16 %v609
      %v665 = vunpack.c.l.b16 %v610
      %v666 = vunpack.c.h.b16 %v610
      %v667 = vunpack.c.l.b16 %v611
      %v668 = vunpack.c.h.b16 %v611
      %v669 = vunpack.c.l.b16 %v612
      %v670 = vunpack.c.h.b16 %v612
      %v671 = vunpack.c.l.b16 %v613
      %v672 = vunpack.c.h.b16 %v613
      %v673 = vunpack.c.l.b16 %v614
      %v674 = vunpack.c.h.b16 %v614
      %v675 = vunpack.c.l.b16 %v615
      %v676 = vunpack.c.h.b16 %v615
      %v677 = vunpack.c.l.b16 %v616
      %v678 = vunpack.c.h.b16 %v616
      %v679 = vunpack.c.l.b16 %v617
      %v680 = vunpack.c.h.b16 %v617
      %v681 = vunpack.c.l.b16 %v618
      %v682 = vunpack.c.h.b16 %v618
      %v683 = vunpack.c.l.b16 %v619
      %v684 = vunpack.c.h.b16 %v619
      %v685 = vunpack.c.l.b16 %v620
      %v686 = vunpack.c.h.b16 %v620
      %v687 = vpack.c.b16 %v657, %v655
      %v688 = vpack.c.b16 %v658, %v656
      %v689 = vpack.c.b16 %v661, %v659
      %v690 = vpack.c.b16 %v662, %v660
      %v691 = vpack.c.b16 %v665, %v663
      %v692 = vpack.c.b16 %v666, %v664
      %v693 = vpack.c.b16 %v669, %v667
      %v694 = vpack.c.b16 %v670, %v668
      %v695 = vpack.c.b16 %v673, %v671
      %v696 = vpack.c.b16 %v674, %v672
      %v697 = vpack.c.b16 %v677, %v675
      %v698 = vpack.c.b16 %v678, %v676
      %v699 = vpack.c.b16 %v681, %v679
      %v700 = vpack.c.b16 %v682, %v680
      %v701 = vpack.c.b16 %v685, %v683
      %v702 = vpack.c.b16 %v686, %v684
      %719 = vmatprep.subr.bf16.mxu0 %v688
      %720 = vmatpush1.bf16.msra.mxu0 %v687
      %721 = vmatprep.subr.bf16.mxu0 %v690
      %722 = vmatpush1.bf16.msra.mxu0 %v689
      %723 = vmatprep.subr.bf16.mxu0 %v692
      %724 = vmatpush1.bf16.msra.mxu0 %v691
      %725 = vmatprep.subr.bf16.mxu0 %v694
      %726 = vmatpush1.bf16.msra.mxu0 %v693
      %727 = vmatprep.subr.bf16.mxu0 %v696
      %728 = vmatpush1.bf16.msra.mxu0 %v695
      %729 = vmatprep.subr.bf16.mxu0 %v698
      %730 = vmatpush1.bf16.msra.mxu0 %v697
      %731 = vmatprep.subr.bf16.mxu0 %v700
      %732 = vmatpush1.bf16.msra.mxu0 %v699
      %733 = vmatprep.subr.bf16.mxu0 %v702
      %734 = vmatpush1.bf16.msra.mxu0 %v701
      %735 = vmatprep.subr.bf16.mxu0 0
      %736 = vmatpush1.bf16.msra.mxu0 0
      %737 = vmatprep.subr.bf16.mxu0 0
      %738 = vmatpush1.bf16.msra.mxu0 0
      %739 = vmatprep.subr.bf16.mxu0 0
      %740 = vmatpush1.bf16.msra.mxu0 0
      %741 = vmatprep.subr.bf16.mxu0 0
      %742 = vmatpush1.bf16.msra.mxu0 0
      %743 = vmatprep.subr.bf16.mxu0 0
      %744 = vmatpush1.bf16.msra.mxu0 0
      %745 = vmatprep.subr.bf16.mxu0 0
      %746 = vmatpush1.bf16.msra.mxu0 0
      %747 = vmatprep.subr.bf16.mxu0 0
      %748 = vmatpush1.bf16.msra.mxu0 0
      %749 = vmatprep.subr.bf16.mxu0 0
      %750 = vmatpush1.bf16.msra.mxu0 0
      %751 = vmatprep.mubr.bf16.mxu0 0
      %752 = vmatmul.mubr.bf16.gmra.mrb[0].mxu0 %v637
      %v753 = vpop.f32.mrb[0].mxu0
      %v754 = vadd.f32 %v626, %v753
      %v755 = vpop.f32.mrb[0].mxu0
      %v756 = vadd.f32 %v630, %v755
      %v757 = vpop.f32.mrb[0].mxu0
      %v758 = vadd.f32 %v626, %v757
      %v759 = vpop.f32.mrb[0].mxu0
      %v760 = vadd.f32 %v630, %v759
      %761 = vdwg.mxu0
      %v762 = vpack.c.bf16 %v602, %v599
      %v763 = vpack.c.bf16 %v758, %v754
      %v764 = vpack.c.bf16 %v760, %v756
      %vm765 = vcmask 261120
      %v767 = vsel %vm765, %v762, 0
      %v770 = vsel %vm765, %v763, 0
      %772 = vmatprep.subr.bf16.mxu0 0
      %773 = vmatpush1.bf16.xpose.msra.mxu0 %v770
      %774 = vmatprep.subr.bf16.mxu0 0
      %775 = vmatpush1.bf16.xpose.msra.mxu0 0
      %776 = vmatprep.subr.bf16.mxu0 0
      %777 = vmatpush1.bf16.xpose.msra.mxu0 0
      %778 = vmatprep.subr.bf16.mxu0 0
      %779 = vmatpush1.bf16.xpose.msra.mxu0 0
      %780 = vmatprep.subr.bf16.mxu0 0
      %781 = vmatpush1.bf16.xpose.msra.mxu0 0
      %782 = vmatprep.subr.bf16.mxu0 0
      %783 = vmatpush1.bf16.xpose.msra.mxu0 0
      %784 = vmatprep.subr.bf16.mxu0 0
      %785 = vmatpush1.bf16.xpose.msra.mxu0 0
      %786 = vmatprep.subr.bf16.mxu0 0
      %787 = vmatpush1.bf16.xpose.msra.mxu0 0
      %788 = vmatprep.subr.bf16.mxu0 0
      %789 = vmatpush1.bf16.xpose.msra.mxu0 0
      %790 = vmatprep.subr.bf16.mxu0 0
      %791 = vmatpush1.bf16.xpose.msra.mxu0 0
      %792 = vmatprep.subr.bf16.mxu0 0
      %793 = vmatpush1.bf16.xpose.msra.mxu0 0
      %794 = vmatprep.subr.bf16.mxu0 0
      %795 = vmatpush1.bf16.xpose.msra.mxu0 0
      %796 = vmatprep.subr.bf16.mxu0 0
      %797 = vmatpush1.bf16.xpose.msra.mxu0 0
      %798 = vmatprep.subr.bf16.mxu0 0
      %799 = vmatpush1.bf16.xpose.msra.mxu0 0
      %800 = vmatprep.subr.bf16.mxu0 0
      %801 = vmatpush1.bf16.xpose.msra.mxu0 0
      %802 = vmatprep.subr.bf16.mxu0 0
      %803 = vmatpush1.bf16.xpose.msra.mxu0 0
      %804 = vmatprep.mubr.bf16.mxu0 0
      %805 = vmatmul.mubr.bf16.gmra.mrb[0].mxu0 %v767
      %v806 = vpop.f32.mrb[0].mxu0
      %v807 = vadd.f32 0.0, %v806
      %v808 = vpop.f32.mrb[0].mxu0
      %v809 = vpop.f32.mrb[0].mxu0
      %v810 = vadd.f32 0.0, %v809
      %v811 = vpop.f32.mrb[0].mxu0
      %812 = vdwg.mxu0
      %vm813 = vcmask 130048
      %v814 = vsel %vm813, %v807, -inf
      %815 = vmax.xlane.f32.xlu0 %v814
      %v816 = vpop.xlane.xlu0 %815
      %v817 = vsel %vm813, %v810, -inf
      %818 = vmax.xlane.f32.xlu0 %v817
      %v819 = vpop.xlane.xlu0 %818
      %v820 = vsub.f32 %v807, %v816
      %v821 = vsub.f32 %v810, %v819
      %v822 = vmul.f32 %v820, 1.442695
      %v823 = vpow.pop %v822
      %v824 = vmul.f32 %v821, 1.442695
      %v825 = vpow.pop %v824
      %v826 = vsel %vm813, %v823, 0.0
      %827 = vadd.xlane.f32.xlu0 %v826
      %v828 = vpop.xlane.xlu0 %827
      %v829 = vsel %vm813, %v825, 0.0
      %830 = vadd.xlane.f32.xlu0 %v829
      %v831 = vpop.xlane.xlu0 %830
      %v832 = vrcp.pop %v828
      %v833 = vrcp.pop %v831
      %v834 = vmul.f32 %v823, %v832
      %v835 = vmul.f32 %v825, %v833
      %v836 = vpack.c.bf16 %v835, %v834
      %v838 = vsel %vm813, %v836, 0
      %840 = vmatprep.subr.bf16.mxu0 0
      %841 = vmatpush1.bf16.msra.mxu0 %v764
      %842 = vmatprep.subr.bf16.mxu0 0
      %843 = vmatpush1.bf16.msra.mxu0 0
      %844 = vmatprep.subr.bf16.mxu0 0
      %845 = vmatpush1.bf16.msra.mxu0 0
      %846 = vmatprep.subr.bf16.mxu0 0
      %847 = vmatpush1.bf16.msra.mxu0 0
      %848 = vmatprep.subr.bf16.mxu0 0
      %849 = vmatpush1.bf16.msra.mxu0 0
      %850 = vmatprep.subr.bf16.mxu0 0
      %851 = vmatpush1.bf16.msra.mxu0 0
      %852 = vmatprep.subr.bf16.mxu0 0
      %853 = vmatpush1.bf16.msra.mxu0 0
      %854 = vmatprep.subr.bf16.mxu0 0
      %855 = vmatpush1.bf16.msra.mxu0 0
      %856 = vmatprep.subr.bf16.mxu0 0
      %857 = vmatpush1.bf16.msra.mxu0 0
      %858 = vmatprep.subr.bf16.mxu0 0
      %859 = vmatpush1.bf16.msra.mxu0 0
      %860 = vmatprep.subr.bf16.mxu0 0
      %861 = vmatpush1.bf16.msra.mxu0 0
      %862 = vmatprep.subr.bf16.mxu0 0
      %863 = vmatpush1.bf16.msra.mxu0 0
      %864 = vmatprep.subr.bf16.mxu0 0
      %865 = vmatpush1.bf16.msra.mxu0 0
      %866 = vmatprep.subr.bf16.mxu0 0
      %867 = vmatpush1.bf16.msra.mxu0 0
      %868 = vmatprep.subr.bf16.mxu0 0
      %869 = vmatpush1.bf16.msra.mxu0 0
      %870 = vmatprep.subr.bf16.mxu0 0
      %871 = vmatpush1.bf16.msra.mxu0 0
      %872 = vmatprep.mubr.bf16.mxu0 0
      %873 = vmatmul.mubr.bf16.gmra.mrb[0].mxu0 %v838
      %v874 = vpop.f32.mrb[0].mxu0
      %v875 = vadd.f32 0.0, %v874
      %v876 = vpop.f32.mrb[0].mxu0
      %v877 = vpop.f32.mrb[0].mxu0
      %v878 = vadd.f32 0.0, %v877
      %v879 = vpop.f32.mrb[0].mxu0
      %880 = vdwg.mxu0
      %v881 = vpack.c.bf16 %v878, %v875
      %883 = vrot.lane.b32.xlu0 %v762, 96
      %v884 = vpop.permute.xlu0 %883
      %886 = vrot.lane.b32.xlu0 %v763, 96
      %v887 = vpop.permute.xlu0 %886
      %v889 = vsel %vm765, %v884, 0
      %v892 = vsel %vm765, %v887, 0
      %894 = vmatprep.subr.bf16.mxu0 0
      %895 = vmatpush1.bf16.xpose.msra.mxu0 %v892
      %896 = vmatprep.subr.bf16.mxu0 0
      %897 = vmatpush1.bf16.xpose.msra.mxu0 0
      %898 = vmatprep.subr.bf16.mxu0 0
      %899 = vmatpush1.bf16.xpose.msra.mxu0 0
      %900 = vmatprep.subr.bf16.mxu0 0
      %901 = vmatpush1.bf16.xpose.msra.mxu0 0
      %902 = vmatprep.subr.bf16.mxu0 0
      %903 = vmatpush1.bf16.xpose.msra.mxu0 0
      %904 = vmatprep.subr.bf16.mxu0 0
      %905 = vmatpush1.bf16.xpose.msra.mxu0 0
      %906 = vmatprep.subr.bf16.mxu0 0
      %907 = vmatpush1.bf16.xpose.msra.mxu0 0
      %908 = vmatprep.subr.bf16.mxu0 0
      %909 = vmatpush1.bf16.xpose.msra.mxu0 0
      %910 = vmatprep.subr.bf16.mxu0 0
      %911 = vmatpush1.bf16.xpose.msra.mxu0 0
      %912 = vmatprep.subr.bf16.mxu0 0
      %913 = vmatpush1.bf16.xpose.msra.mxu0 0
      %914 = vmatprep.subr.bf16.mxu0 0
      %915 = vmatpush1.bf16.xpose.msra.mxu0 0
      %916 = vmatprep.subr.bf16.mxu0 0
      %917 = vmatpush1.bf16.xpose.msra.mxu0 0
      %918 = vmatprep.subr.bf16.mxu0 0
      %919 = vmatpush1.bf16.xpose.msra.mxu0 0
      %920 = vmatprep.subr.bf16.mxu0 0
      %921 = vmatpush1.bf16.xpose.msra.mxu0 0
      %922 = vmatprep.subr.bf16.mxu0 0
      %923 = vmatpush1.bf16.xpose.msra.mxu0 0
      %924 = vmatprep.subr.bf16.mxu0 0
      %925 = vmatpush1.bf16.xpose.msra.mxu0 0
      %926 = vmatprep.mubr.bf16.mxu0 0
      %927 = vmatmul.mubr.bf16.gmra.mrb[0].mxu0 %v889
      %v928 = vpop.f32.mrb[0].mxu0
      %v929 = vadd.f32 0.0, %v928
      %v930 = vpop.f32.mrb[0].mxu0
      %v931 = vpop.f32.mrb[0].mxu0
      %v932 = vadd.f32 0.0, %v931
      %v933 = vpop.f32.mrb[0].mxu0
      %934 = vdwg.mxu0
      %v935 = vsel %vm813, %v929, -inf
      %936 = vmax.xlane.f32.xlu0 %v935
      %v937 = vpop.xlane.xlu0 %936
      %v938 = vsel %vm813, %v932, -inf
      %939 = vmax.xlane.f32.xlu0 %v938
      %v940 = vpop.xlane.xlu0 %939
      %v941 = vsub.f32 %v929, %v937
      %v942 = vsub.f32 %v932, %v940
      %v943 = vmul.f32 %v941, 1.442695
      %v944 = vpow.pop %v943
      %v945 = vmul.f32 %v942, 1.442695
      %v946 = vpow.pop %v945
      %v947 = vsel %vm813, %v944, 0.0
      %948 = vadd.xlane.f32.xlu0 %v947
      %v949 = vpop.xlane.xlu0 %948
      %v950 = vsel %vm813, %v946, 0.0
      %951 = vadd.xlane.f32.xlu0 %v950
      %v952 = vpop.xlane.xlu0 %951
      %v953 = vrcp.pop %v949
      %v954 = vrcp.pop %v952
      %v955 = vmul.f32 %v944, %v953
      %v956 = vmul.f32 %v946, %v954
      %v957 = vpack.c.bf16 %v956, %v955
      %959 = vrot.lane.b32.xlu0 %v764, 96
      %v960 = vpop.permute.xlu0 %959
      %v963 = vsel %vm813, %v957, 0
      %965 = vmatprep.subr.bf16.mxu0 0
      %966 = vmatpush1.bf16.msra.mxu0 %v960
      %967 = vmatprep.subr.bf16.mxu0 0
      %968 = vmatpush1.bf16.msra.mxu0 0
      %969 = vmatprep.subr.bf16.mxu0 0
      %970 = vmatpush1.bf16.msra.mxu0 0
      %971 = vmatprep.subr.bf16.mxu0 0
      %972 = vmatpush1.bf16.msra.mxu0 0
      %973 = vmatprep.subr.bf16.mxu0 0
      %974 = vmatpush1.bf16.msra.mxu0 0
      %975 = vmatprep.subr.bf16.mxu0 0
      %976 = vmatpush1.bf16.msra.mxu0 0
      %977 = vmatprep.subr.bf16.mxu0 0
      %978 = vmatpush1.bf16.msra.mxu0 0
      %979 = vmatprep.subr.bf16.mxu0 0
      %980 = vmatpush1.bf16.msra.mxu0 0
      %981 = vmatprep.subr.bf16.mxu0 0
      %982 = vmatpush1.bf16.msra.mxu0 0
      %983 = vmatprep.subr.bf16.mxu0 0
      %984 = vmatpush1.bf16.msra.mxu0 0
      %985 = vmatprep.subr.bf16.mxu0 0
      %986 = vmatpush1.bf16.msra.mxu0 0
      %987 = vmatprep.subr.bf16.mxu0 0
      %988 = vmatpush1.bf16.msra.mxu0 0
      %989 = vmatprep.subr.bf16.mxu0 0
      %990 = vmatpush1.bf16.msra.mxu0 0
      %991 = vmatprep.subr.bf16.mxu0 0
      %992 = vmatpush1.bf16.msra.mxu0 0
      %993 = vmatprep.subr.bf16.mxu0 0
      %994 = vmatpush1.bf16.msra.mxu0 0
      %995 = vmatprep.subr.bf16.mxu0 0
      %996 = vmatpush1.bf16.msra.mxu0 0
      %997 = vmatprep.mubr.bf16.mxu0 0
      %998 = vmatmul.mubr.bf16.gmra.mrb[0].mxu0 %v963
      %v999 = vpop.f32.mrb[0].mxu0
      %v1000 = vadd.f32 0.0, %v999
      %v1001 = vpop.f32.mrb[0].mxu0
      %v1002 = vpop.f32.mrb[0].mxu0
      %v1003 = vadd.f32 0.0, %v1002
      %v1004 = vpop.f32.mrb[0].mxu0
      %1005 = vdwg.mxu0
      %v1006 = vpack.c.bf16 %v1003, %v1000
      %1007 = vrot.lane.b32.xlu0 %v762, 64
      %v1008 = vpop.permute.xlu0 %1007
      %1009 = vrot.lane.b32.xlu0 %v763, 64
      %v1010 = vpop.permute.xlu0 %1009
      %v1012 = vsel %vm765, %v1008, 0
      %v1015 = vsel %vm765, %v1010, 0
      %1017 = vmatprep.subr.bf16.mxu0 0
      %1018 = vmatpush1.bf16.xpose.msra.mxu0 %v1015
      %1019 = vmatprep.subr.bf16.mxu0 0
      %1020 = vmatpush1.bf16.xpose.msra.mxu0 0
      %1021 = vmatprep.subr.bf16.mxu0 0
      %1022 = vmatpush1.bf16.xpose.msra.mxu0 0
      %1023 = vmatprep.subr.bf16.mxu0 0
      %1024 = vmatpush1.bf16.xpose.msra.mxu0 0
      %1025 = vmatprep.subr.bf16.mxu0 0
      %1026 = vmatpush1.bf16.xpose.msra.mxu0 0
      %1027 = vmatprep.subr.bf16.mxu0 0
      %1028 = vmatpush1.bf16.xpose.msra.mxu0 0
      %1029 = vmatprep.subr.bf16.mxu0 0
      %1030 = vmatpush1.bf16.xpose.msra.mxu0 0
      %1031 = vmatprep.subr.bf16.mxu0 0
      %1032 = vmatpush1.bf16.xpose.msra.mxu0 0
      %1033 = vmatprep.subr.bf16.mxu0 0
      %1034 = vmatpush1.bf16.xpose.msra.mxu0 0
      %1035 = vmatprep.subr.bf16.mxu0 0
      %1036 = vmatpush1.bf16.xpose.msra.mxu0 0
      %1037 = vmatprep.subr.bf16.mxu0 0
      %1038 = vmatpush1.bf16.xpose.msra.mxu0 0
      %1039 = vmatprep.subr.bf16.mxu0 0
      %1040 = vmatpush1.bf16.xpose.msra.mxu0 0
      %1041 = vmatprep.subr.bf16.mxu0 0
      %1042 = vmatpush1.bf16.xpose.msra.mxu0 0
      %1043 = vmatprep.subr.bf16.mxu0 0
      %1044 = vmatpush1.bf16.xpose.msra.mxu0 0
      %1045 = vmatprep.subr.bf16.mxu0 0
      %1046 = vmatpush1.bf16.xpose.msra.mxu0 0
      %1047 = vmatprep.subr.bf16.mxu0 0
      %1048 = vmatpush1.bf16.xpose.msra.mxu0 0
      %1049 = vmatprep.mubr.bf16.mxu0 0
      %1050 = vmatmul.mubr.bf16.gmra.mrb[0].mxu0 %v1012
      %v1051 = vpop.f32.mrb[0].mxu0
      %v1052 = vadd.f32 0.0, %v1051
      %v1053 = vpop.f32.mrb[0].mxu0
      %v1054 = vpop.f32.mrb[0].mxu0
      %v1055 = vadd.f32 0.0, %v1054
      %v1056 = vpop.f32.mrb[0].mxu0
      %1057 = vdwg.mxu0
      %v1058 = vsel %vm813, %v1052, -inf
      %1059 = vmax.xlane.f32.xlu0 %v1058
      %v1060 = vpop.xlane.xlu0 %1059
      %v1061 = vsel %vm813, %v1055, -inf
      %1062 = vmax.xlane.f32.xlu0 %v1061
      %v1063 = vpop.xlane.xlu0 %1062
      %v1064 = vsub.f32 %v1052, %v1060
      %v1065 = vsub.f32 %v1055, %v1063
      %v1066 = vmul.f32 %v1064, 1.442695
      %v1067 = vpow.pop %v1066
      %v1068 = vmul.f32 %v1065, 1.442695
      %v1069 = vpow.pop %v1068
      %v1070 = vsel %vm813, %v1067, 0.0
      %1071 = vadd.xlane.f32.xlu0 %v1070
      %v1072 = vpop.xlane.xlu0 %1071
      %v1073 = vsel %vm813, %v1069, 0.0
      %1074 = vadd.xlane.f32.xlu0 %v1073
      %v1075 = vpop.xlane.xlu0 %1074
      %v1076 = vrcp.pop %v1072
      %v1077 = vrcp.pop %v1075
      %v1078 = vmul.f32 %v1067, %v1076
      %v1079 = vmul.f32 %v1069, %v1077
      %v1080 = vpack.c.bf16 %v1079, %v1078
      %1081 = vrot.lane.b32.xlu0 %v764, 64
      %v1082 = vpop.permute.xlu0 %1081
      %v1085 = vsel %vm813, %v1080, 0
      %1087 = vmatprep.subr.bf16.mxu0 0
      %1088 = vmatpush1.bf16.msra.mxu0 %v1082
      %1089 = vmatprep.subr.bf16.mxu0 0
      %1090 = vmatpush1.bf16.msra.mxu0 0
      %1091 = vmatprep.subr.bf16.mxu0 0
      %1092 = vmatpush1.bf16.msra.mxu0 0
      %1093 = vmatprep.subr.bf16.mxu0 0
      %1094 = vmatpush1.bf16.msra.mxu0 0
      %1095 = vmatprep.subr.bf16.mxu0 0
      %1096 = vmatpush1.bf16.msra.mxu0 0
      %1097 = vmatprep.subr.bf16.mxu0 0
      %1098 = vmatpush1.bf16.msra.mxu0 0
      %1099 = vmatprep.subr.bf16.mxu0 0
      %1100 = vmatpush1.bf16.msra.mxu0 0
      %1101 = vmatprep.subr.bf16.mxu0 0
      %1102 = vmatpush1.bf16.msra.mxu0 0
      %1103 = vmatprep.subr.bf16.mxu0 0
      %1104 = vmatpush1.bf16.msra.mxu0 0
      %1105 = vmatprep.subr.bf16.mxu0 0
      %1106 = vmatpush1.bf16.msra.mxu0 0
      %1107 = vmatprep.subr.bf16.mxu0 0
      %1108 = vmatpush1.bf16.msra.mxu0 0
      %1109 = vmatprep.subr.bf16.mxu0 0
      %1110 = vmatpush1.bf16.msra.mxu0 0
      %1111 = vmatprep.subr.bf16.mxu0 0
      %1112 = vmatpush1.bf16.msra.mxu0 0
      %1113 = vmatprep.subr.bf16.mxu0 0
      %1114 = vmatpush1.bf16.msra.mxu0 0
      %1115 = vmatprep.subr.bf16.mxu0 0
      %1116 = vmatpush1.bf16.msra.mxu0 0
      %1117 = vmatprep.subr.bf16.mxu0 0
      %1118 = vmatpush1.bf16.msra.mxu0 0
      %1119 = vmatprep.mubr.bf16.mxu0 0
      %1120 = vmatmul.mubr.bf16.gmra.mrb[0].mxu0 %v1085
      %v1121 = vpop.f32.mrb[0].mxu0
      %v1122 = vadd.f32 0.0, %v1121
      %v1123 = vpop.f32.mrb[0].mxu0
      %v1124 = vpop.f32.mrb[0].mxu0
      %v1125 = vadd.f32 0.0, %v1124
      %v1126 = vpop.f32.mrb[0].mxu0
      %1127 = vdwg.mxu0
      %v1128 = vpack.c.bf16 %v1125, %v1122
      %1129 = vrot.lane.b32.xlu0 %v762, 32
      %v1130 = vpop.permute.xlu0 %1129
      %1131 = vrot.lane.b32.xlu0 %v763, 32
      %v1132 = vpop.permute.xlu0 %1131
      %v1134 = vsel %vm765, %v1130, 0
      %v1137 = vsel %vm765, %v1132, 0
      %1139 = vmatprep.subr.bf16.mxu0 0
      %1140 = vmatpush1.bf16.xpose.msra.mxu0 %v1137
      %1141 = vmatprep.subr.bf16.mxu0 0
      %1142 = vmatpush1.bf16.xpose.msra.mxu0 0
      %1143 = vmatprep.subr.bf16.mxu0 0
      %1144 = vmatpush1.bf16.xpose.msra.mxu0 0
      %1145 = vmatprep.subr.bf16.mxu0 0
      %1146 = vmatpush1.bf16.xpose.msra.mxu0 0
      %1147 = vmatprep.subr.bf16.mxu0 0
      %1148 = vmatpush1.bf16.xpose.msra.mxu0 0
      %1149 = vmatprep.subr.bf16.mxu0 0
      %1150 = vmatpush1.bf16.xpose.msra.mxu0 0
      %1151 = vmatprep.subr.bf16.mxu0 0
      %1152 = vmatpush1.bf16.xpose.msra.mxu0 0
      %1153 = vmatprep.subr.bf16.mxu0 0
      %1154 = vmatpush1.bf16.xpose.msra.mxu0 0
      %1155 = vmatprep.subr.bf16.mxu0 0
      %1156 = vmatpush1.bf16.xpose.msra.mxu0 0
      %1157 = vmatprep.subr.bf16.mxu0 0
      %1158 = vmatpush1.bf16.xpose.msra.mxu0 0
      %1159 = vmatprep.subr.bf16.mxu0 0
      %1160 = vmatpush1.bf16.xpose.msra.mxu0 0
      %1161 = vmatprep.subr.bf16.mxu0 0
      %1162 = vmatpush1.bf16.xpose.msra.mxu0 0
      %1163 = vmatprep.subr.bf16.mxu0 0
      %1164 = vmatpush1.bf16.xpose.msra.mxu0 0
      %1165 = vmatprep.subr.bf16.mxu0 0
      %1166 = vmatpush1.bf16.xpose.msra.mxu0 0
      %1167 = vmatprep.subr.bf16.mxu0 0
      %1168 = vmatpush1.bf16.xpose.msra.mxu0 0
      %1169 = vmatprep.subr.bf16.mxu0 0
      %1170 = vmatpush1.bf16.xpose.msra.mxu0 0
      %1171 = vmatprep.mubr.bf16.mxu0 0
      %1172 = vmatmul.mubr.bf16.gmra.mrb[0].mxu0 %v1134
      %v1173 = vpop.f32.mrb[0].mxu0
      %v1174 = vadd.f32 0.0, %v1173
      %v1175 = vpop.f32.mrb[0].mxu0
      %v1176 = vpop.f32.mrb[0].mxu0
      %v1177 = vadd.f32 0.0, %v1176
      %v1178 = vpop.f32.mrb[0].mxu0
      %1179 = vdwg.mxu0
      %v1180 = vsel %vm813, %v1174, -inf
      %1181 = vmax.xlane.f32.xlu0 %v1180
      %v1182 = vpop.xlane.xlu0 %1181
      %v1183 = vsel %vm813, %v1177, -inf
      %1184 = vmax.xlane.f32.xlu0 %v1183
      %v1185 = vpop.xlane.xlu0 %1184
      %v1186 = vsub.f32 %v1174, %v1182
      %v1187 = vsub.f32 %v1177, %v1185
      %v1188 = vmul.f32 %v1186, 1.442695
      %v1189 = vpow.pop %v1188
      %v1190 = vmul.f32 %v1187, 1.442695
      %v1191 = vpow.pop %v1190
      %v1192 = vsel %vm813, %v1189, 0.0
      %1193 = vadd.xlane.f32.xlu0 %v1192
      %v1194 = vpop.xlane.xlu0 %1193
      %v1195 = vsel %vm813, %v1191, 0.0
      %1196 = vadd.xlane.f32.xlu0 %v1195
      %v1197 = vpop.xlane.xlu0 %1196
      %v1198 = vrcp.pop %v1194
      %v1199 = vrcp.pop %v1197
      %v1200 = vmul.f32 %v1189, %v1198
      %v1201 = vmul.f32 %v1191, %v1199
      %v1202 = vpack.c.bf16 %v1201, %v1200
      %1203 = vrot.lane.b32.xlu0 %v764, 32
      %v1204 = vpop.permute.xlu0 %1203
      %v1207 = vsel %vm813, %v1202, 0
      %1209 = vmatprep.subr.bf16.mxu0 0
      %1210 = vmatpush1.bf16.msra.mxu0 %v1204
      %1211 = vmatprep.subr.bf16.mxu0 0
      %1212 = vmatpush1.bf16.msra.mxu0 0
      %1213 = vmatprep.subr.bf16.mxu0 0
      %1214 = vmatpush1.bf16.msra.mxu0 0
      %1215 = vmatprep.subr.bf16.mxu0 0
      %1216 = vmatpush1.bf16.msra.mxu0 0
      %1217 = vmatprep.subr.bf16.mxu0 0
      %1218 = vmatpush1.bf16.msra.mxu0 0
      %1219 = vmatprep.subr.bf16.mxu0 0
      %1220 = vmatpush1.bf16.msra.mxu0 0
      %1221 = vmatprep.subr.bf16.mxu0 0
      %1222 = vmatpush1.bf16.msra.mxu0 0
      %1223 = vmatprep.subr.bf16.mxu0 0
      %1224 = vmatpush1.bf16.msra.mxu0 0
      %1225 = vmatprep.subr.bf16.mxu0 0
      %1226 = vmatpush1.bf16.msra.mxu0 0
      %1227 = vmatprep.subr.bf16.mxu0 0
      %1228 = vmatpush1.bf16.msra.mxu0 0
      %1229 = vmatprep.subr.bf16.mxu0 0
      %1230 = vmatpush1.bf16.msra.mxu0 0
      %1231 = vmatprep.subr.bf16.mxu0 0
      %1232 = vmatpush1.bf16.msra.mxu0 0
      %1233 = vmatprep.subr.bf16.mxu0 0
      %1234 = vmatpush1.bf16.msra.mxu0 0
      %1235 = vmatprep.subr.bf16.mxu0 0
      %1236 = vmatpush1.bf16.msra.mxu0 0
      %1237 = vmatprep.subr.bf16.mxu0 0
      %1238 = vmatpush1.bf16.msra.mxu0 0
      %1239 = vmatprep.subr.bf16.mxu0 0
      %1240 = vmatpush1.bf16.msra.mxu0 0
      %1241 = vmatprep.mubr.bf16.mxu0 0
      %1242 = vmatmul.mubr.bf16.gmra.mrb[0].mxu0 %v1207
      %v1243 = vpop.f32.mrb[0].mxu0
      %v1244 = vadd.f32 0.0, %v1243
      %v1245 = vpop.f32.mrb[0].mxu0
      %v1246 = vpop.f32.mrb[0].mxu0
      %v1247 = vadd.f32 0.0, %v1246
      %v1248 = vpop.f32.mrb[0].mxu0
      %1249 = vdwg.mxu0
      %v1250 = vpack.c.bf16 %v1247, %v1244
      %1252 = vrot.lane.b32.xlu0 %v1006, 32
      %v1253 = vpop.permute.xlu0 %1252
      %1255 = vrot.lane.b32.xlu0 %v1128, 64
      %v1256 = vpop.permute.xlu0 %1255
      %1258 = vrot.lane.b32.xlu0 %v1250, 96
      %v1259 = vpop.permute.xlu0 %1258
      %v1262 = vsel %vm765, %v881, %v1253
      %vm1263 = vcmask 523264
      %v1265 = vsel %vm1263, %v1262, %v1256
      %vm1266 = vcmask 785408
      %v1268 = vsel %vm1266, %v1265, %v1259
      %v1270 = vld [vmem:[%s6] sm:$0xf]
      %v1271 = vld [vmem:[%s6 + $0x4] sm:$0xf]
      %v1272 = vld [vmem:[%s6 + $0x8] sm:$0xf]
      %v1273 = vld [vmem:[%s6 + $0xc] sm:$0xf]
      %v1274 = vld [vmem:[%s6 + $0x10] sm:$0xf]
      %v1275 = vld [vmem:[%s6 + $0x14] sm:$0xf]
      %v1276 = vld [vmem:[%s6 + $0x18] sm:$0xf]
      %v1277 = vld [vmem:[%s6 + $0x1c] sm:$0xf]
      %v1278 = vld [vmem:[%s6 + $0x20] sm:$0xf]
      %v1279 = vld [vmem:[%s6 + $0x24] sm:$0xf]
      %v1280 = vld [vmem:[%s6 + $0x28] sm:$0xf]
      %v1281 = vld [vmem:[%s6 + $0x2c] sm:$0xf]
      %v1282 = vld [vmem:[%s6 + $0x30] sm:$0xf]
      %v1283 = vld [vmem:[%s6 + $0x34] sm:$0xf]
      %v1284 = vld [vmem:[%s6 + $0x38] sm:$0xf]
      %v1285 = vld [vmem:[%s6 + $0x3c] sm:$0xf]
      %v1302 = vunpack.c.l.b16 %v1270
      %v1303 = vunpack.c.l.b16 %v1271
      %v1304 = vunpack.c.l.b16 %v1272
      %v1305 = vunpack.c.l.b16 %v1273
      %v1306 = vunpack.c.l.b16 %v1274
      %v1307 = vunpack.c.l.b16 %v1275
      %v1308 = vunpack.c.l.b16 %v1276
      %v1309 = vunpack.c.l.b16 %v1277
      %v1310 = vunpack.c.l.b16 %v1278
      %v1311 = vunpack.c.l.b16 %v1279
      %v1312 = vunpack.c.l.b16 %v1280
      %v1313 = vunpack.c.l.b16 %v1281
      %v1314 = vunpack.c.l.b16 %v1282
      %v1315 = vunpack.c.l.b16 %v1283
      %v1316 = vunpack.c.l.b16 %v1284
      %v1317 = vunpack.c.l.b16 %v1285
      %v1318 = vpack.c.b16 %v1303, %v1302
      %v1319 = vpack.c.b16 %v1305, %v1304
      %v1320 = vpack.c.b16 %v1307, %v1306
      %v1321 = vpack.c.b16 %v1309, %v1308
      %v1322 = vpack.c.b16 %v1311, %v1310
      %v1323 = vpack.c.b16 %v1313, %v1312
      %v1324 = vpack.c.b16 %v1315, %v1314
      %v1325 = vpack.c.b16 %v1317, %v1316
      %1334 = vmatprep.subr.bf16.mxu0 0
      %1335 = vmatpush1.bf16.msra.mxu0 %v1318
      %1336 = vmatprep.subr.bf16.mxu0 0
      %1337 = vmatpush1.bf16.msra.mxu0 %v1319
      %1338 = vmatprep.subr.bf16.mxu0 0
      %1339 = vmatpush1.bf16.msra.mxu0 %v1320
      %1340 = vmatprep.subr.bf16.mxu0 0
      %1341 = vmatpush1.bf16.msra.mxu0 %v1321
      %1342 = vmatprep.subr.bf16.mxu0 0
      %1343 = vmatpush1.bf16.msra.mxu0 %v1322
      %1344 = vmatprep.subr.bf16.mxu0 0
      %1345 = vmatpush1.bf16.msra.mxu0 %v1323
      %1346 = vmatprep.subr.bf16.mxu0 0
      %1347 = vmatpush1.bf16.msra.mxu0 %v1324
      %1348 = vmatprep.subr.bf16.mxu0 0
      %1349 = vmatpush1.bf16.msra.mxu0 %v1325
      %1350 = vmatprep.subr.bf16.mxu0 0
      %1351 = vmatpush1.bf16.msra.mxu0 0
      %1352 = vmatprep.subr.bf16.mxu0 0
      %1353 = vmatpush1.bf16.msra.mxu0 0
      %1354 = vmatprep.subr.bf16.mxu0 0
      %1355 = vmatpush1.bf16.msra.mxu0 0
      %1356 = vmatprep.subr.bf16.mxu0 0
      %1357 = vmatpush1.bf16.msra.mxu0 0
      %1358 = vmatprep.subr.bf16.mxu0 0
      %1359 = vmatpush1.bf16.msra.mxu0 0
      %1360 = vmatprep.subr.bf16.mxu0 0
      %1361 = vmatpush1.bf16.msra.mxu0 0
      %1362 = vmatprep.subr.bf16.mxu0 0
      %1363 = vmatpush1.bf16.msra.mxu0 0
      %1364 = vmatprep.subr.bf16.mxu0 0
      %1365 = vmatpush1.bf16.msra.mxu0 0
      %1366 = vmatprep.mubr.bf16.mxu0 0
      %1367 = vmatmul.mubr.bf16.gmra.mrb[0].mxu0 %v1268
      %v1368 = vpop.f32.mrb[0].mxu0
      %v1369 = vadd.f32 0.0, %v1368
      %v1370 = vpop.f32.mrb[0].mxu0
      %v1371 = vpop.f32.mrb[0].mxu0
      %v1372 = vadd.f32 0.0, %v1371
      %v1373 = vpop.f32.mrb[0].mxu0
      %1374 = vdwg.mxu0
      %v1375 = vunpack.c.l.bf16 %v485
      %v1376 = vunpack.c.l.bf16 %v486
      %v1377 = vadd.f32 %v1375, %v1369
      %v1378 = vadd.f32 %v1376, %v1372
      %v1379 = vld [vmem:[%s7] sm:$0x1]
      %v1381 = vlaneseq
      %v1382 = vshrl.u32 %v1381, 7
      %v1383 = vsub.s32 0, %v1382
      %v1384 = vrot.slane %v1379, %v1383
      %v1386 = vadd.f32 %v1377, %v1384
      %v1387 = vadd.f32 %v1378, %v1384
      %v1388 = vld [vmem:[%s8] sm:$0x1]
      %v1389 = vld [vmem:[%s9] sm:$0x1]
      %1390 = vadd.xlane.f32.xlu0 %v1386
      %v1391 = vpop.xlane.xlu0 %1390
      %1392 = vadd.xlane.f32.xlu0 %v1387
      %v1393 = vpop.xlane.xlu0 %1392
      %v1394 = vrcp.pop 128.0
      %v1395 = vmul.f32 %v1391, %v1394
      %v1396 = vmul.f32 %v1393, %v1394
      %v1397 = vsub.f32 %v1386, %v1395
      %v1398 = vsub.f32 %v1387, %v1396
      %v1399 = vmul.f32 %v1397, %v1397
      %v1400 = vmul.f32 %v1398, %v1398
      %1401 = vadd.xlane.f32.xlu0 %v1399
      %v1402 = vpop.xlane.xlu0 %1401
      %1403 = vadd.xlane.f32.xlu0 %v1400
      %v1404 = vpop.xlane.xlu0 %1403
      %v1405 = vmul.f32 %v1402, %v1394
      %v1406 = vmul.f32 %v1404, %v1394
      %v1407 = vadd.f32 %v1405, 1e-05
      %v1408 = vadd.f32 %v1406, 1e-05
      %v1409 = vrsqrt.pop %v1407
      %v1410 = vrsqrt.pop %v1408
      %v1411 = vmul.f32 %v1397, %v1409
      %v1412 = vmul.f32 %v1398, %v1410
      %v1414 = vlaneseq
      %v1415 = vshrl.u32 %v1414, 7
      %v1416 = vsub.s32 0, %v1415
      %v1417 = vrot.slane %v1388, %v1416
      %v1419 = vmul.f32 %v1411, %v1417
      %v1420 = vmul.f32 %v1412, %v1417
      %v1422 = vlaneseq
      %v1423 = vshrl.u32 %v1422, 7
      %v1424 = vsub.s32 0, %v1423
      %v1425 = vrot.slane %v1389, %v1424
      %v1427 = vadd.f32 %v1419, %v1425
      %v1428 = vadd.f32 %v1420, %v1425
      %v1429 = vld [vmem:[%s470] sm:$0xff]
      %v1430 = vld [vmem:[%s470 + $0x8] sm:$0xff]
      %1432 = vset.pattern.permute.xlu0 0
      %1433 = vperm.xlu0 %1432, %v1429
      %v1434 = vpop.permute.xlu0 %1433
      %1437 = vset.pattern.permute.xlu0 0
      %1438 = vperm.xlu0 %1437, %v1430
      %v1439 = vpop.permute.xlu0 %1438
      %v1441 = vmul.f32 %v1427, %v1434
      %v1442 = vmul.f32 %v1428, %v1439
      %v1443 = vpack.c.bf16 %v1442, %v1441
      %v1445 = vunpack.c.l.b16 %v1443
      %v1446 = vunpack.c.h.b16 %v1443
      %v1447 = vpack.c.b16 %v1445, %v1445
      %v1448 = vpack.c.b16 %v1446, %v1446
      %1451 = vst [vmem:[%s480] sm:$0xf] %v1447
      %1452 = vst [vmem:[%s480 + $0x4] sm:$0xf] %v1448
      %s1453 = smul.u32 2, %s27
      %p1454 = scmp.lt.s32.totalorder %s26, 1
      %s1455 = scalar_select %p1454, %s26, 1
      %p1456 = scmp.lt.s32.totalorder %s1453, 3
      %s1457 = scalar_select %p1456, %s1453, 3
      %s1458 = smul.addr %s1455, 4
      %s1459 = sadd.s32 %s1457, %s1458
      %s1460 = smul.addr %s1459, 4
      %s1461 = scalar_lea.vmem %s11, %s1460
      // Predicated region
      $region65: #{transformer_decoder.8} parent=63 // pred_check
        %p1462 = pneg %p304
      $region66: #{transformer_decoder.8} parent=63 // pred_check_branch
        %1464 = sbr.rel (%p1462) target = $region68
      $region67: #{transformer_decoder.8} parent=63 // pred_region
        %s1465 = smul.u32 2, %s27
      $region68: #{transformer_decoder.8} parent=63 // pred_fallthru
        _
    $region64: #{transformer_decoder.8} parent=5 // pred_fallthru
      _
    %p1466 = scmp.le.s32.totalorder 2, %s17
    // Predicated region
    $region69: #{transformer_decoder.8} parent=5 // pred_check
      %p1467 = pneg %p1466
    $region70: #{transformer_decoder.8} parent=5 // pred_check_branch
      %1469 = sbr.rel (%p1467) target = $region72
    $region71: #{transformer_decoder.8} parent=5 // pred_region
      %s1470 = ssub.s32 %s17, 2
      // Predicated region
      $region73: #{transformer_decoder.8} parent=71 // pred_check
        %p1471 = pneg %p310
      $region74: #{transformer_decoder.8} parent=71 // pred_check_branch
        %1473 = sbr.rel (%p1471) target = $region76
      $region75: #{transformer_decoder.8} parent=71 // pred_region
        %s1474 = smul.u32 2, %s29
        %p1475 = scmp.lt.s32.totalorder %s28, 1
        %s1476 = scalar_select %p1475, %s28, 1
        %p1477 = scmp.lt.s32.totalorder %s1474, 3
        %s1478 = scalar_select %p1477, %s1474, 3
        %s1479 = smul.addr %s1476, 4
        %s1480 = sadd.s32 %s1478, %s1479
        %s1481 = smul.addr %s1480, 4
        %s1482 = scalar_lea.vmem %s11, %s1481
      $region76: #{transformer_decoder.8} parent=71 // pred_fallthru
        _
    $region72: #{transformer_decoder.8} parent=5 // pred_fallthru
      _
  $region6: #{transformer_decoder.8} parent=0 // loop_footer
    %s21 = sadd.s32 1, %s17
  $region7: #{transformer_decoder.8} parent=0 // loop_footer_branch
    %16 = sbr.rel target = $region3
  $region8: #{transformer_decoder.8} parent=0 // loop_exit
    _

// kernel: transformer_decoder.7
$region0: #{transformer_decoder.7}
  #allocation0 [shape = 'u32[]', space=smem, size = 0x4, offset = 0x4, fixed_abs, tag = 'smem constant byte address 0x4 - core index']
  #allocation1 [shape = 'u32[144,128]{1,0:T(1,128)}', space=vmem, size = 0x12000, scoped, tag = 'internal scratch']
  %s0 = inlined_call_operand.vmem [shape: bf16[2,32,128], index: 0, kind: input, shape index: {}]
  %s1 = inlined_call_operand.vmem [shape: f32[2,1,32], index: 1, kind: input, shape index: {}]
  %s2 = inlined_call_operand.vmem [shape: bf16[128,128], index: 2, kind: input, shape index: {}]
  %s3 = inlined_call_operand.vmem [shape: f32[1,128], index: 3, kind: input, shape index: {}]
  %s4 = inlined_call_operand.vmem [shape: bf16[128,256], index: 4, kind: input, shape index: {}]
  %s5 = inlined_call_operand.vmem [shape: f32[1,256], index: 5, kind: input, shape index: {}]
  %s6 = inlined_call_operand.vmem [shape: bf16[128,128], index: 6, kind: input, shape index: {}]
  %s7 = inlined_call_operand.vmem [shape: f32[1,128], index: 7, kind: input, shape index: {}]
  %s8 = inlined_call_operand.vmem [shape: f32[1,128], index: 8, kind: input, shape index: {}]
  %s9 = inlined_call_operand.vmem [shape: f32[1,128], index: 9, kind: input, shape index: {}]
  %s10 = inlined_call_operand.vmem [shape: f32[2,32,1], index: 10, kind: input, shape index: {}]
  %s11 = inlined_call_operand.vmem [shape: bf16[2,32,128], index: 11, kind: output, shape index: {}]
  %s12 = sld [smem:[#allocation0]]
  $region77: #{transformer_decoder.7} parent=0
    _
  %s14 = ssub.s32 1, %s12
  %s15 = scalar_select 0, %s14, %s12
  loop: start=0, step=1, limit=6
  $region2: #{transformer_decoder.7} parent=0 // loop_pre_header
    _
  $region3: #{transformer_decoder.7} parent=0 // loop_header
    %s17 = sphi 0, %s21
    %p18 = scmp.ge.s32.totalorder %s17, 6
    %s24 = sphi 0, %s36
    %s25 = sphi 0, %s32
    %s26 = sphi 0, %s24
    %s27 = sphi 0, %s25
    %s28 = sphi 0, %s26
    %s29 = sphi 0, %s27
    %s39 = sphi 0, %s41
    %s42 = sphi 0, %s39
    %s43 = sphi 0, %s42
    %s59 = sphi 0, %s43
    %s65 = sphi 0, %s67
    %s68 = sphi 0, %s65
    %s69 = sphi 0, %s68
    %s85 = sphi 0, %s69
    %s89 = sphi 0, %s89
    %s91 = sphi 0, %s89
    %s92 = sphi 0, %s91
    %s106 = sphi 0, %s92
    %s110 = sphi 0, %s110
    %s112 = sphi 0, %s110
    %s113 = sphi 0, %s112
    %s127 = sphi 0, %s113
    %s131 = sphi 0, %s131
    %s133 = sphi 0, %s131
    %s134 = sphi 0, %s133
    %s148 = sphi 0, %s134
    %s152 = sphi 0, %s152
    %s154 = sphi 0, %s152
    %s155 = sphi 0, %s154
    %s169 = sphi 0, %s155
    %s173 = sphi 0, %s173
    %s175 = sphi 0, %s173
    %s176 = sphi 0, %s175
    %s190 = sphi 0, %s176
    %s194 = sphi 0, %s194
    %s196 = sphi 0, %s194
    %s197 = sphi 0, %s196
    %s211 = sphi 0, %s197
    %s215 = sphi 0, %s215
    %s217 = sphi 0, %s215
    %s218 = sphi 0, %s217
    %s232 = sphi 0, %s218
    %s236 = sphi 0, %s236
    %s238 = sphi 0, %s236
    %s239 = sphi 0, %s238
    %s253 = sphi 0, %s239
    %s261 = sphi 0, %s263
    %s264 = sphi 0, %s261
    %s265 = sphi 0, %s264
    %s281 = sphi 0, %s265
    %s289 = sphi 0, %s291
    %s292 = sphi 0, %s289
    %s293 = sphi 0, %s292
    %s309 = sphi 0, %s293
  $region4: #{transformer_decoder.7} parent=0 // loop_header_branch
    %20 = sbr.rel (%p18) target = $region8
  $region5: #{transformer_decoder.7} parent=0 // loop_body
    %s22 = ssub.s32 %s17, 1
    %s23 = ssub.s32 %s17, 2
    %s30 = sadd.s32 1, %s25
    %p31 = scmp.ge.s32.totalorder %s30, 2
    %s32 = scalar_select %p31, 0, %s30
    %s33 = sadd.s32 1, %s24
    %s34 = scalar_select %p31, %s33, %s24
    %p35 = scmp.ge.s32.totalorder %s34, 2
    %s36 = scalar_select %p35, 0, %s34
    %s37 = ssub.s32 %s24, %s36
    %p38 = scmp.eq.s32.totalorder %s37, 0
    %s40 = sadd.s32 %s39, 1
    %s41 = scalar_select %p38, %s39, %s40
    %p44 = pneg %p38
    %p45 = scmp.eq.s32.totalorder %s17, 3
    %p46 = por %p44, %p45
    %p47 = scmp.ne.s32.totalorder %s39, %s42
    %p48 = scmp.eq.s32.totalorder %s17, 0
    %p49 = por %p47, %p48
    %p50 = scmp.ne.s32.totalorder %s39, %s42
    %p51 = scmp.eq.s32.totalorder %s22, 3
    %p52 = por %p50, %p51
    %p53 = scmp.ne.s32.totalorder %s42, %s43
    %p54 = scmp.eq.s32.totalorder %s22, 0
    %p55 = por %p53, %p54
    %p56 = scmp.ne.s32.totalorder %s42, %s43
    %p57 = scmp.eq.s32.totalorder %s23, 3
    %p58 = por %p56, %p57
    %p60 = scmp.ne.s32.totalorder %s43, %s59
    %p61 = scmp.eq.s32.totalorder %s23, 0
    %p62 = por %p60, %p61
    %s63 = ssub.s32 %s24, %s36
    %p64 = scmp.eq.s32.totalorder %s63, 0
    %s66 = sadd.s32 %s65, 1
    %s67 = scalar_select %p64, %s65, %s66
    %p70 = pneg %p64
    %p71 = scmp.eq.s32.totalorder %s17, 3
    %p72 = por %p70, %p71
    %p73 = scmp.ne.s32.totalorder %s65, %s68
    %p74 = scmp.eq.s32.totalorder %s17, 0
    %p75 = por %p73, %p74
    %p76 = scmp.ne.s32.totalorder %s65, %s68
    %p77 = scmp.eq.s32.totalorder %s22, 3
    %p78 = por %p76, %p77
    %p79 = scmp.ne.s32.totalorder %s68, %s69
    %p80 = scmp.eq.s32.totalorder %s22, 0
    %p81 = por %p79, %p80
    %p82 = scmp.ne.s32.totalorder %s68, %s69
    %p83 = scmp.eq.s32.totalorder %s23, 3
    %p84 = por %p82, %p83
    %p86 = scmp.ne.s32.totalorder %s69, %s85
    %p87 = scmp.eq.s32.totalorder %s23, 0
    %p88 = por %p86, %p87
    %s90 = sadd.s32 %s89, 1
    %p93 = scmp.eq.s32.totalorder %s17, 3
    %p94 = scmp.ne.s32.totalorder %s89, %s91
    %p95 = scmp.eq.s32.totalorder %s17, 0
    %p96 = por %p94, %p95
    %p97 = scmp.ne.s32.totalorder %s89, %s91
    %p98 = scmp.eq.s32.totalorder %s22, 3
    %p99 = por %p97, %p98
    %p100 = scmp.ne.s32.totalorder %s91, %s92
    %p101 = scmp.eq.s32.totalorder %s22, 0
    %p102 = por %p100, %p101
    %p103 = scmp.ne.s32.totalorder %s91, %s92
    %p104 = scmp.eq.s32.totalorder %s23, 3
    %p105 = por %p103, %p104
    %p107 = scmp.ne.s32.totalorder %s92, %s106
    %p108 = scmp.eq.s32.totalorder %s23, 0
    %p109 = por %p107, %p108
    %s111 = sadd.s32 %s110, 1
    %p114 = scmp.eq.s32.totalorder %s17, 3
    %p115 = scmp.ne.s32.totalorder %s110, %s112
    %p116 = scmp.eq.s32.totalorder %s17, 0
    %p117 = por %p115, %p116
    %p118 = scmp.ne.s32.totalorder %s110, %s112
    %p119 = scmp.eq.s32.totalorder %s22, 3
    %p120 = por %p118, %p119
    %p121 = scmp.ne.s32.totalorder %s112, %s113
    %p122 = scmp.eq.s32.totalorder %s22, 0
    %p123 = por %p121, %p122
    %p124 = scmp.ne.s32.totalorder %s112, %s113
    %p125 = scmp.eq.s32.totalorder %s23, 3
    %p126 = por %p124, %p125
    %p128 = scmp.ne.s32.totalorder %s113, %s127
    %p129 = scmp.eq.s32.totalorder %s23, 0
    %p130 = por %p128, %p129
    %s132 = sadd.s32 %s131, 1
    %p135 = scmp.eq.s32.totalorder %s17, 3
    %p136 = scmp.ne.s32.totalorder %s131, %s133
    %p137 = scmp.eq.s32.totalorder %s17, 0
    %p138 = por %p136, %p137
    %p139 = scmp.ne.s32.totalorder %s131, %s133
    %p140 = scmp.eq.s32.totalorder %s22, 3
    %p141 = por %p139, %p140
    %p142 = scmp.ne.s32.totalorder %s133, %s134
    %p143 = scmp.eq.s32.totalorder %s22, 0
    %p144 = por %p142, %p143
    %p145 = scmp.ne.s32.totalorder %s133, %s134
    %p146 = scmp.eq.s32.totalorder %s23, 3
    %p147 = por %p145, %p146
    %p149 = scmp.ne.s32.totalorder %s134, %s148
    %p150 = scmp.eq.s32.totalorder %s23, 0
    %p151 = por %p149, %p150
    %s153 = sadd.s32 %s152, 1
    %p156 = scmp.eq.s32.totalorder %s17, 3
    %p157 = scmp.ne.s32.totalorder %s152, %s154
    %p158 = scmp.eq.s32.totalorder %s17, 0
    %p159 = por %p157, %p158
    %p160 = scmp.ne.s32.totalorder %s152, %s154
    %p161 = scmp.eq.s32.totalorder %s22, 3
    %p162 = por %p160, %p161
    %p163 = scmp.ne.s32.totalorder %s154, %s155
    %p164 = scmp.eq.s32.totalorder %s22, 0
    %p165 = por %p163, %p164
    %p166 = scmp.ne.s32.totalorder %s154, %s155
    %p167 = scmp.eq.s32.totalorder %s23, 3
    %p168 = por %p166, %p167
    %p170 = scmp.ne.s32.totalorder %s155, %s169
    %p171 = scmp.eq.s32.totalorder %s23, 0
    %p172 = por %p170, %p171
    %s174 = sadd.s32 %s173, 1
    %p177 = scmp.eq.s32.totalorder %s17, 3
    %p178 = scmp.ne.s32.totalorder %s173, %s175
    %p179 = scmp.eq.s32.totalorder %s17, 0
    %p180 = por %p178, %p179
    %p181 = scmp.ne.s32.totalorder %s173, %s175
    %p182 = scmp.eq.s32.totalorder %s22, 3
    %p183 = por %p181, %p182
    %p184 = scmp.ne.s32.totalorder %s175, %s176
    %p185 = scmp.eq.s32.totalorder %s22, 0
    %p186 = por %p184, %p185
    %p187 = scmp.ne.s32.totalorder %s175, %s176
    %p188 = scmp.eq.s32.totalorder %s23, 3
    %p189 = por %p187, %p188
    %p191 = scmp.ne.s32.totalorder %s176, %s190
    %p192 = scmp.eq.s32.totalorder %s23, 0
    %p193 = por %p191, %p192
    %s195 = sadd.s32 %s194, 1
    %p198 = scmp.eq.s32.totalorder %s17, 3
    %p199 = scmp.ne.s32.totalorder %s194, %s196
    %p200 = scmp.eq.s32.totalorder %s17, 0
    %p201 = por %p199, %p200
    %p202 = scmp.ne.s32.totalorder %s194, %s196
    %p203 = scmp.eq.s32.totalorder %s22, 3
    %p204 = por %p202, %p203
    %p205 = scmp.ne.s32.totalorder %s196, %s197
    %p206 = scmp.eq.s32.totalorder %s22, 0
    %p207 = por %p205, %p206
    %p208 = scmp.ne.s32.totalorder %s196, %s197
    %p209 = scmp.eq.s32.totalorder %s23, 3
    %p210 = por %p208, %p209
    %p212 = scmp.ne.s32.totalorder %s197, %s211
    %p213 = scmp.eq.s32.totalorder %s23, 0
    %p214 = por %p212, %p213
    %s216 = sadd.s32 %s215, 1
    %p219 = scmp.eq.s32.totalorder %s17, 3
    %p220 = scmp.ne.s32.totalorder %s215, %s217
    %p221 = scmp.eq.s32.totalorder %s17, 0
    %p222 = por %p220, %p221
    %p223 = scmp.ne.s32.totalorder %s215, %s217
    %p224 = scmp.eq.s32.totalorder %s22, 3
    %p225 = por %p223, %p224
    %p226 = scmp.ne.s32.totalorder %s217, %s218
    %p227 = scmp.eq.s32.totalorder %s22, 0
    %p228 = por %p226, %p227
    %p229 = scmp.ne.s32.totalorder %s217, %s218
    %p230 = scmp.eq.s32.totalorder %s23, 3
    %p231 = por %p229, %p230
    %p233 = scmp.ne.s32.totalorder %s218, %s232
    %p234 = scmp.eq.s32.totalorder %s23, 0
    %p235 = por %p233, %p234
    %s237 = sadd.s32 %s236, 1
    %p240 = scmp.eq.s32.totalorder %s17, 3
    %p241 = scmp.ne.s32.totalorder %s236, %s238
    %p242 = scmp.eq.s32.totalorder %s17, 0
    %p243 = por %p241, %p242
    %p244 = scmp.ne.s32.totalorder %s236, %s238
    %p245 = scmp.eq.s32.totalorder %s22, 3
    %p246 = por %p244, %p245
    %p247 = scmp.ne.s32.totalorder %s238, %s239
    %p248 = scmp.eq.s32.totalorder %s22, 0
    %p249 = por %p247, %p248
    %p250 = scmp.ne.s32.totalorder %s238, %s239
    %p251 = scmp.eq.s32.totalorder %s23, 3
    %p252 = por %p250, %p251
    %p254 = scmp.ne.s32.totalorder %s239, %s253
    %p255 = scmp.eq.s32.totalorder %s23, 0
    %p256 = por %p254, %p255
    %s257 = ssub.s32 %s24, %s36
    %s258 = ssub.s32 %s25, %s32
    %s259 = sor.u32 %s257, %s258
    %p260 = scmp.eq.s32.totalorder %s259, 0
    %s262 = sadd.s32 %s261, 1
    %s263 = scalar_select %p260, %s261, %s262
    %p266 = pneg %p260
    %p267 = scmp.eq.s32.totalorder %s17, 3
    %p268 = por %p266, %p267
    %p269 = scmp.ne.s32.totalorder %s261, %s264
    %p270 = scmp.eq.s32.totalorder %s17, 0
    %p271 = por %p269, %p270
    %p272 = scmp.ne.s32.totalorder %s261, %s264
    %p273 = scmp.eq.s32.totalorder %s22, 3
    %p274 = por %p272, %p273
    %p275 = scmp.ne.s32.totalorder %s264, %s265
    %p276 = scmp.eq.s32.totalorder %s22, 0
    %p277 = por %p275, %p276
    %p278 = scmp.ne.s32.totalorder %s264, %s265
    %p279 = scmp.eq.s32.totalorder %s23, 3
    %p280 = por %p278, %p279
    %p282 = scmp.ne.s32.totalorder %s265, %s281
    %p283 = scmp.eq.s32.totalorder %s23, 0
    %p284 = por %p282, %p283
    %s285 = ssub.s32 %s24, %s36
    %s286 = ssub.s32 %s25, %s32
    %s287 = sor.u32 %s285, %s286
    %p288 = scmp.eq.s32.totalorder %s287, 0
    %s290 = sadd.s32 %s289, 1
    %s291 = scalar_select %p288, %s289, %s290
    %p294 = pneg %p288
    %p295 = scmp.eq.s32.totalorder %s17, 3
    %p296 = por %p294, %p295
    %p297 = scmp.ne.s32.totalorder %s289, %s292
    %p298 = scmp.eq.s32.totalorder %s17, 0
    %p299 = por %p297, %p298
    %p300 = scmp.ne.s32.totalorder %s289, %s292
    %p301 = scmp.eq.s32.totalorder %s22, 3
    %p302 = por %p300, %p301
    %p303 = scmp.ne.s32.totalorder %s292, %s293
    %p304 = scmp.eq.s32.totalorder %s22, 0
    %p305 = por %p303, %p304
    %p306 = scmp.ne.s32.totalorder %s292, %s293
    %p307 = scmp.eq.s32.totalorder %s23, 3
    %p308 = por %p306, %p307
    %p310 = scmp.ne.s32.totalorder %s293, %s309
    %p311 = scmp.eq.s32.totalorder %s23, 0
    %p312 = por %p310, %p311
    %p313 = scmp.le.s32.totalorder 1, %s17
    %p314 = scmp.lt.s32.totalorder %s17, 5
    %p315 = pnand %p313, %p314
    %p316 = pneg %p315
    // Predicated region
    $region9: #{transformer_decoder.7} parent=5 // pred_check
      _
    $region10: #{transformer_decoder.7} parent=5 // pred_check_branch
      %318 = sbr.rel (%p315) target = $region12
    $region11: #{transformer_decoder.7} parent=5 // pred_region
      %s319 = ssub.s32 %s17, 1
      // Predicated region
      $region13: #{transformer_decoder.7} parent=11 // pred_check
        %p320 = pneg %p102
      $region14: #{transformer_decoder.7} parent=11 // pred_check_branch
        %322 = sbr.rel (%p320) target = $region16
      $region15: #{transformer_decoder.7} parent=11 // pred_region
        _
      $region16: #{transformer_decoder.7} parent=11 // pred_fallthru
        _
      // Predicated region
      $region17: #{transformer_decoder.7} parent=11 // pred_check
        %p323 = pneg %p123
      $region18: #{transformer_decoder.7} parent=11 // pred_check_branch
        %325 = sbr.rel (%p323) target = $region20
      $region19: #{transformer_decoder.7} parent=11 // pred_region
        _
      $region20: #{transformer_decoder.7} parent=11 // pred_fallthru
        _
      // Predicated region
      $region21: #{transformer_decoder.7} parent=11 // pred_check
        %p326 = pneg %p144
      $region22: #{transformer_decoder.7} parent=11 // pred_check_branch
        %328 = sbr.rel (%p326) target = $region24
      $region23: #{transformer_decoder.7} parent=11 // pred_region
        _
      $region24: #{transformer_decoder.7} parent=11 // pred_fallthru
        _
      // Predicated region
      $region25: #{transformer_decoder.7} parent=11 // pred_check
        %p329 = pneg %p165
      $region26: #{transformer_decoder.7} parent=11 // pred_check_branch
        %331 = sbr.rel (%p329) target = $region28
      $region27: #{transformer_decoder.7} parent=11 // pred_region
        _
      $region28: #{transformer_decoder.7} parent=11 // pred_fallthru
        _
      // Predicated region
      $region29: #{transformer_decoder.7} parent=11 // pred_check
        %p332 = pneg %p186
      $region30: #{transformer_decoder.7} parent=11 // pred_check_branch
        %334 = sbr.rel (%p332) target = $region32
      $region31: #{transformer_decoder.7} parent=11 // pred_region
        _
      $region32: #{transformer_decoder.7} parent=11 // pred_fallthru
        _
      // Predicated region
      $region33: #{transformer_decoder.7} parent=11 // pred_check
        %p335 = pneg %p207
      $region34: #{transformer_decoder.7} parent=11 // pred_check_branch
        %337 = sbr.rel (%p335) target = $region36
      $region35: #{transformer_decoder.7} parent=11 // pred_region
        _
      $region36: #{transformer_decoder.7} parent=11 // pred_fallthru
        _
      // Predicated region
      $region37: #{transformer_decoder.7} parent=11 // pred_check
        %p338 = pneg %p228
      $region38: #{transformer_decoder.7} parent=11 // pred_check_branch
        %340 = sbr.rel (%p338) target = $region40
      $region39: #{transformer_decoder.7} parent=11 // pred_region
        _
      $region40: #{transformer_decoder.7} parent=11 // pred_fallthru
        _
      // Predicated region
      $region41: #{transformer_decoder.7} parent=11 // pred_check
        %p341 = pneg %p249
      $region42: #{transformer_decoder.7} parent=11 // pred_check_branch
        %343 = sbr.rel (%p341) target = $region44
      $region43: #{transformer_decoder.7} parent=11 // pred_region
        _
      $region44: #{transformer_decoder.7} parent=11 // pred_fallthru
        _
    $region12: #{transformer_decoder.7} parent=5 // pred_fallthru
      _
    %p344 = scmp.lt.s32.totalorder %s17, 4
    // Predicated region
    $region45: #{transformer_decoder.7} parent=5 // pred_check
      %p345 = pneg %p344
    $region46: #{transformer_decoder.7} parent=5 // pred_check_branch
      %347 = sbr.rel (%p345) target = $region48
    $region47: #{transformer_decoder.7} parent=5 // pred_region
      // Predicated region
      $region49: #{transformer_decoder.7} parent=47 // pred_check
        %p348 = pneg %p49
      $region50: #{transformer_decoder.7} parent=47 // pred_check_branch
        %350 = sbr.rel (%p348) target = $region52
      $region51: #{transformer_decoder.7} parent=47 // pred_region
        %p351 = scmp.lt.s32.totalorder %s24, 1
        %s352 = scalar_select %p351, %s24, 1
        %s353 = smul.addr %s352, 4
        %s354 = smul.addr %s353, 4
        %s355 = scalar_lea.vmem %s0, %s354
      $region52: #{transformer_decoder.7} parent=47 // pred_fallthru
        _
      // Predicated region
      $region53: #{transformer_decoder.7} parent=47 // pred_check
        %p356 = pneg %p75
      $region54: #{transformer_decoder.7} parent=47 // pred_check_branch
        %358 = sbr.rel (%p356) target = $region56
      $region55: #{transformer_decoder.7} parent=47 // pred_region
        %p359 = scmp.lt.s32.totalorder %s24, 1
        %s360 = scalar_select %p359, %s24, 1
        %s361 = scalar_lea.vmem %s1, %s360
      $region56: #{transformer_decoder.7} parent=47 // pred_fallthru
        _
      // Predicated region
      $region57: #{transformer_decoder.7} parent=47 // pred_check
        %p362 = pneg %p271
      $region58: #{transformer_decoder.7} parent=47 // pred_check_branch
        %364 = sbr.rel (%p362) target = $region60
      $region59: #{transformer_decoder.7} parent=47 // pred_region
        %s365 = smul.u32 2, %s25
        %p366 = scmp.lt.s32.totalorder %s24, 1
        %s367 = scalar_select %p366, %s24, 1
        %p368 = scmp.lt.s32.totalorder %s365, 3
        %s369 = scalar_select %p368, %s365, 3
        %s370 = smul.addr %s367, 4
        %s371 = sadd.s32 %s369, %s370
        %s372 = smul.addr %s371, 8
        %s373 = scalar_lea.vmem %s10, %s372
        %s374 = smul.u32 2, %s25
      $region60: #{transformer_decoder.7} parent=47 // pred_fallthru
        _
    $region48: #{transformer_decoder.7} parent=5 // pred_fallthru
      _
    %p375 = scmp.le.s32.totalorder 1, %s17
    %p376 = scmp.lt.s32.totalorder %s17, 5
    %p377 = pnand %p375, %p376
    %p378 = pneg %p377
    // Predicated region
    $region61: #{transformer_decoder.7} parent=5 // pred_check
      _
    $region62: #{transformer_decoder.7} parent=5 // pred_check_branch
      %380 = sbr.rel (%p377) target = $region64
    $region63: #{transformer_decoder.7} parent=5 // pred_region
      %s381 = ssub.s32 %s17, 1
      %p382 = scmp.lt.s32.totalorder %s26, 1
      %s383 = scalar_select %p382, %s26, 1
      %s384 = smul.addr %s383, 4
      %s385 = smul.addr %s384, 4
      %s386 = scalar_lea.vmem %s0, %s385
      %p387 = pneg %p55
      %p388 = pneg %p52
      %p389 = scmp.lt.s32.totalorder %s26, 1
      %s390 = scalar_select %p389, %s26, 1
      %s391 = scalar_lea.vmem %s1, %s390
      %p392 = pneg %p81
      %p393 = pneg %p78
      %p394 = pneg %p102
      %p395 = pneg %p99
      %p396 = pneg %p123
      %p397 = pneg %p120
      %p398 = pneg %p144
      %p399 = pneg %p141
      %p400 = pneg %p165
      %p401 = pneg %p162
      %p402 = pneg %p186
      %p403 = pneg %p183
      %p404 = pneg %p207
      %p405 = pneg %p204
      %p406 = pneg %p228
      %p407 = pneg %p225
      %p408 = pneg %p249
      %p409 = pneg %p246
      %s410 = smul.u32 2, %s27
      %p411 = scmp.lt.s32.totalorder %s26, 1
      %s412 = scalar_select %p411, %s26, 1
      %p413 = scmp.lt.s32.totalorder %s410, 3
      %s414 = scalar_select %p413, %s410, 3
      %s415 = smul.addr %s412, 4
      %s416 = sadd.s32 %s414, %s415
      %s417 = smul.addr %s416, 8
      %s418 = scalar_lea.vmem %s10, %s417
      %p419 = pneg %p277
      %p420 = pneg %p274
      %p421 = pneg %p305
      %p422 = pneg %p302
      %s423 = smul.u32 2, %s27
      %p424 = scmp.lt.s32.totalorder %s26, 1
      %s425 = scalar_select %p424, %s26, 1
      %p426 = scmp.lt.s32.totalorder %s423, 3
      %s427 = scalar_select %p426, %s423, 3
      %s428 = smul.addr %s425, 4
      %s429 = sadd.s32 %s427, %s428
      %s430 = smul.addr %s429, 4
      %s431 = scalar_lea.vmem %s11, %s430
      %p432 = scmp.lt.s32.totalorder %s26, 1
      %s433 = scalar_select %p432, %s26, 1
      %s434 = smul.addr %s433, 4
      %s435 = smul.addr %s434, 4
      %s436 = scalar_lea.vmem %s0, %s435
      %p437 = scmp.lt.s32.totalorder %s26, 1
      %s438 = scalar_select %p437, %s26, 1
      %s439 = scalar_lea.vmem %s1, %s438
      %s440 = smul.u32 2, %s27
      %p441 = scmp.lt.s32.totalorder %s26, 1
      %s442 = scalar_select %p441, %s26, 1
      %p443 = scmp.lt.s32.totalorder %s440, 3
      %s444 = scalar_select %p443, %s440, 3
      %s445 = smul.addr %s442, 4
      %s446 = sadd.s32 %s444, %s445
      %s447 = smul.addr %s446, 8
      %s448 = scalar_lea.vmem %s10, %s447
      %s449 = smul.u32 2, %s27
      %s450 = smul.u32 2, %s27
      %p451 = scmp.lt.s32.totalorder %s26, 1
      %s452 = scalar_select %p451, %s26, 1
      %p453 = scmp.lt.s32.totalorder %s450, 3
      %s454 = scalar_select %p453, %s450, 3
      %s455 = smul.addr %s452, 4
      %s456 = sadd.s32 %s454, %s455
      %s457 = smul.addr %s456, 4
      %s458 = scalar_lea.vmem %s11, %s457
      %s459 = smul.u32 2, %s27
      %v461 = vld [vmem:[%s436] sm:$0xf]
      %v462 = vld [vmem:[%s436 + $0x4] sm:$0xf]
      %v463 = vld [vmem:[%s436 + $0x8] sm:$0xf]
      %v464 = vld [vmem:[%s436 + $0xc] sm:$0xf]
      %s465 = smul.u32 %s27, 16
      %s466 = sshra.s32 %s465, 3
      %s467 = sand.u32 %s465, 7
      %s468 = smul.addr %s466, 4
      %s469 = scalar_lea.vmem %s436, %s468
      %v470 = vld [vmem:[%s469] sm:$0xf]
      %v471 = vld [vmem:[%s469 + $0x4] sm:$0xf]
      %v472 = vld [vmem:[%s2] sm:$0xf]
      %v473 = vld [vmem:[%s2 + $0x4] sm:$0xf]
      %v474 = vld [vmem:[%s2 + $0x8] sm:$0xf]
      %v475 = vld [vmem:[%s2 + $0xc] sm:$0xf]
      %v476 = vld [vmem:[%s2 + $0x10] sm:$0xf]
      %v477 = vld [vmem:[%s2 + $0x14] sm:$0xf]
      %v478 = vld [vmem:[%s2 + $0x18] sm:$0xf]
      %v479 = vld [vmem:[%s2 + $0x1c] sm:$0xf]
      %v480 = vld [vmem:[%s2 + $0x20] sm:$0xf]
      %v481 = vld [vmem:[%s2 + $0x24] sm:$0xf]
      %v482 = vld [vmem:[%s2 + $0x28] sm:$0xf]
      %v483 = vld [vmem:[%s2 + $0x2c] sm:$0xf]
      %v484 = vld [vmem:[%s2 + $0x30] sm:$0xf]
      %v485 = vld [vmem:[%s2 + $0x34] sm:$0xf]
      %v486 = vld [vmem:[%s2 + $0x38] sm:$0xf]
      %v487 = vld [vmem:[%s2 + $0x3c] sm:$0xf]
      %v488 = vld [vmem:[%s3] sm:$0x1]
      %v490 = vlaneseq
      %v491 = vshrl.u32 %v490, 7
      %v492 = vsub.s32 0, %v491
      %v493 = vrot.slane %v488, %v492
      %v497 = vunpack.c.l.b16 %v470
      %v498 = vunpack.c.l.b16 %v471
      %v499 = vpack.c.b16 %v498, %v497
      %v517 = vunpack.c.l.b16 %v472
      %v518 = vunpack.c.l.b16 %v473
      %v519 = vunpack.c.l.b16 %v474
      %v520 = vunpack.c.l.b16 %v475
      %v521 = vunpack.c.l.b16 %v476
      %v522 = vunpack.c.l.b16 %v477
      %v523 = vunpack.c.l.b16 %v478
      %v524 = vunpack.c.l.b16 %v479
      %v525 = vunpack.c.l.b16 %v480
      %v526 = vunpack.c.l.b16 %v481
      %v527 = vunpack.c.l.b16 %v482
      %v528 = vunpack.c.l.b16 %v483
      %v529 = vunpack.c.l.b16 %v484
      %v530 = vunpack.c.l.b16 %v485
      %v531 = vunpack.c.l.b16 %v486
      %v532 = vunpack.c.l.b16 %v487
      %v533 = vpack.c.b16 %v518, %v517
      %v534 = vpack.c.b16 %v520, %v519
      %v535 = vpack.c.b16 %v522, %v521
      %v536 = vpack.c.b16 %v524, %v523
      %v537 = vpack.c.b16 %v526, %v525
      %v538 = vpack.c.b16 %v528, %v527
      %v539 = vpack.c.b16 %v530, %v529
      %v540 = vpack.c.b16 %v532, %v531
      %549 = vmatprep.subr.bf16.mxu0 0
      %550 = vmatpush1.bf16.msra.mxu0 %v533
      %551 = vmatprep.subr.bf16.mxu0 0
      %552 = vmatpush1.bf16.msra.mxu0 %v534
      %553 = vmatprep.subr.bf16.mxu0 0
      %554 = vmatpush1.bf16.msra.mxu0 %v535
      %555 = vmatprep.subr.bf16.mxu0 0
      %556 = vmatpush1.bf16.msra.mxu0 %v536
      %557 = vmatprep.subr.bf16.mxu0 0
      %558 = vmatpush1.bf16.msra.mxu0 %v537
      %559 = vmatprep.subr.bf16.mxu0 0
      %560 = vmatpush1.bf16.msra.mxu0 %v538
      %561 = vmatprep.subr.bf16.mxu0 0
      %562 = vmatpush1.bf16.msra.mxu0 %v539
      %563 = vmatprep.subr.bf16.mxu0 0
      %564 = vmatpush1.bf16.msra.mxu0 %v540
      %565 = vmatprep.subr.bf16.mxu0 0
      %566 = vmatpush1.bf16.msra.mxu0 0
      %567 = vmatprep.subr.bf16.mxu0 0
      %568 = vmatpush1.bf16.msra.mxu0 0
      %569 = vmatprep.subr.bf16.mxu0 0
      %570 = vmatpush1.bf16.msra.mxu0 0
      %571 = vmatprep.subr.bf16.mxu0 0
      %572 = vmatpush1.bf16.msra.mxu0 0
      %573 = vmatprep.subr.bf16.mxu0 0
      %574 = vmatpush1.bf16.msra.mxu0 0
      %575 = vmatprep.subr.bf16.mxu0 0
      %576 = vmatpush1.bf16.msra.mxu0 0
      %577 = vmatprep.subr.bf16.mxu0 0
      %578 = vmatpush1.bf16.msra.mxu0 0
      %579 = vmatprep.subr.bf16.mxu0 0
      %580 = vmatpush1.bf16.msra.mxu0 0
      %581 = vmatprep.mubr.bf16.mxu0 0
      %582 = vmatmul.mubr.bf16.gmra.mrb[0].mxu0 %v499
      %v583 = vpop.f32.mrb[0].mxu0
      %v584 = vadd.f32 %v493, %v583
      %v585 = vpop.f32.mrb[0].mxu0
      %v586 = vpop.f32.mrb[0].mxu0
      %v587 = vadd.f32 %v493, %v586
      %v588 = vpop.f32.mrb[0].mxu0
      %589 = vdwg.mxu0
      %v590 = vld [vmem:[%s4] sm:$0xff]
      %v591 = vld [vmem:[%s4 + $0x8] sm:$0xff]
      %v592 = vld [vmem:[%s4 + $0x10] sm:$0xff]
      %v593 = vld [vmem:[%s4 + $0x18] sm:$0xff]
      %v594 = vld [vmem:[%s4 + $0x20] sm:$0xff]
      %v595 = vld [vmem:[%s4 + $0x28] sm:$0xff]
      %v596 = vld [vmem:[%s4 + $0x30] sm:$0xff]
      %v597 = vld [vmem:[%s4 + $0x38] sm:$0xff]
      %v598 = vld [vmem:[%s4 + $0x40] sm:$0xff]
      %v599 = vld [vmem:[%s4 + $0x48] sm:$0xff]
      %v600 = vld [vmem:[%s4 + $0x50] sm:$0xff]
      %v601 = vld [vmem:[%s4 + $0x58] sm:$0xff]
      %v602 = vld [vmem:[%s4 + $0x60] sm:$0xff]
      %v603 = vld [vmem:[%s4 + $0x68] sm:$0xff]
      %v604 = vld [vmem:[%s4 + $0x70] sm:$0xff]
      %v605 = vld [vmem:[%s4 + $0x78] sm:$0xff]
      %v606 = vld [vmem:[%s5] sm:$0x3]
      %v608 = vlaneseq
      %v609 = vshrl.u32 %v608, 7
      %v610 = vsub.s32 0, %v609
      %v611 = vrot.slane %v606, %v610
      %v612 = vlaneseq
      %v613 = vshrl.u32 %v612, 7
      %v614 = vsub.s32 1, %v613
      %v615 = vrot.slane %v606, %v614
      %v622 = vunpack.c.l.b16 %v461
      %v623 = vunpack.c.l.b16 %v462
      %v624 = vunpack.c.l.b16 %v463
      %v625 = vunpack.c.l.b16 %v464
      %v626 = vpack.c.b16 %v623, %v622
      %v627 = vpack.c.b16 %v625, %v624
      %v646 = vunpack.c.l.b16 %v590
      %v647 = vunpack.c.h.b16 %v590
      %v648 = vunpack.c.l.b16 %v591
      %v649 = vunpack.c.h.b16 %v591
      %v650 = vunpack.c.l.b16 %v592
      %v651 = vunpack.c.h.b16 %v592
      %v652 = vunpack.c.l.b16 %v593
      %v653 = vunpack.c.h.b16 %v593
      %v654 = vunpack.c.l.b16 %v594
      %v655 = vunpack.c.h.b16 %v594
      %v656 = vunpack.c.l.b16 %v595
      %v657 = vunpack.c.h.b16 %v595
      %v658 = vunpack.c.l.b16 %v596
      %v659 = vunpack.c.h.b16 %v596
      %v660 = vunpack.c.l.b16 %v597
      %v661 = vunpack.c.h.b16 %v597
      %v662 = vunpack.c.l.b16 %v598
      %v663 = vunpack.c.h.b16 %v598
      %v664 = vunpack.c.l.b16 %v599
      %v665 = vunpack.c.h.b16 %v599
      %v666 = vunpack.c.l.b16 %v600
      %v667 = vunpack.c.h.b16 %v600
      %v668 = vunpack.c.l.b16 %v601
      %v669 = vunpack.c.h.b16 %v601
      %v670 = vunpack.c.l.b16 %v602
      %v671 = vunpack.c.h.b16 %v602
      %v672 = vunpack.c.l.b16 %v603
      %v673 = vunpack.c.h.b16 %v603
      %v674 = vunpack.c.l.b16 %v604
      %v675 = vunpack.c.h.b16 %v604
      %v676 = vunpack.c.l.b16 %v605
      %v677 = vunpack.c.h.b16 %v605
      %v678 = vpack.c.b16 %v648, %v646
      %v679 = vpack.c.b16 %v649, %v647
      %v680 = vpack.c.b16 %v652, %v650
      %v681 = vpack.c.b16 %v653, %v651
      %v682 = vpack.c.b16 %v656, %v654
      %v683 = vpack.c.b16 %v657, %v655
      %v684 = vpack.c.b16 %v660, %v658
      %v685 = vpack.c.b16 %v661, %v659
      %v686 = vpack.c.b16 %v664, %v662
      %v687 = vpack.c.b16 %v665, %v663
      %v688 = vpack.c.b16 %v668, %v666
      %v689 = vpack.c.b16 %v669, %v667
      %v690 = vpack.c.b16 %v672, %v670
      %v691 = vpack.c.b16 %v673, %v671
      %v692 = vpack.c.b16 %v676, %v674
      %v693 = vpack.c.b16 %v677, %v675
      %710 = vmatprep.subr.bf16.mxu0 %v679
      %711 = vmatpush1.bf16.msra.mxu0 %v678
      %712 = vmatprep.subr.bf16.mxu0 %v681
      %713 = vmatpush1.bf16.msra.mxu0 %v680
      %714 = vmatprep.subr.bf16.mxu0 %v683
      %715 = vmatpush1.bf16.msra.mxu0 %v682
      %716 = vmatprep.subr.bf16.mxu0 %v685
      %717 = vmatpush1.bf16.msra.mxu0 %v684
      %718 = vmatprep.subr.bf16.mxu0 %v687
      %719 = vmatpush1.bf16.msra.mxu0 %v686
      %720 = vmatprep.subr.bf16.mxu0 %v689
      %721 = vmatpush1.bf16.msra.mxu0 %v688
      %722 = vmatprep.subr.bf16.mxu0 %v691
      %723 = vmatpush1.bf16.msra.mxu0 %v690
      %724 = vmatprep.subr.bf16.mxu0 %v693
      %725 = vmatpush1.bf16.msra.mxu0 %v692
      %726 = vmatprep.subr.bf16.mxu0 0
      %727 = vmatpush1.bf16.msra.mxu0 0
      %728 = vmatprep.subr.bf16.mxu0 0
      %729 = vmatpush1.bf16.msra.mxu0 0
      %730 = vmatprep.subr.bf16.mxu0 0
      %731 = vmatpush1.bf16.msra.mxu0 0
      %732 = vmatprep.subr.bf16.mxu0 0
      %733 = vmatpush1.bf16.msra.mxu0 0
      %734 = vmatprep.subr.bf16.mxu0 0
      %735 = vmatpush1.bf16.msra.mxu0 0
      %736 = vmatprep.subr.bf16.mxu0 0
      %737 = vmatpush1.bf16.msra.mxu0 0
      %738 = vmatprep.subr.bf16.mxu0 0
      %739 = vmatpush1.bf16.msra.mxu0 0
      %740 = vmatprep.subr.bf16.mxu0 0
      %741 = vmatpush1.bf16.msra.mxu0 0
      %742 = vmatprep.mubr.bf16.mxu0 0
      %743 = vmatmul.mubr.bf16.gmra.mrb[0].mxu0 %v626
      %v744 = vpop.f32.mrb[0].mxu0
      %v745 = vadd.f32 %v611, %v744
      %v746 = vpop.f32.mrb[0].mxu0
      %v747 = vadd.f32 %v615, %v746
      %v748 = vpop.f32.mrb[0].mxu0
      %v749 = vadd.f32 %v611, %v748
      %v750 = vpop.f32.mrb[0].mxu0
      %v751 = vadd.f32 %v615, %v750
      %752 = vmatprep.mubr.bf16.mxu0 0
      %753 = vmatmul.mubr.bf16.gmra.mrb[0].mxu0 %v627
      %v754 = vpop.f32.mrb[0].mxu0
      %v755 = vadd.f32 %v611, %v754
      %v756 = vpop.f32.mrb[0].mxu0
      %v757 = vadd.f32 %v615, %v756
      %v758 = vpop.f32.mrb[0].mxu0
      %v759 = vadd.f32 %v611, %v758
      %v760 = vpop.f32.mrb[0].mxu0
      %v761 = vadd.f32 %v615, %v760
      %762 = vdwg.mxu0
      %v763 = vlaneseq
      %v764 = vshrl.u32 %v763, 7
      %v765 = vadd.s32 %v764, 8
      %v766 = vstv %s465
      %v767 = vadd.s32 %v766, %v764
      %v768 = vadd.s32 %v766, %v765
      %v769 = vlaneseq
      %v770 = vand.u32 %v769, 127
      %vm771 = vcmp.gt.s32.totalorder %v770, %v767
      %vm772 = vcmp.gt.s32.totalorder %v770, %v768
      %v773 = vsel %vm771, -1e+09, 0.0
      %v774 = vsel %vm772, -1e+09, 0.0
      %v775 = vld [vmem:[%s439] sm:$0x1]
      %vm776 = vcmp.gt.f32.partialorder %v775, 0.5
      %v777 = vsel %vm776, 0.0, -1e+09
      %v779 = vlaneseq
      %v780 = vshrl.u32 %v779, 7
      %v781 = vsub.s32 0, %v780
      %v782 = vrot.slane %v777, %v781
      %v784 = vadd.f32 %v773, %v782
      %v785 = vadd.f32 %v774, %v782
      %v786 = vpack.c.bf16 %v587, %v584
      %v787 = vpack.c.bf16 %v749, %v745
      %v788 = vpack.c.bf16 %v759, %v755
      %v789 = vpack.c.bf16 %v751, %v747
      %v790 = vpack.c.bf16 %v761, %v757
      %vm791 = vcmask 261120
      %v793 = vsel %vm791, %v786, 0
      %v796 = vsel %vm791, %v787, 0
      %v799 = vsel %vm791, %v788, 0
      %801 = vmatprep.subr.bf16.mxu0 0
      %802 = vmatpush1.bf16.xpose.msra.mxu0 %v796
      %803 = vmatprep.subr.bf16.mxu0 0
      %804 = vmatpush1.bf16.xpose.msra.mxu0 %v799
      %805 = vmatprep.subr.bf16.mxu0 0
      %806 = vmatpush1.bf16.xpose.msra.mxu0 0
      %807 = vmatprep.subr.bf16.mxu0 0
      %808 = vmatpush1.bf16.xpose.msra.mxu0 0
      %809 = vmatprep.subr.bf16.mxu0 0
      %810 = vmatpush1.bf16.xpose.msra.mxu0 0
      %811 = vmatprep.subr.bf16.mxu0 0
      %812 = vmatpush1.bf16.xpose.msra.mxu0 0
      %813 = vmatprep.subr.bf16.mxu0 0
      %814 = vmatpush1.bf16.xpose.msra.mxu0 0
      %815 = vmatprep.subr.bf16.mxu0 0
      %816 = vmatpush1.bf16.xpose.msra.mxu0 0
      %817 = vmatprep.subr.bf16.mxu0 0
      %818 = vmatpush1.bf16.xpose.msra.mxu0 0
      %819 = vmatprep.subr.bf16.mxu0 0
      %820 = vmatpush1.bf16.xpose.msra.mxu0 0
      %821 = vmatprep.subr.bf16.mxu0 0
      %822 = vmatpush1.bf16.xpose.msra.mxu0 0
      %823 = vmatprep.subr.bf16.mxu0 0
      %824 = vmatpush1.bf16.xpose.msra.mxu0 0
      %825 = vmatprep.subr.bf16.mxu0 0
      %826 = vmatpush1.bf16.xpose.msra.mxu0 0
      %827 = vmatprep.subr.bf16.mxu0 0
      %828 = vmatpush1.bf16.xpose.msra.mxu0 0
      %829 = vmatprep.subr.bf16.mxu0 0
      %830 = vmatpush1.bf16.xpose.msra.mxu0 0
      %831 = vmatprep.subr.bf16.mxu0 0
      %832 = vmatpush1.bf16.xpose.msra.mxu0 0
      %833 = vmatprep.mubr.bf16.mxu0 0
      %834 = vmatmul.mubr.bf16.gmra.mrb[0].mxu0 %v793
      %v835 = vpop.f32.mrb[0].mxu0
      %v836 = vadd.f32 %v784, %v835
      %v837 = vpop.f32.mrb[0].mxu0
      %v838 = vpop.f32.mrb[0].mxu0
      %v839 = vadd.f32 %v785, %v838
      %v840 = vpop.f32.mrb[0].mxu0
      %841 = vdwg.mxu0
      %v842 = vsel %vm791, %v836, -inf
      %843 = vmax.xlane.f32.xlu0 %v842
      %v844 = vpop.xlane.xlu0 %843
      %v845 = vsel %vm791, %v839, -inf
      %846 = vmax.xlane.f32.xlu0 %v845
      %v847 = vpop.xlane.xlu0 %846
      %v848 = vsub.f32 %v836, %v844
      %v849 = vsub.f32 %v839, %v847
      %v850 = vmul.f32 %v848, 1.442695
      %v851 = vpow.pop %v850
      %v852 = vmul.f32 %v849, 1.442695
      %v853 = vpow.pop %v852
      %v854 = vsel %vm791, %v851, 0.0
      %855 = vadd.xlane.f32.xlu0 %v854
      %v856 = vpop.xlane.xlu0 %855
      %v857 = vsel %vm791, %v853, 0.0
      %858 = vadd.xlane.f32.xlu0 %v857
      %v859 = vpop.xlane.xlu0 %858
      %v860 = vrcp.pop %v856
      %v861 = vrcp.pop %v859
      %v862 = vmul.f32 %v851, %v860
      %v863 = vmul.f32 %v853, %v861
      %v864 = vpack.c.bf16 %v863, %v862
      %v866 = vsel %vm791, %v864, 0
      %868 = vmatprep.subr.bf16.mxu0 0
      %869 = vmatpush1.bf16.msra.mxu0 %v789
      %870 = vmatprep.subr.bf16.mxu0 0
      %871 = vmatpush1.bf16.msra.mxu0 %v790
      %872 = vmatprep.subr.bf16.mxu0 0
      %873 = vmatpush1.bf16.msra.mxu0 0
      %874 = vmatprep.subr.bf16.mxu0 0
      %875 = vmatpush1.bf16.msra.mxu0 0
      %876 = vmatprep.subr.bf16.mxu0 0
      %877 = vmatpush1.bf16.msra.mxu0 0
      %878 = vmatprep.subr.bf16.mxu0 0
      %879 = vmatpush1.bf16.msra.mxu0 0
      %880 = vmatprep.subr.bf16.mxu0 0
      %881 = vmatpush1.bf16.msra.mxu0 0
      %882 = vmatprep.subr.bf16.mxu0 0
      %883 = vmatpush1.bf16.msra.mxu0 0
      %884 = vmatprep.subr.bf16.mxu0 0
      %885 = vmatpush1.bf16.msra.mxu0 0
      %886 = vmatprep.subr.bf16.mxu0 0
      %887 = vmatpush1.bf16.msra.mxu0 0
      %888 = vmatprep.subr.bf16.mxu0 0
      %889 = vmatpush1.bf16.msra.mxu0 0
      %890 = vmatprep.subr.bf16.mxu0 0
      %891 = vmatpush1.bf16.msra.mxu0 0
      %892 = vmatprep.subr.bf16.mxu0 0
      %893 = vmatpush1.bf16.msra.mxu0 0
      %894 = vmatprep.subr.bf16.mxu0 0
      %895 = vmatpush1.bf16.msra.mxu0 0
      %896 = vmatprep.subr.bf16.mxu0 0
      %897 = vmatpush1.bf16.msra.mxu0 0
      %898 = vmatprep.subr.bf16.mxu0 0
      %899 = vmatpush1.bf16.msra.mxu0 0
      %900 = vmatprep.mubr.bf16.mxu0 0
      %901 = vmatmul.mubr.bf16.gmra.mrb[0].mxu0 %v866
      %v902 = vpop.f32.mrb[0].mxu0
      %v903 = vadd.f32 0.0, %v902
      %v904 = vpop.f32.mrb[0].mxu0
      %v905 = vpop.f32.mrb[0].mxu0
      %v906 = vadd.f32 0.0, %v905
      %v907 = vpop.f32.mrb[0].mxu0
      %908 = vdwg.mxu0
      %v909 = vpack.c.bf16 %v906, %v903
      %911 = vrot.lane.b32.xlu0 %v786, 96
      %v912 = vpop.permute.xlu0 %911
      %915 = vrot.lane.b32.xlu0 %v787, 96
      %v916 = vpop.permute.xlu0 %915
      %917 = vrot.lane.b32.xlu0 %v788, 96
      %v918 = vpop.permute.xlu0 %917
      %v920 = vsel %vm791, %v912, 0
      %v923 = vsel %vm791, %v916, 0
      %v926 = vsel %vm791, %v918, 0
      %928 = vmatprep.subr.bf16.mxu0 0
      %929 = vmatpush1.bf16.xpose.msra.mxu0 %v923
      %930 = vmatprep.subr.bf16.mxu0 0
      %931 = vmatpush1.bf16.xpose.msra.mxu0 %v926
      %932 = vmatprep.subr.bf16.mxu0 0
      %933 = vmatpush1.bf16.xpose.msra.mxu0 0
      %934 = vmatprep.subr.bf16.mxu0 0
      %935 = vmatpush1.bf16.xpose.msra.mxu0 0
      %936 = vmatprep.subr.bf16.mxu0 0
      %937 = vmatpush1.bf16.xpose.msra.mxu0 0
      %938 = vmatprep.subr.bf16.mxu0 0
      %939 = vmatpush1.bf16.xpose.msra.mxu0 0
      %940 = vmatprep.subr.bf16.mxu0 0
      %941 = vmatpush1.bf16.xpose.msra.mxu0 0
      %942 = vmatprep.subr.bf16.mxu0 0
      %943 = vmatpush1.bf16.xpose.msra.mxu0 0
      %944 = vmatprep.subr.bf16.mxu0 0
      %945 = vmatpush1.bf16.xpose.msra.mxu0 0
      %946 = vmatprep.subr.bf16.mxu0 0
      %947 = vmatpush1.bf16.xpose.msra.mxu0 0
      %948 = vmatprep.subr.bf16.mxu0 0
      %949 = vmatpush1.bf16.xpose.msra.mxu0 0
      %950 = vmatprep.subr.bf16.mxu0 0
      %951 = vmatpush1.bf16.xpose.msra.mxu0 0
      %952 = vmatprep.subr.bf16.mxu0 0
      %953 = vmatpush1.bf16.xpose.msra.mxu0 0
      %954 = vmatprep.subr.bf16.mxu0 0
      %955 = vmatpush1.bf16.xpose.msra.mxu0 0
      %956 = vmatprep.subr.bf16.mxu0 0
      %957 = vmatpush1.bf16.xpose.msra.mxu0 0
      %958 = vmatprep.subr.bf16.mxu0 0
      %959 = vmatpush1.bf16.xpose.msra.mxu0 0
      %960 = vmatprep.mubr.bf16.mxu0 0
      %961 = vmatmul.mubr.bf16.gmra.mrb[0].mxu0 %v920
      %v962 = vpop.f32.mrb[0].mxu0
      %v963 = vadd.f32 %v784, %v962
      %v964 = vpop.f32.mrb[0].mxu0
      %v965 = vpop.f32.mrb[0].mxu0
      %v966 = vadd.f32 %v785, %v965
      %v967 = vpop.f32.mrb[0].mxu0
      %968 = vdwg.mxu0
      %v969 = vsel %vm791, %v963, -inf
      %970 = vmax.xlane.f32.xlu0 %v969
      %v971 = vpop.xlane.xlu0 %970
      %v972 = vsel %vm791, %v966, -inf
      %973 = vmax.xlane.f32.xlu0 %v972
      %v974 = vpop.xlane.xlu0 %973
      %v975 = vsub.f32 %v963, %v971
      %v976 = vsub.f32 %v966, %v974
      %v977 = vmul.f32 %v975, 1.442695
      %v978 = vpow.pop %v977
      %v979 = vmul.f32 %v976, 1.442695
      %v980 = vpow.pop %v979
      %v981 = vsel %vm791, %v978, 0.0
      %982 = vadd.xlane.f32.xlu0 %v981
      %v983 = vpop.xlane.xlu0 %982
      %v984 = vsel %vm791, %v980, 0.0
      %985 = vadd.xlane.f32.xlu0 %v984
      %v986 = vpop.xlane.xlu0 %985
      %v987 = vrcp.pop %v983
      %v988 = vrcp.pop %v986
      %v989 = vmul.f32 %v978, %v987
      %v990 = vmul.f32 %v980, %v988
      %v991 = vpack.c.bf16 %v990, %v989
      %994 = vrot.lane.b32.xlu0 %v789, 96
      %v995 = vpop.permute.xlu0 %994
      %996 = vrot.lane.b32.xlu0 %v790, 96
      %v997 = vpop.permute.xlu0 %996
      %v1001 = vsel %vm791, %v991, 0
      %1003 = vmatprep.subr.bf16.mxu0 0
      %1004 = vmatpush1.bf16.msra.mxu0 %v995
      %1005 = vmatprep.subr.bf16.mxu0 0
      %1006 = vmatpush1.bf16.msra.mxu0 %v997
      %1007 = vmatprep.subr.bf16.mxu0 0
      %1008 = vmatpush1.bf16.msra.mxu0 0
      %1009 = vmatprep.subr.bf16.mxu0 0
      %1010 = vmatpush1.bf16.msra.mxu0 0
      %1011 = vmatprep.subr.bf16.mxu0 0
      %1012 = vmatpush1.bf16.msra.mxu0 0
      %1013 = vmatprep.subr.bf16.mxu0 0
      %1014 = vmatpush1.bf16.msra.mxu0 0
      %1015 = vmatprep.subr.bf16.mxu0 0
      %1016 = vmatpush1.bf16.msra.mxu0 0
      %1017 = vmatprep.subr.bf16.mxu0 0
      %1018 = vmatpush1.bf16.msra.mxu0 0
      %1019 = vmatprep.subr.bf16.mxu0 0
      %1020 = vmatpush1.bf16.msra.mxu0 0
      %1021 = vmatprep.subr.bf16.mxu0 0
      %1022 = vmatpush1.bf16.msra.mxu0 0
      %1023 = vmatprep.subr.bf16.mxu0 0
      %1024 = vmatpush1.bf16.msra.mxu0 0
      %1025 = vmatprep.subr.bf16.mxu0 0
      %1026 = vmatpush1.bf16.msra.mxu0 0
      %1027 = vmatprep.subr.bf16.mxu0 0
      %1028 = vmatpush1.bf16.msra.mxu0 0
      %1029 = vmatprep.subr.bf16.mxu0 0
      %1030 = vmatpush1.bf16.msra.mxu0 0
      %1031 = vmatprep.subr.bf16.mxu0 0
      %1032 = vmatpush1.bf16.msra.mxu0 0
      %1033 = vmatprep.subr.bf16.mxu0 0
      %1034 = vmatpush1.bf16.msra.mxu0 0
      %1035 = vmatprep.mubr.bf16.mxu0 0
      %1036 = vmatmul.mubr.bf16.gmra.mrb[0].mxu0 %v1001
      %v1037 = vpop.f32.mrb[0].mxu0
      %v1038 = vadd.f32 0.0, %v1037
      %v1039 = vpop.f32.mrb[0].mxu0
      %v1040 = vpop.f32.mrb[0].mxu0
      %v1041 = vadd.f32 0.0, %v1040
      %v1042 = vpop.f32.mrb[0].mxu0
      %1043 = vdwg.mxu0
      %v1044 = vpack.c.bf16 %v1041, %v1038
      %1045 = vrot.lane.b32.xlu0 %v786, 64
      %v1046 = vpop.permute.xlu0 %1045
      %1047 = vrot.lane.b32.xlu0 %v787, 64
      %v1048 = vpop.permute.xlu0 %1047
      %1049 = vrot.lane.b32.xlu0 %v788, 64
      %v1050 = vpop.permute.xlu0 %1049
      %v1052 = vsel %vm791, %v1046, 0
      %v1055 = vsel %vm791, %v1048, 0
      %v1058 = vsel %vm791, %v1050, 0
      %1060 = vmatprep.subr.bf16.mxu0 0
      %1061 = vmatpush1.bf16.xpose.msra.mxu0 %v1055
      %1062 = vmatprep.subr.bf16.mxu0 0
      %1063 = vmatpush1.bf16.xpose.msra.mxu0 %v1058
      %1064 = vmatprep.subr.bf16.mxu0 0
      %1065 = vmatpush1.bf16.xpose.msra.mxu0 0
      %1066 = vmatprep.subr.bf16.mxu0 0
      %1067 = vmatpush1.bf16.xpose.msra.mxu0 0
      %1068 = vmatprep.subr.bf16.mxu0 0
      %1069 = vmatpush1.bf16.xpose.msra.mxu0 0
      %1070 = vmatprep.subr.bf16.mxu0 0
      %1071 = vmatpush1.bf16.xpose.msra.mxu0 0
      %1072 = vmatprep.subr.bf16.mxu0 0
      %1073 = vmatpush1.bf16.xpose.msra.mxu0 0
      %1074 = vmatprep.subr.bf16.mxu0 0
      %1075 = vmatpush1.bf16.xpose.msra.mxu0 0
      %1076 = vmatprep.subr.bf16.mxu0 0
      %1077 = vmatpush1.bf16.xpose.msra.mxu0 0
      %1078 = vmatprep.subr.bf16.mxu0 0
      %1079 = vmatpush1.bf16.xpose.msra.mxu0 0
      %1080 = vmatprep.subr.bf16.mxu0 0
      %1081 = vmatpush1.bf16.xpose.msra.mxu0 0
      %1082 = vmatprep.subr.bf16.mxu0 0
      %1083 = vmatpush1.bf16.xpose.msra.mxu0 0
      %1084 = vmatprep.subr.bf16.mxu0 0
      %1085 = vmatpush1.bf16.xpose.msra.mxu0 0
      %1086 = vmatprep.subr.bf16.mxu0 0
      %1087 = vmatpush1.bf16.xpose.msra.mxu0 0
      %1088 = vmatprep.subr.bf16.mxu0 0
      %1089 = vmatpush1.bf16.xpose.msra.mxu0 0
      %1090 = vmatprep.subr.bf16.mxu0 0
      %1091 = vmatpush1.bf16.xpose.msra.mxu0 0
      %1092 = vmatprep.mubr.bf16.mxu0 0
      %1093 = vmatmul.mubr.bf16.gmra.mrb[0].mxu0 %v1052
      %v1094 = vpop.f32.mrb[0].mxu0
      %v1095 = vadd.f32 %v784, %v1094
      %v1096 = vpop.f32.mrb[0].mxu0
      %v1097 = vpop.f32.mrb[0].mxu0
      %v1098 = vadd.f32 %v785, %v1097
      %v1099 = vpop.f32.mrb[0].mxu0
      %1100 = vdwg.mxu0
      %v1101 = vsel %vm791, %v1095, -inf
      %1102 = vmax.xlane.f32.xlu0 %v1101
      %v1103 = vpop.xlane.xlu0 %1102
      %v1104 = vsel %vm791, %v1098, -inf
      %1105 = vmax.xlane.f32.xlu0 %v1104
      %v1106 = vpop.xlane.xlu0 %1105
      %v1107 = vsub.f32 %v1095, %v1103
      %v1108 = vsub.f32 %v1098, %v1106
      %v1109 = vmul.f32 %v1107, 1.442695
      %v1110 = vpow.pop %v1109
      %v1111 = vmul.f32 %v1108, 1.442695
      %v1112 = vpow.pop %v1111
      %v1113 = vsel %vm791, %v1110, 0.0
      %1114 = vadd.xlane.f32.xlu0 %v1113
      %v1115 = vpop.xlane.xlu0 %1114
      %v1116 = vsel %vm791, %v1112, 0.0
      %1117 = vadd.xlane.f32.xlu0 %v1116
      %v1118 = vpop.xlane.xlu0 %1117
      %v1119 = vrcp.pop %v1115
      %v1120 = vrcp.pop %v1118
      %v1121 = vmul.f32 %v1110, %v1119
      %v1122 = vmul.f32 %v1112, %v1120
      %v1123 = vpack.c.bf16 %v1122, %v1121
      %1124 = vrot.lane.b32.xlu0 %v789, 64
      %v1125 = vpop.permute.xlu0 %1124
      %1126 = vrot.lane.b32.xlu0 %v790, 64
      %v1127 = vpop.permute.xlu0 %1126
      %v1131 = vsel %vm791, %v1123, 0
      %1133 = vmatprep.subr.bf16.mxu0 0
      %1134 = vmatpush1.bf16.msra.mxu0 %v1125
      %1135 = vmatprep.subr.bf16.mxu0 0
      %1136 = vmatpush1.bf16.msra.mxu0 %v1127
      %1137 = vmatprep.subr.bf16.mxu0 0
      %1138 = vmatpush1.bf16.msra.mxu0 0
      %1139 = vmatprep.subr.bf16.mxu0 0
      %1140 = vmatpush1.bf16.msra.mxu0 0
      %1141 = vmatprep.subr.bf16.mxu0 0
      %1142 = vmatpush1.bf16.msra.mxu0 0
      %1143 = vmatprep.subr.bf16.mxu0 0
      %1144 = vmatpush1.bf16.msra.mxu0 0
      %1145 = vmatprep.subr.bf16.mxu0 0
      %1146 = vmatpush1.bf16.msra.mxu0 0
      %1147 = vmatprep.subr.bf16.mxu0 0
      %1148 = vmatpush1.bf16.msra.mxu0 0
      %1149 = vmatprep.subr.bf16.mxu0 0
      %1150 = vmatpush1.bf16.msra.mxu0 0
      %1151 = vmatprep.subr.bf16.mxu0 0
      %1152 = vmatpush1.bf16.msra.mxu0 0
      %1153 = vmatprep.subr.bf16.mxu0 0
      %1154 = vmatpush1.bf16.msra.mxu0 0
      %1155 = vmatprep.subr.bf16.mxu0 0
      %1156 = vmatpush1.bf16.msra.mxu0 0
      %1157 = vmatprep.subr.bf16.mxu0 0
      %1158 = vmatpush1.bf16.msra.mxu0 0
      %1159 = vmatprep.subr.bf16.mxu0 0
      %1160 = vmatpush1.bf16.msra.mxu0 0
      %1161 = vmatprep.subr.bf16.mxu0 0
      %1162 = vmatpush1.bf16.msra.mxu0 0
      %1163 = vmatprep.subr.bf16.mxu0 0
      %1164 = vmatpush1.bf16.msra.mxu0 0
      %1165 = vmatprep.mubr.bf16.mxu0 0
      %1166 = vmatmul.mubr.bf16.gmra.mrb[0].mxu0 %v1131
      %v1167 = vpop.f32.mrb[0].mxu0
      %v1168 = vadd.f32 0.0, %v1167
      %v1169 = vpop.f32.mrb[0].mxu0
      %v1170 = vpop.f32.mrb[0].mxu0
      %v1171 = vadd.f32 0.0, %v1170
      %v1172 = vpop.f32.mrb[0].mxu0
      %1173 = vdwg.mxu0
      %v1174 = vpack.c.bf16 %v1171, %v1168
      %1175 = vrot.lane.b32.xlu0 %v786, 32
      %v1176 = vpop.permute.xlu0 %1175
      %1177 = vrot.lane.b32.xlu0 %v787, 32
      %v1178 = vpop.permute.xlu0 %1177
      %1179 = vrot.lane.b32.xlu0 %v788, 32
      %v1180 = vpop.permute.xlu0 %1179
      %v1182 = vsel %vm791, %v1176, 0
      %v1185 = vsel %vm791, %v1178, 0
      %v1188 = vsel %vm791, %v1180, 0
      %1190 = vmatprep.subr.bf16.mxu0 0
      %1191 = vmatpush1.bf16.xpose.msra.mxu0 %v1185
      %1192 = vmatprep.subr.bf16.mxu0 0
      %1193 = vmatpush1.bf16.xpose.msra.mxu0 %v1188
      %1194 = vmatprep.subr.bf16.mxu0 0
      %1195 = vmatpush1.bf16.xpose.msra.mxu0 0
      %1196 = vmatprep.subr.bf16.mxu0 0
      %1197 = vmatpush1.bf16.xpose.msra.mxu0 0
      %1198 = vmatprep.subr.bf16.mxu0 0
      %1199 = vmatpush1.bf16.xpose.msra.mxu0 0
      %1200 = vmatprep.subr.bf16.mxu0 0
      %1201 = vmatpush1.bf16.xpose.msra.mxu0 0
      %1202 = vmatprep.subr.bf16.mxu0 0
      %1203 = vmatpush1.bf16.xpose.msra.mxu0 0
      %1204 = vmatprep.subr.bf16.mxu0 0
      %1205 = vmatpush1.bf16.xpose.msra.mxu0 0
      %1206 = vmatprep.subr.bf16.mxu0 0
      %1207 = vmatpush1.bf16.xpose.msra.mxu0 0
      %1208 = vmatprep.subr.bf16.mxu0 0
      %1209 = vmatpush1.bf16.xpose.msra.mxu0 0
      %1210 = vmatprep.subr.bf16.mxu0 0
      %1211 = vmatpush1.bf16.xpose.msra.mxu0 0
      %1212 = vmatprep.subr.bf16.mxu0 0
      %1213 = vmatpush1.bf16.xpose.msra.mxu0 0
      %1214 = vmatprep.subr.bf16.mxu0 0
      %1215 = vmatpush1.bf16.xpose.msra.mxu0 0
      %1216 = vmatprep.subr.bf16.mxu0 0
      %1217 = vmatpush1.bf16.xpose.msra.mxu0 0
      %1218 = vmatprep.subr.bf16.mxu0 0
      %1219 = vmatpush1.bf16.xpose.msra.mxu0 0
      %1220 = vmatprep.subr.bf16.mxu0 0
      %1221 = vmatpush1.bf16.xpose.msra.mxu0 0
      %1222 = vmatprep.mubr.bf16.mxu0 0
      %1223 = vmatmul.mubr.bf16.gmra.mrb[0].mxu0 %v1182
      %v1224 = vpop.f32.mrb[0].mxu0
      %v1225 = vadd.f32 %v784, %v1224
      %v1226 = vpop.f32.mrb[0].mxu0
      %v1227 = vpop.f32.mrb[0].mxu0
      %v1228 = vadd.f32 %v785, %v1227
      %v1229 = vpop.f32.mrb[0].mxu0
      %1230 = vdwg.mxu0
      %v1231 = vsel %vm791, %v1225, -inf
      %1232 = vmax.xlane.f32.xlu0 %v1231
      %v1233 = vpop.xlane.xlu0 %1232
      %v1234 = vsel %vm791, %v1228, -inf
      %1235 = vmax.xlane.f32.xlu0 %v1234
      %v1236 = vpop.xlane.xlu0 %1235
      %v1237 = vsub.f32 %v1225, %v1233
      %v1238 = vsub.f32 %v1228, %v1236
      %v1239 = vmul.f32 %v1237, 1.442695
      %v1240 = vpow.pop %v1239
      %v1241 = vmul.f32 %v1238, 1.442695
      %v1242 = vpow.pop %v1241
      %v1243 = vsel %vm791, %v1240, 0.0
      %1244 = vadd.xlane.f32.xlu0 %v1243
      %v1245 = vpop.xlane.xlu0 %1244
      %v1246 = vsel %vm791, %v1242, 0.0
      %1247 = vadd.xlane.f32.xlu0 %v1246
      %v1248 = vpop.xlane.xlu0 %1247
      %v1249 = vrcp.pop %v1245
      %v1250 = vrcp.pop %v1248
      %v1251 = vmul.f32 %v1240, %v1249
      %v1252 = vmul.f32 %v1242, %v1250
      %v1253 = vpack.c.bf16 %v1252, %v1251
      %1254 = vrot.lane.b32.xlu0 %v789, 32
      %v1255 = vpop.permute.xlu0 %1254
      %1256 = vrot.lane.b32.xlu0 %v790, 32
      %v1257 = vpop.permute.xlu0 %1256
      %v1261 = vsel %vm791, %v1253, 0
      %1263 = vmatprep.subr.bf16.mxu0 0
      %1264 = vmatpush1.bf16.msra.mxu0 %v1255
      %1265 = vmatprep.subr.bf16.mxu0 0
      %1266 = vmatpush1.bf16.msra.mxu0 %v1257
      %1267 = vmatprep.subr.bf16.mxu0 0
      %1268 = vmatpush1.bf16.msra.mxu0 0
      %1269 = vmatprep.subr.bf16.mxu0 0
      %1270 = vmatpush1.bf16.msra.mxu0 0
      %1271 = vmatprep.subr.bf16.mxu0 0
      %1272 = vmatpush1.bf16.msra.mxu0 0
      %1273 = vmatprep.subr.bf16.mxu0 0
      %1274 = vmatpush1.bf16.msra.mxu0 0
      %1275 = vmatprep.subr.bf16.mxu0 0
      %1276 = vmatpush1.bf16.msra.mxu0 0
      %1277 = vmatprep.subr.bf16.mxu0 0
      %1278 = vmatpush1.bf16.msra.mxu0 0
      %1279 = vmatprep.subr.bf16.mxu0 0
      %1280 = vmatpush1.bf16.msra.mxu0 0
      %1281 = vmatprep.subr.bf16.mxu0 0
      %1282 = vmatpush1.bf16.msra.mxu0 0
      %1283 = vmatprep.subr.bf16.mxu0 0
      %1284 = vmatpush1.bf16.msra.mxu0 0
      %1285 = vmatprep.subr.bf16.mxu0 0
      %1286 = vmatpush1.bf16.msra.mxu0 0
      %1287 = vmatprep.subr.bf16.mxu0 0
      %1288 = vmatpush1.bf16.msra.mxu0 0
      %1289 = vmatprep.subr.bf16.mxu0 0
      %1290 = vmatpush1.bf16.msra.mxu0 0
      %1291 = vmatprep.subr.bf16.mxu0 0
      %1292 = vmatpush1.bf16.msra.mxu0 0
      %1293 = vmatprep.subr.bf16.mxu0 0
      %1294 = vmatpush1.bf16.msra.mxu0 0
      %1295 = vmatprep.mubr.bf16.mxu0 0
      %1296 = vmatmul.mubr.bf16.gmra.mrb[0].mxu0 %v1261
      %v1297 = vpop.f32.mrb[0].mxu0
      %v1298 = vadd.f32 0.0, %v1297
      %v1299 = vpop.f32.mrb[0].mxu0
      %v1300 = vpop.f32.mrb[0].mxu0
      %v1301 = vadd.f32 0.0, %v1300
      %v1302 = vpop.f32.mrb[0].mxu0
      %1303 = vdwg.mxu0
      %v1304 = vpack.c.bf16 %v1301, %v1298
      %1306 = vrot.lane.b32.xlu0 %v1044, 32
      %v1307 = vpop.permute.xlu0 %1306
      %1309 = vrot.lane.b32.xlu0 %v1174, 64
      %v1310 = vpop.permute.xlu0 %1309
      %1312 = vrot.lane.b32.xlu0 %v1304, 96
      %v1313 = vpop.permute.xlu0 %1312
      %v1316 = vsel %vm791, %v909, %v1307
      %vm1317 = vcmask 523264
      %v1319 = vsel %vm1317, %v1316, %v1310
      %vm1320 = vcmask 785408
      %v1322 = vsel %vm1320, %v1319, %v1313
      %v1324 = vld [vmem:[%s6] sm:$0xf]
      %v1325 = vld [vmem:[%s6 + $0x4] sm:$0xf]
      %v1326 = vld [vmem:[%s6 + $0x8] sm:$0xf]
      %v1327 = vld [vmem:[%s6 + $0xc] sm:$0xf]
      %v1328 = vld [vmem:[%s6 + $0x10] sm:$0xf]
      %v1329 = vld [vmem:[%s6 + $0x14] sm:$0xf]
      %v1330 = vld [vmem:[%s6 + $0x18] sm:$0xf]
      %v1331 = vld [vmem:[%s6 + $0x1c] sm:$0xf]
      %v1332 = vld [vmem:[%s6 + $0x20] sm:$0xf]
      %v1333 = vld [vmem:[%s6 + $0x24] sm:$0xf]
      %v1334 = vld [vmem:[%s6 + $0x28] sm:$0xf]
      %v1335 = vld [vmem:[%s6 + $0x2c] sm:$0xf]
      %v1336 = vld [vmem:[%s6 + $0x30] sm:$0xf]
      %v1337 = vld [vmem:[%s6 + $0x34] sm:$0xf]
      %v1338 = vld [vmem:[%s6 + $0x38] sm:$0xf]
      %v1339 = vld [vmem:[%s6 + $0x3c] sm:$0xf]
      %v1356 = vunpack.c.l.b16 %v1324
      %v1357 = vunpack.c.l.b16 %v1325
      %v1358 = vunpack.c.l.b16 %v1326
      %v1359 = vunpack.c.l.b16 %v1327
      %v1360 = vunpack.c.l.b16 %v1328
      %v1361 = vunpack.c.l.b16 %v1329
      %v1362 = vunpack.c.l.b16 %v1330
      %v1363 = vunpack.c.l.b16 %v1331
      %v1364 = vunpack.c.l.b16 %v1332
      %v1365 = vunpack.c.l.b16 %v1333
      %v1366 = vunpack.c.l.b16 %v1334
      %v1367 = vunpack.c.l.b16 %v1335
      %v1368 = vunpack.c.l.b16 %v1336
      %v1369 = vunpack.c.l.b16 %v1337
      %v1370 = vunpack.c.l.b16 %v1338
      %v1371 = vunpack.c.l.b16 %v1339
      %v1372 = vpack.c.b16 %v1357, %v1356
      %v1373 = vpack.c.b16 %v1359, %v1358
      %v1374 = vpack.c.b16 %v1361, %v1360
      %v1375 = vpack.c.b16 %v1363, %v1362
      %v1376 = vpack.c.b16 %v1365, %v1364
      %v1377 = vpack.c.b16 %v1367, %v1366
      %v1378 = vpack.c.b16 %v1369, %v1368
      %v1379 = vpack.c.b16 %v1371, %v1370
      %1388 = vmatprep.subr.bf16.mxu0 0
      %1389 = vmatpush1.bf16.msra.mxu0 %v1372
      %1390 = vmatprep.subr.bf16.mxu0 0
      %1391 = vmatpush1.bf16.msra.mxu0 %v1373
      %1392 = vmatprep.subr.bf16.mxu0 0
      %1393 = vmatpush1.bf16.msra.mxu0 %v1374
      %1394 = vmatprep.subr.bf16.mxu0 0
      %1395 = vmatpush1.bf16.msra.mxu0 %v1375
      %1396 = vmatprep.subr.bf16.mxu0 0
      %1397 = vmatpush1.bf16.msra.mxu0 %v1376
      %1398 = vmatprep.subr.bf16.mxu0 0
      %1399 = vmatpush1.bf16.msra.mxu0 %v1377
      %1400 = vmatprep.subr.bf16.mxu0 0
      %1401 = vmatpush1.bf16.msra.mxu0 %v1378
      %1402 = vmatprep.subr.bf16.mxu0 0
      %1403 = vmatpush1.bf16.msra.mxu0 %v1379
      %1404 = vmatprep.subr.bf16.mxu0 0
      %1405 = vmatpush1.bf16.msra.mxu0 0
      %1406 = vmatprep.subr.bf16.mxu0 0
      %1407 = vmatpush1.bf16.msra.mxu0 0
      %1408 = vmatprep.subr.bf16.mxu0 0
      %1409 = vmatpush1.bf16.msra.mxu0 0
      %1410 = vmatprep.subr.bf16.mxu0 0
      %1411 = vmatpush1.bf16.msra.mxu0 0
      %1412 = vmatprep.subr.bf16.mxu0 0
      %1413 = vmatpush1.bf16.msra.mxu0 0
      %1414 = vmatprep.subr.bf16.mxu0 0
      %1415 = vmatpush1.bf16.msra.mxu0 0
      %1416 = vmatprep.subr.bf16.mxu0 0
      %1417 = vmatpush1.bf16.msra.mxu0 0
      %1418 = vmatprep.subr.bf16.mxu0 0
      %1419 = vmatpush1.bf16.msra.mxu0 0
      %1420 = vmatprep.mubr.bf16.mxu0 0
      %1421 = vmatmul.mubr.bf16.gmra.mrb[0].mxu0 %v1322
      %v1422 = vpop.f32.mrb[0].mxu0
      %v1423 = vadd.f32 0.0, %v1422
      %v1424 = vpop.f32.mrb[0].mxu0
      %v1425 = vpop.f32.mrb[0].mxu0
      %v1426 = vadd.f32 0.0, %v1425
      %v1427 = vpop.f32.mrb[0].mxu0
      %1428 = vdwg.mxu0
      %v1429 = vunpack.c.l.bf16 %v470
      %v1430 = vunpack.c.l.bf16 %v471
      %v1431 = vadd.f32 %v1429, %v1423
      %v1432 = vadd.f32 %v1430, %v1426
      %v1433 = vld [vmem:[%s7] sm:$0x1]
      %v1435 = vlaneseq
      %v1436 = vshrl.u32 %v1435, 7
      %v1437 = vsub.s32 0, %v1436
      %v1438 = vrot.slane %v1433, %v1437
      %v1440 = vadd.f32 %v1431, %v1438
      %v1441 = vadd.f32 %v1432, %v1438
      %v1442 = vld [vmem:[%s8] sm:$0x1]
      %v1443 = vld [vmem:[%s9] sm:$0x1]
      %1444 = vadd.xlane.f32.xlu0 %v1440
      %v1445 = vpop.xlane.xlu0 %1444
      %1446 = vadd.xlane.f32.xlu0 %v1441
      %v1447 = vpop.xlane.xlu0 %1446
      %v1448 = vrcp.pop 128.0
      %v1449 = vmul.f32 %v1445, %v1448
      %v1450 = vmul.f32 %v1447, %v1448
      %v1451 = vsub.f32 %v1440, %v1449
      %v1452 = vsub.f32 %v1441, %v1450
      %v1453 = vmul.f32 %v1451, %v1451
      %v1454 = vmul.f32 %v1452, %v1452
      %1455 = vadd.xlane.f32.xlu0 %v1453
      %v1456 = vpop.xlane.xlu0 %1455
      %1457 = vadd.xlane.f32.xlu0 %v1454
      %v1458 = vpop.xlane.xlu0 %1457
      %v1459 = vmul.f32 %v1456, %v1448
      %v1460 = vmul.f32 %v1458, %v1448
      %v1461 = vadd.f32 %v1459, 1e-05
      %v1462 = vadd.f32 %v1460, 1e-05
      %v1463 = vrsqrt.pop %v1461
      %v1464 = vrsqrt.pop %v1462
      %v1465 = vmul.f32 %v1451, %v1463
      %v1466 = vmul.f32 %v1452, %v1464
      %v1468 = vlaneseq
      %v1469 = vshrl.u32 %v1468, 7
      %v1470 = vsub.s32 0, %v1469
      %v1471 = vrot.slane %v1442, %v1470
      %v1473 = vmul.f32 %v1465, %v1471
      %v1474 = vmul.f32 %v1466, %v1471
      %v1476 = vlaneseq
      %v1477 = vshrl.u32 %v1476, 7
      %v1478 = vsub.s32 0, %v1477
      %v1479 = vrot.slane %v1443, %v1478
      %v1481 = vadd.f32 %v1473, %v1479
      %v1482 = vadd.f32 %v1474, %v1479
      %v1483 = vld [vmem:[%s448] sm:$0xff]
      %v1484 = vld [vmem:[%s448 + $0x8] sm:$0xff]
      %1486 = vset.pattern.permute.xlu0 0
      %1487 = vperm.xlu0 %1486, %v1483
      %v1488 = vpop.permute.xlu0 %1487
      %1491 = vset.pattern.permute.xlu0 0
      %1492 = vperm.xlu0 %1491, %v1484
      %v1493 = vpop.permute.xlu0 %1492
      %v1495 = vmul.f32 %v1481, %v1488
      %v1496 = vmul.f32 %v1482, %v1493
      %v1497 = vpack.c.bf16 %v1496, %v1495
      %v1499 = vunpack.c.l.b16 %v1497
      %v1500 = vunpack.c.h.b16 %v1497
      %v1501 = vpack.c.b16 %v1499, %v1499
      %v1502 = vpack.c.b16 %v1500, %v1500
      %1505 = vst [vmem:[%s458] sm:$0xf] %v1501
      %1506 = vst [vmem:[%s458 + $0x4] sm:$0xf] %v1502
      %s1507 = smul.u32 2, %s27
      %p1508 = scmp.lt.s32.totalorder %s26, 1
      %s1509 = scalar_select %p1508, %s26, 1
      %p1510 = scmp.lt.s32.totalorder %s1507, 3
      %s1511 = scalar_select %p1510, %s1507, 3
      %s1512 = smul.addr %s1509, 4
      %s1513 = sadd.s32 %s1511, %s1512
      %s1514 = smul.addr %s1513, 4
      %s1515 = scalar_lea.vmem %s11, %s1514
      // Predicated region
      $region65: #{transformer_decoder.7} parent=63 // pred_check
        %p1516 = pneg %p302
      $region66: #{transformer_decoder.7} parent=63 // pred_check_branch
        %1518 = sbr.rel (%p1516) target = $region68
      $region67: #{transformer_decoder.7} parent=63 // pred_region
        %s1519 = smul.u32 2, %s27
      $region68: #{transformer_decoder.7} parent=63 // pred_fallthru
        _
    $region64: #{transformer_decoder.7} parent=5 // pred_fallthru
      _
    %p1520 = scmp.le.s32.totalorder 2, %s17
    // Predicated region
    $region69: #{transformer_decoder.7} parent=5 // pred_check
      %p1521 = pneg %p1520
    $region70: #{transformer_decoder.7} parent=5 // pred_check_branch
      %1523 = sbr.rel (%p1521) target = $region72
    $region71: #{transformer_decoder.7} parent=5 // pred_region
      %s1524 = ssub.s32 %s17, 2
      // Predicated region
      $region73: #{transformer_decoder.7} parent=71 // pred_check
        %p1525 = pneg %p308
      $region74: #{transformer_decoder.7} parent=71 // pred_check_branch
        %1527 = sbr.rel (%p1525) target = $region76
      $region75: #{transformer_decoder.7} parent=71 // pred_region
        %s1528 = smul.u32 2, %s29
        %p1529 = scmp.lt.s32.totalorder %s28, 1
        %s1530 = scalar_select %p1529, %s28, 1
        %p1531 = scmp.lt.s32.totalorder %s1528, 3
        %s1532 = scalar_select %p1531, %s1528, 3
        %s1533 = smul.addr %s1530, 4
        %s1534 = sadd.s32 %s1532, %s1533
        %s1535 = smul.addr %s1534, 4
        %s1536 = scalar_lea.vmem %s11, %s1535
      $region76: #{transformer_decoder.7} parent=71 // pred_fallthru
        _
    $region72: #{transformer_decoder.7} parent=5 // pred_fallthru
      _
  $region6: #{transformer_decoder.7} parent=0 // loop_footer
    %s21 = sadd.s32 1, %s17
  $region7: #{transformer_decoder.7} parent=0 // loop_footer_branch
    %16 = sbr.rel target = $region3
  $region8: #{transformer_decoder.7} parent=0 // loop_exit
    _

</llo_original>
